<compile_context>
chip_gen: v6e
topology: v6e:2x2x1
jax: 0.10.0
libtpu: 0.0.40
codegen_flags: <defaults>
</compile_context>

<pallas_src>
import functools

import jax
import jax.numpy as jnp
from jax.experimental import pallas as pl
from jax.experimental.pallas import tpu as pltpu


def _resconv_kernel(main_ref, halo_ref, w_ref, b_ref, out_ref, acc_ref, *, T, W, C, d):
    """One (batch, row-tile) grid step.

    main_ref : (1, T,   Wp, C) bf16   padded rows [hi*T, hi*T + T)
    halo_ref : (1, 2*d, Wp, C) bf16   padded rows [hi*T + T, hi*T + T + 2*d)
    w_ref    : (9, C, C)       bf16   per-tap (Cin, Cout) weights, beta folded in
    b_ref    : (1, C)          f32    bias * beta
    out_ref  : (1, T, W, C)    bf16
    acc_ref  : (T*W, C)        f32    conv accumulator (scratch)
    """
    split = (T - d) * W

    # Initialise the accumulator with bias' + residual (the centre tap of the
    # padded input), so the epilogue is a single LeakyReLU pass.
    res_main = main_ref[0, d:T, d:d + W, :].reshape(split, C).astype(jnp.float32)
    res_halo = halo_ref[0, :d, d:d + W, :].reshape(d * W, C).astype(jnp.float32)
    acc_ref[:split] = b_ref[...] + res_main
    acc_ref[split:] = b_ref[...] + res_halo

    # Nine dilated 3x3 taps -> accumulating (M, C) x (C, C) matmuls on the MXU.
    # Each tap is read directly from the input blocks (no im2col materialisation);
    # rows that fall below the main tile come from the 2*d-row halo block.
    for kh in range(3):
        r = kh * d
        for kw in range(3):
            w_tap = w_ref[kh * 3 + kw]                                     # (Cin, Cout)
            if T > r:
                main_tap = main_ref[0, r:T, kw * d:kw * d + W, :].reshape((T - r) * W, C)
                acc_ref[:(T - r) * W] += jnp.dot(
                    main_tap, w_tap, preferred_element_type=jnp.float32)
            if r > 0:
                halo_tap = halo_ref[0, :r, kw * d:kw * d + W, :].reshape(r * W, C)
                acc_ref[(T - r) * W:] += jnp.dot(
                    halo_tap, w_tap, preferred_element_type=jnp.float32)

    y = acc_ref[...]
    y = jnp.maximum(y, 0.2 * y)                                            # LeakyReLU(0.2)
    out_ref[0] = y.reshape(T, W, C).astype(out_ref.dtype)


def _round_up(x, m):
    return ((x + m - 1) // m) * m


def _tile_vmem_bytes(T, W, C, d):
    """Rough layout-padded VMEM working set for one row tile (bf16 out, no im2col)."""
    Wp = W + 2 * d
    lanes = _round_up(C, 128)
    plane = _round_up(Wp, 8) * lanes
    in_b = 2 * (T + 2 * d) * plane * 2                  # bf16 main+halo blocks, x2 buffers
    out_b = 2 * T * _round_up(W, 8) * lanes * 2         # bf16 out block, x2 buffers
    acc_b = _round_up(T * W, 8) * lanes * 4             # f32 accumulator scratch
    epi_b = 2 * _round_up(T * W, 8) * lanes * 4         # f32 epilogue temporaries
    w_b = 2 * 9 * _round_up(C, 8) * lanes * 2           # resident bf16 weights, x2 buffers
    return in_b + out_b + acc_b + epi_b + w_b


def _vmem_budget_bytes():
    """Generation-aware (tile budget, scoped vmem limit) in bytes."""
    cap = 64 * 1024 * 1024                    # conservative default (v7x per-TC VMEM)
    try:
        info = pltpu.get_tpu_info()
        cap = int(getattr(info, "vmem_capacity_bytes", None) or cap)
    except Exception:
        pass
    budget = int(cap * 0.40)                                    # ~25 MiB v7x, ~51 MiB v5e/v6e
    limit = int(min(cap * 0.75, cap - (8 << 20)))               # ~48 MiB v7x, ~96 MiB v5e/v6e
    return budget, max(limit, 16 << 20)


def _choose_tile_h(B, H, W, C, d, budget_bytes):
    """Largest T with H % T == 0 and T % (2*d) == 0 fitting the VMEM budget."""
    step = 2 * d
    cands = [t for t in range(step, H + 1, step) if H % t == 0]
    if not cands:
        raise ValueError(
            f"No valid row tile: need T with H % T == 0 and T % {2*d} == 0 (H={H}, d={d}).")
    fitting = [t for t in cands if _tile_vmem_bytes(t, W, C, d) <= budget_bytes] or [cands[0]]
    if B == 1:
        # Megacore balance (v7x): prefer an even number of row tiles so both
        # TensorCores get work when there is a single batch element.
        even = [t for t in fitting if (H // t) % 2 == 0]
        if even:
            return max(even)
    return max(fitting)


def resconv_pallas_nhwc(x_nhwc, weight, bias, beta, *, dilation=1, tile_h=None):
    """NHWC entry point.  Returns (B, H, W, C) bf16 — feed the next layer directly."""
    B, H, W, C = x_nhwc.shape
    d = int(dilation)
    assert d >= 1
    Wp = W + 2 * d

    # TODO(synk): fold this pad into the kernel with edge-masked taps.
    x_pad = jnp.pad(x_nhwc.astype(jnp.bfloat16), ((0, 0), (d, d), (d, d), (0, 0)))

    # Fold beta into the conv weights/bias (f32 math, then a single bf16 cast).
    beta_c = beta.reshape(C).astype(jnp.float32)
    w9 = jnp.transpose(
        weight.astype(jnp.float32) * beta_c[:, None, None, None],          # (Cout,Cin,3,3)
        (2, 3, 1, 0)).reshape(9, C, C).astype(jnp.bfloat16)                # (tap,Cin,Cout)
    b2 = (bias.astype(jnp.float32) * beta_c).reshape(1, C)

    budget, vmem_limit = _vmem_budget_bytes()
    T = int(tile_h) if tile_h is not None else _choose_tile_h(B, H, W, C, d, budget)
    assert H % T == 0, "tile_h must divide H"
    assert T % (2 * d) == 0, "tile_h must be a multiple of 2*dilation (halo alignment)"
    n_h = H // T
    halo_step = T // (2 * d)

    kernel = functools.partial(_resconv_kernel, T=T, W=W, C=C, d=d)

    return pl.pallas_call(
        kernel,
        out_shape=jax.ShapeDtypeStruct((B, H, W, C), jnp.bfloat16),
        grid_spec=pltpu.PrefetchScalarGridSpec(
            num_scalar_prefetch=0,
            grid=(B, n_h),
            in_specs=[
                # main: padded rows [hi*T, hi*T + T)
                pl.BlockSpec((1, T, Wp, C), lambda bi, hi: (bi, hi, 0, 0)),
                # halo: padded rows [(hi+1)*T, (hi+1)*T + 2*d) — always in bounds
                pl.BlockSpec((1, 2 * d, Wp, C),
                             lambda bi, hi: (bi, (hi + 1) * halo_step, 0, 0)),
                pl.BlockSpec((9, C, C), lambda bi, hi: (0, 0, 0)),
                pl.BlockSpec((1, C), lambda bi, hi: (0, 0)),
            ],
            out_specs=pl.BlockSpec((1, T, W, C), lambda bi, hi: (bi, hi, 0, 0)),
            scratch_shapes=[pltpu.VMEM((T * W, C), jnp.float32)],
        ),
        compiler_params=pltpu.CompilerParams(
            dimension_semantics=("parallel", "parallel"),
            vmem_limit_bytes=vmem_limit,
        ),
    )(x_pad, x_pad, w9, b2)


def resconv_pallas(x_nchw, weight, bias, beta, *, dilation=1, tile_h=None,
                   out_dtype=jnp.bfloat16):
    """NCHW convenience wrapper matching the PyTorch module's interface.

    x_nchw: (B, C, H, W); weight: (C, C, 3, 3); bias: (C,); beta: (1, C, 1, 1).
    Output dtype defaults to bf16 (matches the kernel's activation stream).
    """
    # TODO(synk): keep the whole network NHWC/bf16 so these transpose passes
    # disappear from the HBM budget.
    x = jnp.transpose(x_nchw, (0, 2, 3, 1))
    y = resconv_pallas_nhwc(x, weight, bias, beta, dilation=dilation, tile_h=tile_h)
    return jnp.transpose(y, (0, 3, 1, 2)).astype(out_dtype)


def resconv_reference(x_nchw, weight, bias, beta, *, dilation=1):
    """Pure-JAX f32 reference matching torch semantics (NCHW)."""
    d = dilation
    conv = jax.lax.conv_general_dilated(
        x_nchw, weight,
        window_strides=(1, 1),
        padding=((d, d), (d, d)),
        rhs_dilation=(d, d),
        dimension_numbers=("NCHW", "OIHW", "NCHW"),
        precision=jax.lax.Precision.HIGHEST,
    ) + bias.reshape(1, -1, 1, 1)
    y = conv * beta + x_nchw
    return jnp.where(y > 0, y, 0.2 * y)


if __name__ == "__main__":
    def _run_case(B, C, H, W, d, tile_h, key):
        kx, kw_, kb, kbt = jax.random.split(key, 4)
        x = jax.random.normal(kx, (B, C, H, W), dtype=jnp.float32)
        weight = jax.random.normal(kw_, (C, C, 3, 3), dtype=jnp.float32) * 0.1
        bias = jax.random.normal(kb, (C,), dtype=jnp.float32) * 0.1
        beta = 1.0 + 0.1 * jax.random.normal(kbt, (1, C, 1, 1), dtype=jnp.float32)

        out = jax.block_until_ready(
            resconv_pallas(x, weight, bias, beta, dilation=d, tile_h=tile_h))
        ref = resconv_reference(x, weight, bias, beta, dilation=d)

        assert out.shape == (B, C, H, W)
        # bf16 activations/weights/output vs an f32 reference -> loose tolerance.
        assert jnp.allclose(out.astype(jnp.float32), ref, atol=8e-2, rtol=3e-2), \
            "mismatch vs reference"

    key = jax.random.PRNGKey(0)
    k1, k2, k3 = jax.random.split(key, 3)
    _run_case(2, 8, 16, 16, 1, 8, k1)      # dilation=1, two batches x two row tiles
    _run_case(1, 16, 16, 16, 2, 8, k2)     # dilation=2, 4-row halo blocks
    _run_case(1, 8, 16, 16, 1, None, k3)   # auto tile chooser (+ get_tpu_info budget)
    print("KERNEL_OK")
</pallas_src>

<mosaic_0001>
module attributes {stable_mosaic.version = 11 : i64} {
  func.func @_resconv_kernel(%arg0: i32, %arg1: i32, %arg2: memref<1x8x18x8xbf16, #tpu.memory_space<vmem>>, %arg3: memref<1x2x18x8xbf16, #tpu.memory_space<vmem>>, %arg4: memref<9x8x8xbf16, #tpu.memory_space<vmem>>, %arg5: memref<1x8xf32, #tpu.memory_space<vmem>>, %arg6: memref<1x8x16x8xbf16, #tpu.memory_space<vmem>>, %arg7: memref<128x8xf32, #tpu.memory_space<vmem>>) attributes {dimension_semantics = [#tpu.dimension_semantics<parallel>, #tpu.dimension_semantics<parallel>], iteration_bounds = array<i64: 2, 2>, scalar_prefetch = 0 : i64, scratch_operands = 1 : i64, tpu.core_type = #tpu.core_type<tc>, window_params = [{transform_indices = @transform_0, window_bounds = array<i64: 1, 8, 18, 8>}, {transform_indices = @transform_1, window_bounds = array<i64: 1, 2, 18, 8>}, {pipeline_mode = #tpu.pipeline_mode<synchronous>, transform_indices = @transform_2, window_bounds = array<i64: 9, 8, 8>}, {pipeline_mode = #tpu.pipeline_mode<synchronous>, transform_indices = @transform_3, window_bounds = array<i64: 1, 8>}, {transform_indices = @transform_4, window_bounds = array<i64: 1, 8, 16, 8>}]} {
    %c0 = arith.constant 0 : index
    %c1 = arith.constant 1 : index
    %c1_0 = arith.constant 1 : index
    %c0_1 = arith.constant 0 : index
    %0 = vector.load %arg2[%c0, %c1, %c1_0, %c0_1] : memref<1x8x18x8xbf16, #tpu.memory_space<vmem>>, vector<1x7x16x8xbf16>
    %1 = vector.shape_cast %0 : vector<1x7x16x8xbf16> to vector<7x16x8xbf16>
    %2 = vector.shape_cast %1 : vector<7x16x8xbf16> to vector<112x8xbf16>
    %3 = arith.extf %2 : vector<112x8xbf16> to vector<112x8xf32>
    %c0_2 = arith.constant 0 : index
    %c0_3 = arith.constant 0 : index
    %c1_4 = arith.constant 1 : index
    %c0_5 = arith.constant 0 : index
    %4 = vector.load %arg3[%c0_2, %c0_3, %c1_4, %c0_5] : memref<1x2x18x8xbf16, #tpu.memory_space<vmem>>, vector<1x1x16x8xbf16>
    %5 = vector.shape_cast %4 : vector<1x1x16x8xbf16> to vector<1x16x8xbf16>
    %6 = vector.shape_cast %5 : vector<1x16x8xbf16> to vector<16x8xbf16>
    %7 = arith.extf %6 : vector<16x8xbf16> to vector<16x8xf32>
    %c0_6 = arith.constant 0 : index
    %c0_7 = arith.constant 0 : index
    %8 = vector.load %arg5[%c0_6, %c0_7] : memref<1x8xf32, #tpu.memory_space<vmem>>, vector<1x8xf32>
    %9 = vector.broadcast %8 : vector<1x8xf32> to vector<112x8xf32>
    %10 = arith.addf %9, %3 : vector<112x8xf32>
    %c0_8 = arith.constant 0 : index
    %c0_9 = arith.constant 0 : index
    %11 = vector.load %arg7[%c0_8, %c0_9] : memref<128x8xf32, #tpu.memory_space<vmem>>, vector<112x8xf32>
    tpu.vector_store %arg7[%c0_8, %c0_9], %10 {strides = array<i32>} : memref<128x8xf32, #tpu.memory_space<vmem>>, vector<112x8xf32>,
    %c0_10 = arith.constant 0 : index
    %c0_11 = arith.constant 0 : index
    %12 = vector.load %arg5[%c0_10, %c0_11] : memref<1x8xf32, #tpu.memory_space<vmem>>, vector<1x8xf32>
    %13 = vector.broadcast %12 : vector<1x8xf32> to vector<16x8xf32>
    %14 = arith.addf %13, %7 : vector<16x8xf32>
    %c112 = arith.constant 112 : index
    %c0_12 = arith.constant 0 : index
    %15 = vector.load %arg7[%c112, %c0_12] : memref<128x8xf32, #tpu.memory_space<vmem>>, vector<16x8xf32>
    tpu.vector_store %arg7[%c112, %c0_12], %14 {strides = array<i32>} : memref<128x8xf32, #tpu.memory_space<vmem>>, vector<16x8xf32>,
    %c0_13 = arith.constant 0 : index
    %c0_14 = arith.constant 0 : index
    %c0_15 = arith.constant 0 : index
    %16 = vector.load %arg4[%c0_13, %c0_14, %c0_15] : memref<9x8x8xbf16, #tpu.memory_space<vmem>>, vector<1x8x8xbf16>
    %17 = vector.shape_cast %16 : vector<1x8x8xbf16> to vector<8x8xbf16>
    %c0_16 = arith.constant 0 : index
    %c0_17 = arith.constant 0 : index
    %c0_18 = arith.constant 0 : index
    %c0_19 = arith.constant 0 : index
    %18 = vector.load %arg2[%c0_16, %c0_17, %c0_18, %c0_19] : memref<1x8x18x8xbf16, #tpu.memory_space<vmem>>, vector<1x8x16x8xbf16>
    %19 = vector.shape_cast %18 : vector<1x8x16x8xbf16> to vector<8x16x8xbf16>
    %20 = vector.shape_cast %19 : vector<8x16x8xbf16> to vector<128x8xbf16>
    %c0_20 = arith.constant 0 : index
    %c0_21 = arith.constant 0 : index
    %21 = vector.load %arg7[%c0_20, %c0_21] : memref<128x8xf32, #tpu.memory_space<vmem>>, vector<128x8xf32>
    %cst = arith.constant dense<0.000000e+00> : vector<128x8xf32>
    %22 = tpu.matmul %20, %17, %cst {dimension_numbers = #tpu.dot_dimension_numbers<[1], [0], [0], [1], [0, 0, 1, 1], [], []>} : vector<128x8xbf16>, vector<8x8xbf16>, vector<128x8xf32> -> vector<128x8xf32>
    %23 = arith.addf %21, %22 : vector<128x8xf32>
    %c0_22 = arith.constant 0 : index
    %c0_23 = arith.constant 0 : index
    %24 = vector.load %arg7[%c0_22, %c0_23] : memref<128x8xf32, #tpu.memory_space<vmem>>, vector<128x8xf32>
    tpu.vector_store %arg7[%c0_22, %c0_23], %23 {strides = array<i32>} : memref<128x8xf32, #tpu.memory_space<vmem>>, vector<128x8xf32>,
    %c1_24 = arith.constant 1 : index
    %c0_25 = arith.constant 0 : index
    %c0_26 = arith.constant 0 : index
    %25 = vector.load %arg4[%c1_24, %c0_25, %c0_26] : memref<9x8x8xbf16, #tpu.memory_space<vmem>>, vector<1x8x8xbf16>
    %26 = vector.shape_cast %25 : vector<1x8x8xbf16> to vector<8x8xbf16>
    %c0_27 = arith.constant 0 : index
    %c0_28 = arith.constant 0 : index
    %c1_29 = arith.constant 1 : index
    %c0_30 = arith.constant 0 : index
    %27 = vector.load %arg2[%c0_27, %c0_28, %c1_29, %c0_30] : memref<1x8x18x8xbf16, #tpu.memory_space<vmem>>, vector<1x8x16x8xbf16>
    %28 = vector.shape_cast %27 : vector<1x8x16x8xbf16> to vector<8x16x8xbf16>
    %29 = vector.shape_cast %28 : vector<8x16x8xbf16> to vector<128x8xbf16>
    %c0_31 = arith.constant 0 : index
    %c0_32 = arith.constant 0 : index
    %30 = vector.load %arg7[%c0_31, %c0_32] : memref<128x8xf32, #tpu.memory_space<vmem>>, vector<128x8xf32>
    %cst_33 = arith.constant dense<0.000000e+00> : vector<128x8xf32>
    %31 = tpu.matmul %29, %26, %cst_33 {dimension_numbers = #tpu.dot_dimension_numbers<[1], [0], [0], [1], [0, 0, 1, 1], [], []>} : vector<128x8xbf16>, vector<8x8xbf16>, vector<128x8xf32> -> vector<128x8xf32>
    %32 = arith.addf %30, %31 : vector<128x8xf32>
    %c0_34 = arith.constant 0 : index
    %c0_35 = arith.constant 0 : index
    %33 = vector.load %arg7[%c0_34, %c0_35] : memref<128x8xf32, #tpu.memory_space<vmem>>, vector<128x8xf32>
    tpu.vector_store %arg7[%c0_34, %c0_35], %32 {strides = array<i32>} : memref<128x8xf32, #tpu.memory_space<vmem>>, vector<128x8xf32>,
    %c2 = arith.constant 2 : index
    %c0_36 = arith.constant 0 : index
    %c0_37 = arith.constant 0 : index
    %34 = vector.load %arg4[%c2, %c0_36, %c0_37] : memref<9x8x8xbf16, #tpu.memory_space<vmem>>, vector<1x8x8xbf16>
    %35 = vector.shape_cast %34 : vector<1x8x8xbf16> to vector<8x8xbf16>
    %c0_38 = arith.constant 0 : index
    %c0_39 = arith.constant 0 : index
    %c2_40 = arith.constant 2 : index
    %c0_41 = arith.constant 0 : index
    %36 = vector.load %arg2[%c0_38, %c0_39, %c2_40, %c0_41] : memref<1x8x18x8xbf16, #tpu.memory_space<vmem>>, vector<1x8x16x8xbf16>
    %37 = vector.shape_cast %36 : vector<1x8x16x8xbf16> to vector<8x16x8xbf16>
    %38 = vector.shape_cast %37 : vector<8x16x8xbf16> to vector<128x8xbf16>
    %c0_42 = arith.constant 0 : index
    %c0_43 = arith.constant 0 : index
    %39 = vector.load %arg7[%c0_42, %c0_43] : memref<128x8xf32, #tpu.memory_space<vmem>>, vector<128x8xf32>
    %cst_44 = arith.constant dense<0.000000e+00> : vector<128x8xf32>
    %40 = tpu.matmul %38, %35, %cst_44 {dimension_numbers = #tpu.dot_dimension_numbers<[1], [0], [0], [1], [0, 0, 1, 1], [], []>} : vector<128x8xbf16>, vector<8x8xbf16>, vector<128x8xf32> -> vector<128x8xf32>
    %41 = arith.addf %39, %40 : vector<128x8xf32>
    %c0_45 = arith.constant 0 : index
    %c0_46 = arith.constant 0 : index
    %42 = vector.load %arg7[%c0_45, %c0_46] : memref<128x8xf32, #tpu.memory_space<vmem>>, vector<128x8xf32>
    tpu.vector_store %arg7[%c0_45, %c0_46], %41 {strides = array<i32>} : memref<128x8xf32, #tpu.memory_space<vmem>>, vector<128x8xf32>,
    %c3 = arith.constant 3 : index
    %c0_47 = arith.constant 0 : index
    %c0_48 = arith.constant 0 : index
    %43 = vector.load %arg4[%c3, %c0_47, %c0_48] : memref<9x8x8xbf16, #tpu.memory_space<vmem>>, vector<1x8x8xbf16>
    %44 = vector.shape_cast %43 : vector<1x8x8xbf16> to vector<8x8xbf16>
    %c0_49 = arith.constant 0 : index
    %c1_50 = arith.constant 1 : index
    %c0_51 = arith.constant 0 : index
    %c0_52 = arith.constant 0 : index
    %45 = vector.load %arg2[%c0_49, %c1_50, %c0_51, %c0_52] : memref<1x8x18x8xbf16, #tpu.memory_space<vmem>>, vector<1x7x16x8xbf16>
    %46 = vector.shape_cast %45 : vector<1x7x16x8xbf16> to vector<7x16x8xbf16>
    %47 = vector.shape_cast %46 : vector<7x16x8xbf16> to vector<112x8xbf16>
    %c0_53 = arith.constant 0 : index
    %c0_54 = arith.constant 0 : index
    %48 = vector.load %arg7[%c0_53, %c0_54] : memref<128x8xf32, #tpu.memory_space<vmem>>, vector<112x8xf32>
    %cst_55 = arith.constant dense<0.000000e+00> : vector<112x8xf32>
    %49 = tpu.matmul %47, %44, %cst_55 {dimension_numbers = #tpu.dot_dimension_numbers<[1], [0], [0], [1], [0, 0, 1, 1], [], []>} : vector<112x8xbf16>, vector<8x8xbf16>, vector<112x8xf32> -> vector<112x8xf32>
    %50 = arith.addf %48, %49 : vector<112x8xf32>
    %c0_56 = arith.constant 0 : index
    %c0_57 = arith.constant 0 : index
    %51 = vector.load %arg7[%c0_56, %c0_57] : memref<128x8xf32, #tpu.memory_space<vmem>>, vector<112x8xf32>
    tpu.vector_store %arg7[%c0_56, %c0_57], %50 {strides = array<i32>} : memref<128x8xf32, #tpu.memory_space<vmem>>, vector<112x8xf32>,
    %c0_58 = arith.constant 0 : index
    %c0_59 = arith.constant 0 : index
    %c0_60 = arith.constant 0 : index
    %c0_61 = arith.constant 0 : index
    %52 = vector.load %arg3[%c0_58, %c0_59, %c0_60, %c0_61] : memref<1x2x18x8xbf16, #tpu.memory_space<vmem>>, vector<1x1x16x8xbf16>
    %53 = vector.shape_cast %52 : vector<1x1x16x8xbf16> to vector<1x16x8xbf16>
    %54 = vector.shape_cast %53 : vector<1x16x8xbf16> to vector<16x8xbf16>
    %c112_62 = arith.constant 112 : index
    %c0_63 = arith.constant 0 : index
    %55 = vector.load %arg7[%c112_62, %c0_63] : memref<128x8xf32, #tpu.memory_space<vmem>>, vector<16x8xf32>
    %cst_64 = arith.constant dense<0.000000e+00> : vector<16x8xf32>
    %56 = tpu.matmul %54, %44, %cst_64 {dimension_numbers = #tpu.dot_dimension_numbers<[1], [0], [0], [1], [0, 0, 1, 1], [], []>} : vector<16x8xbf16>, vector<8x8xbf16>, vector<16x8xf32> -> vector<16x8xf32>
    %57 = arith.addf %55, %56 : vector<16x8xf32>
    %c112_65 = arith.constant 112 : index
    %c0_66 = arith.constant 0 : index
    %58 = vector.load %arg7[%c112_65, %c0_66] : memref<128x8xf32, #tpu.memory_space<vmem>>, vector<16x8xf32>
    tpu.vector_store %arg7[%c112_65, %c0_66], %57 {strides = array<i32>} : memref<128x8xf32, #tpu.memory_space<vmem>>, vector<16x8xf32>,
    %c4 = arith.constant 4 : index
    %c0_67 = arith.constant 0 : index
    %c0_68 = arith.constant 0 : index
    %59 = vector.load %arg4[%c4, %c0_67, %c0_68] : memref<9x8x8xbf16, #tpu.memory_space<vmem>>, vector<1x8x8xbf16>
    %60 = vector.shape_cast %59 : vector<1x8x8xbf16> to vector<8x8xbf16>
    %c0_69 = arith.constant 0 : index
    %c1_70 = arith.constant 1 : index
    %c1_71 = arith.constant 1 : index
    %c0_72 = arith.constant 0 : index
    %61 = vector.load %arg2[%c0_69, %c1_70, %c1_71, %c0_72] : memref<1x8x18x8xbf16, #tpu.memory_space<vmem>>, vector<1x7x16x8xbf16>
    %62 = vector.shape_cast %61 : vector<1x7x16x8xbf16> to vector<7x16x8xbf16>
    %63 = vector.shape_cast %62 : vector<7x16x8xbf16> to vector<112x8xbf16>
    %c0_73 = arith.constant 0 : index
    %c0_74 = arith.constant 0 : index
    %64 = vector.load %arg7[%c0_73, %c0_74] : memref<128x8xf32, #tpu.memory_space<vmem>>, vector<112x8xf32>
    %cst_75 = arith.constant dense<0.000000e+00> : vector<112x8xf32>
    %65 = tpu.matmul %63, %60, %cst_75 {dimension_numbers = #tpu.dot_dimension_numbers<[1], [0], [0], [1], [0, 0, 1, 1], [], []>} : vector<112x8xbf16>, vector<8x8xbf16>, vector<112x8xf32> -> vector<112x8xf32>
    %66 = arith.addf %64, %65 : vector<112x8xf32>
    %c0_76 = arith.constant 0 : index
    %c0_77 = arith.constant 0 : index
    %67 = vector.load %arg7[%c0_76, %c0_77] : memref<128x8xf32, #tpu.memory_space<vmem>>, vector<112x8xf32>
    tpu.vector_store %arg7[%c0_76, %c0_77], %66 {strides = array<i32>} : memref<128x8xf32, #tpu.memory_space<vmem>>, vector<112x8xf32>,
    %c0_78 = arith.constant 0 : index
    %c0_79 = arith.constant 0 : index
    %c1_80 = arith.constant 1 : index
    %c0_81 = arith.constant 0 : index
    %68 = vector.load %arg3[%c0_78, %c0_79, %c1_80, %c0_81] : memref<1x2x18x8xbf16, #tpu.memory_space<vmem>>, vector<1x1x16x8xbf16>
    %69 = vector.shape_cast %68 : vector<1x1x16x8xbf16> to vector<1x16x8xbf16>
    %70 = vector.shape_cast %69 : vector<1x16x8xbf16> to vector<16x8xbf16>
    %c112_82 = arith.constant 112 : index
    %c0_83 = arith.constant 0 : index
    %71 = vector.load %arg7[%c112_82, %c0_83] : memref<128x8xf32, #tpu.memory_space<vmem>>, vector<16x8xf32>
    %cst_84 = arith.constant dense<0.000000e+00> : vector<16x8xf32>
    %72 = tpu.matmul %70, %60, %cst_84 {dimension_numbers = #tpu.dot_dimension_numbers<[1], [0], [0], [1], [0, 0, 1, 1], [], []>} : vector<16x8xbf16>, vector<8x8xbf16>, vector<16x8xf32> -> vector<16x8xf32>
    %73 = arith.addf %71, %72 : vector<16x8xf32>
    %c112_85 = arith.constant 112 : index
    %c0_86 = arith.constant 0 : index
    %74 = vector.load %arg7[%c112_85, %c0_86] : memref<128x8xf32, #tpu.memory_space<vmem>>, vector<16x8xf32>
    tpu.vector_store %arg7[%c112_85, %c0_86], %73 {strides = array<i32>} : memref<128x8xf32, #tpu.memory_space<vmem>>, vector<16x8xf32>,
    %c5 = arith.constant 5 : index
    %c0_87 = arith.constant 0 : index
    %c0_88 = arith.constant 0 : index
    %75 = vector.load %arg4[%c5, %c0_87, %c0_88] : memref<9x8x8xbf16, #tpu.memory_space<vmem>>, vector<1x8x8xbf16>
    %76 = vector.shape_cast %75 : vector<1x8x8xbf16> to vector<8x8xbf16>
    %c0_89 = arith.constant 0 : index
    %c1_90 = arith.constant 1 : index
    %c2_91 = arith.constant 2 : index
    %c0_92 = arith.constant 0 : index
    %77 = vector.load %arg2[%c0_89, %c1_90, %c2_91, %c0_92] : memref<1x8x18x8xbf16, #tpu.memory_space<vmem>>, vector<1x7x16x8xbf16>
    %78 = vector.shape_cast %77 : vector<1x7x16x8xbf16> to vector<7x16x8xbf16>
    %79 = vector.shape_cast %78 : vector<7x16x8xbf16> to vector<112x8xbf16>
    %c0_93 = arith.constant 0 : index
    %c0_94 = arith.constant 0 : index
    %80 = vector.load %arg7[%c0_93, %c0_94] : memref<128x8xf32, #tpu.memory_space<vmem>>, vector<112x8xf32>
    %cst_95 = arith.constant dense<0.000000e+00> : vector<112x8xf32>
    %81 = tpu.matmul %79, %76, %cst_95 {dimension_numbers = #tpu.dot_dimension_numbers<[1], [0], [0], [1], [0, 0, 1, 1], [], []>} : vector<112x8xbf16>, vector<8x8xbf16>, vector<112x8xf32> -> vector<112x8xf32>
    %82 = arith.addf %80, %81 : vector<112x8xf32>
    %c0_96 = arith.constant 0 : index
    %c0_97 = arith.constant 0 : index
    %83 = vector.load %arg7[%c0_96, %c0_97] : memref<128x8xf32, #tpu.memory_space<vmem>>, vector<112x8xf32>
    tpu.vector_store %arg7[%c0_96, %c0_97], %82 {strides = array<i32>} : memref<128x8xf32, #tpu.memory_space<vmem>>, vector<112x8xf32>,
    %c0_98 = arith.constant 0 : index
    %c0_99 = arith.constant 0 : index
    %c2_100 = arith.constant 2 : index
    %c0_101 = arith.constant 0 : index
    %84 = vector.load %arg3[%c0_98, %c0_99, %c2_100, %c0_101] : memref<1x2x18x8xbf16, #tpu.memory_space<vmem>>, vector<1x1x16x8xbf16>
    %85 = vector.shape_cast %84 : vector<1x1x16x8xbf16> to vector<1x16x8xbf16>
    %86 = vector.shape_cast %85 : vector<1x16x8xbf16> to vector<16x8xbf16>
    %c112_102 = arith.constant 112 : index
    %c0_103 = arith.constant 0 : index
    %87 = vector.load %arg7[%c112_102, %c0_103] : memref<128x8xf32, #tpu.memory_space<vmem>>, vector<16x8xf32>
    %cst_104 = arith.constant dense<0.000000e+00> : vector<16x8xf32>
    %88 = tpu.matmul %86, %76, %cst_104 {dimension_numbers = #tpu.dot_dimension_numbers<[1], [0], [0], [1], [0, 0, 1, 1], [], []>} : vector<16x8xbf16>, vector<8x8xbf16>, vector<16x8xf32> -> vector<16x8xf32>
    %89 = arith.addf %87, %88 : vector<16x8xf32>
    %c112_105 = arith.constant 112 : index
    %c0_106 = arith.constant 0 : index
    %90 = vector.load %arg7[%c112_105, %c0_106] : memref<128x8xf32, #tpu.memory_space<vmem>>, vector<16x8xf32>
    tpu.vector_store %arg7[%c112_105, %c0_106], %89 {strides = array<i32>} : memref<128x8xf32, #tpu.memory_space<vmem>>, vector<16x8xf32>,
    %c6 = arith.constant 6 : index
    %c0_107 = arith.constant 0 : index
    %c0_108 = arith.constant 0 : index
    %91 = vector.load %arg4[%c6, %c0_107, %c0_108] : memref<9x8x8xbf16, #tpu.memory_space<vmem>>, vector<1x8x8xbf16>
    %92 = vector.shape_cast %91 : vector<1x8x8xbf16> to vector<8x8xbf16>
    %c0_109 = arith.constant 0 : index
    %c2_110 = arith.constant 2 : index
    %c0_111 = arith.constant 0 : index
    %c0_112 = arith.constant 0 : index
    %93 = vector.load %arg2[%c0_109, %c2_110, %c0_111, %c0_112] : memref<1x8x18x8xbf16, #tpu.memory_space<vmem>>, vector<1x6x16x8xbf16>
    %94 = vector.shape_cast %93 : vector<1x6x16x8xbf16> to vector<6x16x8xbf16>
    %95 = vector.shape_cast %94 : vector<6x16x8xbf16> to vector<96x8xbf16>
    %c0_113 = arith.constant 0 : index
    %c0_114 = arith.constant 0 : index
    %96 = vector.load %arg7[%c0_113, %c0_114] : memref<128x8xf32, #tpu.memory_space<vmem>>, vector<96x8xf32>
    %cst_115 = arith.constant dense<0.000000e+00> : vector<96x8xf32>
    %97 = tpu.matmul %95, %92, %cst_115 {dimension_numbers = #tpu.dot_dimension_numbers<[1], [0], [0], [1], [0, 0, 1, 1], [], []>} : vector<96x8xbf16>, vector<8x8xbf16>, vector<96x8xf32> -> vector<96x8xf32>
    %98 = arith.addf %96, %97 : vector<96x8xf32>
    %c0_116 = arith.constant 0 : index
    %c0_117 = arith.constant 0 : index
    %99 = vector.load %arg7[%c0_116, %c0_117] : memref<128x8xf32, #tpu.memory_space<vmem>>, vector<96x8xf32>
    tpu.vector_store %arg7[%c0_116, %c0_117], %98 {strides = array<i32>} : memref<128x8xf32, #tpu.memory_space<vmem>>, vector<96x8xf32>,
    %c0_118 = arith.constant 0 : index
    %c0_119 = arith.constant 0 : index
    %c0_120 = arith.constant 0 : index
    %c0_121 = arith.constant 0 : index
    %100 = vector.load %arg3[%c0_118, %c0_119, %c0_120, %c0_121] : memref<1x2x18x8xbf16, #tpu.memory_space<vmem>>, vector<1x2x16x8xbf16>
    %101 = vector.shape_cast %100 : vector<1x2x16x8xbf16> to vector<2x16x8xbf16>
    %102 = vector.shape_cast %101 : vector<2x16x8xbf16> to vector<32x8xbf16>
    %c96 = arith.constant 96 : index
    %c0_122 = arith.constant 0 : index
    %103 = vector.load %arg7[%c96, %c0_122] : memref<128x8xf32, #tpu.memory_space<vmem>>, vector<32x8xf32>
    %cst_123 = arith.constant dense<0.000000e+00> : vector<32x8xf32>
    %104 = tpu.matmul %102, %92, %cst_123 {dimension_numbers = #tpu.dot_dimension_numbers<[1], [0], [0], [1], [0, 0, 1, 1], [], []>} : vector<32x8xbf16>, vector<8x8xbf16>, vector<32x8xf32> -> vector<32x8xf32>
    %105 = arith.addf %103, %104 : vector<32x8xf32>
    %c96_124 = arith.constant 96 : index
    %c0_125 = arith.constant 0 : index
    %106 = vector.load %arg7[%c96_124, %c0_125] : memref<128x8xf32, #tpu.memory_space<vmem>>, vector<32x8xf32>
    tpu.vector_store %arg7[%c96_124, %c0_125], %105 {strides = array<i32>} : memref<128x8xf32, #tpu.memory_space<vmem>>, vector<32x8xf32>,
    %c7 = arith.constant 7 : index
    %c0_126 = arith.constant 0 : index
    %c0_127 = arith.constant 0 : index
    %107 = vector.load %arg4[%c7, %c0_126, %c0_127] : memref<9x8x8xbf16, #tpu.memory_space<vmem>>, vector<1x8x8xbf16>
    %108 = vector.shape_cast %107 : vector<1x8x8xbf16> to vector<8x8xbf16>
    %c0_128 = arith.constant 0 : index
    %c2_129 = arith.constant 2 : index
    %c1_130 = arith.constant 1 : index
    %c0_131 = arith.constant 0 : index
    %109 = vector.load %arg2[%c0_128, %c2_129, %c1_130, %c0_131] : memref<1x8x18x8xbf16, #tpu.memory_space<vmem>>, vector<1x6x16x8xbf16>
    %110 = vector.shape_cast %109 : vector<1x6x16x8xbf16> to vector<6x16x8xbf16>
    %111 = vector.shape_cast %110 : vector<6x16x8xbf16> to vector<96x8xbf16>
    %c0_132 = arith.constant 0 : index
    %c0_133 = arith.constant 0 : index
    %112 = vector.load %arg7[%c0_132, %c0_133] : memref<128x8xf32, #tpu.memory_space<vmem>>, vector<96x8xf32>
    %cst_134 = arith.constant dense<0.000000e+00> : vector<96x8xf32>
    %113 = tpu.matmul %111, %108, %cst_134 {dimension_numbers = #tpu.dot_dimension_numbers<[1], [0], [0], [1], [0, 0, 1, 1], [], []>} : vector<96x8xbf16>, vector<8x8xbf16>, vector<96x8xf32> -> vector<96x8xf32>
    %114 = arith.addf %112, %113 : vector<96x8xf32>
    %c0_135 = arith.constant 0 : index
    %c0_136 = arith.constant 0 : index
    %115 = vector.load %arg7[%c0_135, %c0_136] : memref<128x8xf32, #tpu.memory_space<vmem>>, vector<96x8xf32>
    tpu.vector_store %arg7[%c0_135, %c0_136], %114 {strides = array<i32>} : memref<128x8xf32, #tpu.memory_space<vmem>>, vector<96x8xf32>,
    %c0_137 = arith.constant 0 : index
    %c0_138 = arith.constant 0 : index
    %c1_139 = arith.constant 1 : index
    %c0_140 = arith.constant 0 : index
    %116 = vector.load %arg3[%c0_137, %c0_138, %c1_139, %c0_140] : memref<1x2x18x8xbf16, #tpu.memory_space<vmem>>, vector<1x2x16x8xbf16>
    %117 = vector.shape_cast %116 : vector<1x2x16x8xbf16> to vector<2x16x8xbf16>
    %118 = vector.shape_cast %117 : vector<2x16x8xbf16> to vector<32x8xbf16>
    %c96_141 = arith.constant 96 : index
    %c0_142 = arith.constant 0 : index
    %119 = vector.load %arg7[%c96_141, %c0_142] : memref<128x8xf32, #tpu.memory_space<vmem>>, vector<32x8xf32>
    %cst_143 = arith.constant dense<0.000000e+00> : vector<32x8xf32>
    %120 = tpu.matmul %118, %108, %cst_143 {dimension_numbers = #tpu.dot_dimension_numbers<[1], [0], [0], [1], [0, 0, 1, 1], [], []>} : vector<32x8xbf16>, vector<8x8xbf16>, vector<32x8xf32> -> vector<32x8xf32>
    %121 = arith.addf %119, %120 : vector<32x8xf32>
    %c96_144 = arith.constant 96 : index
    %c0_145 = arith.constant 0 : index
    %122 = vector.load %arg7[%c96_144, %c0_145] : memref<128x8xf32, #tpu.memory_space<vmem>>, vector<32x8xf32>
    tpu.vector_store %arg7[%c96_144, %c0_145], %121 {strides = array<i32>} : memref<128x8xf32, #tpu.memory_space<vmem>>, vector<32x8xf32>,
    %c8 = arith.constant 8 : index
    %c0_146 = arith.constant 0 : index
    %c0_147 = arith.constant 0 : index
    %123 = vector.load %arg4[%c8, %c0_146, %c0_147] : memref<9x8x8xbf16, #tpu.memory_space<vmem>>, vector<1x8x8xbf16>
    %124 = vector.shape_cast %123 : vector<1x8x8xbf16> to vector<8x8xbf16>
    %c0_148 = arith.constant 0 : index
    %c2_149 = arith.constant 2 : index
    %c2_150 = arith.constant 2 : index
    %c0_151 = arith.constant 0 : index
    %125 = vector.load %arg2[%c0_148, %c2_149, %c2_150, %c0_151] : memref<1x8x18x8xbf16, #tpu.memory_space<vmem>>, vector<1x6x16x8xbf16>
    %126 = vector.shape_cast %125 : vector<1x6x16x8xbf16> to vector<6x16x8xbf16>
    %127 = vector.shape_cast %126 : vector<6x16x8xbf16> to vector<96x8xbf16>
    %c0_152 = arith.constant 0 : index
    %c0_153 = arith.constant 0 : index
    %128 = vector.load %arg7[%c0_152, %c0_153] : memref<128x8xf32, #tpu.memory_space<vmem>>, vector<96x8xf32>
    %cst_154 = arith.constant dense<0.000000e+00> : vector<96x8xf32>
    %129 = tpu.matmul %127, %124, %cst_154 {dimension_numbers = #tpu.dot_dimension_numbers<[1], [0], [0], [1], [0, 0, 1, 1], [], []>} : vector<96x8xbf16>, vector<8x8xbf16>, vector<96x8xf32> -> vector<96x8xf32>
    %130 = arith.addf %128, %129 : vector<96x8xf32>
    %c0_155 = arith.constant 0 : index
    %c0_156 = arith.constant 0 : index
    %131 = vector.load %arg7[%c0_155, %c0_156] : memref<128x8xf32, #tpu.memory_space<vmem>>, vector<96x8xf32>
    tpu.vector_store %arg7[%c0_155, %c0_156], %130 {strides = array<i32>} : memref<128x8xf32, #tpu.memory_space<vmem>>, vector<96x8xf32>,
    %c0_157 = arith.constant 0 : index
    %c0_158 = arith.constant 0 : index
    %c2_159 = arith.constant 2 : index
    %c0_160 = arith.constant 0 : index
    %132 = vector.load %arg3[%c0_157, %c0_158, %c2_159, %c0_160] : memref<1x2x18x8xbf16, #tpu.memory_space<vmem>>, vector<1x2x16x8xbf16>
    %133 = vector.shape_cast %132 : vector<1x2x16x8xbf16> to vector<2x16x8xbf16>
    %134 = vector.shape_cast %133 : vector<2x16x8xbf16> to vector<32x8xbf16>
    %c96_161 = arith.constant 96 : index
    %c0_162 = arith.constant 0 : index
    %135 = vector.load %arg7[%c96_161, %c0_162] : memref<128x8xf32, #tpu.memory_space<vmem>>, vector<32x8xf32>
    %cst_163 = arith.constant dense<0.000000e+00> : vector<32x8xf32>
    %136 = tpu.matmul %134, %124, %cst_163 {dimension_numbers = #tpu.dot_dimension_numbers<[1], [0], [0], [1], [0, 0, 1, 1], [], []>} : vector<32x8xbf16>, vector<8x8xbf16>, vector<32x8xf32> -> vector<32x8xf32>
    %137 = arith.addf %135, %136 : vector<32x8xf32>
    %c96_164 = arith.constant 96 : index
    %c0_165 = arith.constant 0 : index
    %138 = vector.load %arg7[%c96_164, %c0_165] : memref<128x8xf32, #tpu.memory_space<vmem>>, vector<32x8xf32>
    tpu.vector_store %arg7[%c96_164, %c0_165], %137 {strides = array<i32>} : memref<128x8xf32, #tpu.memory_space<vmem>>, vector<32x8xf32>,
    %c0_166 = arith.constant 0 : index
    %c0_167 = arith.constant 0 : index
    %139 = vector.load %arg7[%c0_166, %c0_167] : memref<128x8xf32, #tpu.memory_space<vmem>>, vector<128x8xf32>
    %cst_168 = arith.constant 2.000000e-01 : f32
    %140 = vector.broadcast %cst_168 : f32 to vector<128x8xf32>
    %141 = arith.mulf %140, %139 : vector<128x8xf32>
    %142 = arith.maximumf %139, %141 : vector<128x8xf32>
    %143 = vector.shape_cast %142 : vector<128x8xf32> to vector<8x16x8xf32>
    %144 = arith.truncf %143 : vector<8x16x8xf32> to vector<8x16x8xbf16>
    %c0_169 = arith.constant 0 : index
    %c0_170 = arith.constant 0 : index
    %c0_171 = arith.constant 0 : index
    %c0_172 = arith.constant 0 : index
    %145 = vector.load %arg6[%c0_169, %c0_170, %c0_171, %c0_172] : memref<1x8x16x8xbf16, #tpu.memory_space<vmem>>, vector<1x8x16x8xbf16>
    %146 = vector.shape_cast %145 : vector<1x8x16x8xbf16> to vector<8x16x8xbf16>
    %147 = vector.shape_cast %144 : vector<8x16x8xbf16> to vector<1x8x16x8xbf16>
    tpu.vector_store %arg6[%c0_169, %c0_170, %c0_171, %c0_172], %147 {strides = array<i32>} : memref<1x8x16x8xbf16, #tpu.memory_space<vmem>>, vector<1x8x16x8xbf16>,
    return
  }
  func.func @transform_0(%arg0: i32, %arg1: i32) -> (i32, i32, i32, i32) {
    %c0_i32 = arith.constant 0 : i32
    %c0_i32_0 = arith.constant 0 : i32
    %c0_i32_1 = arith.constant 0 : i32
    return %arg0, %arg1, %c0_i32, %c0_i32_0 : i32, i32, i32, i32
  }
  func.func @transform_1(%arg0: i32, %arg1: i32) -> (i32, i32, i32, i32) {
    %c1_i32 = arith.constant 1 : i32
    %0 = arith.addi %arg1, %c1_i32 : i32
    %c4_i32 = arith.constant 4 : i32
    %1 = arith.muli %0, %c4_i32 : i32
    %c0_i32 = arith.constant 0 : i32
    %c0_i32_0 = arith.constant 0 : i32
    %c0_i32_1 = arith.constant 0 : i32
    return %arg0, %1, %c0_i32, %c0_i32_0 : i32, i32, i32, i32
  }
  func.func @transform_2(%arg0: i32, %arg1: i32) -> (i32, i32, i32) {
    %c0_i32 = arith.constant 0 : i32
    %c0_i32_0 = arith.constant 0 : i32
    %c0_i32_1 = arith.constant 0 : i32
    %c0_i32_2 = arith.constant 0 : i32
    return %c0_i32, %c0_i32_0, %c0_i32_1 : i32, i32, i32
  }
  func.func @transform_3(%arg0: i32, %arg1: i32) -> (i32, i32) {
    %c0_i32 = arith.constant 0 : i32
    %c0_i32_0 = arith.constant 0 : i32
    %c0_i32_1 = arith.constant 0 : i32
    return %c0_i32, %c0_i32_0 : i32, i32
  }
  func.func @transform_4(%arg0: i32, %arg1: i32) -> (i32, i32, i32, i32) {
    %c0_i32 = arith.constant 0 : i32
    %c0_i32_0 = arith.constant 0 : i32
    %c0_i32_1 = arith.constant 0 : i32
    return %arg0, %arg1, %c0_i32, %c0_i32_0 : i32, i32, i32, i32
  }
}

</mosaic_0001>

<llo_original>
// kernel: tpu_custom_call.1
$region0: #{tpu_custom_call.1}
  #allocation0 [shape = 'u32[]', space=smem, size = 0x4, offset = 0x4, fixed_abs, tag = 'smem constant byte address 0x4 - core index']
  #allocation1 [shape = 'u32[144,128]{1,0:T(1,128)}', space=vmem, size = 0x12000, scoped, tag = 'internal scratch']
  #allocation2 [shape = 'f32[128,8]{1,0:T(8,128)}', space=vmem, size = 0x10000, scoped, tag = 'scratch operand']
  %s0 = inlined_call_operand.vmem [shape: bf16[2,18,18,8], index: 0, kind: input, shape index: {}]
  %s1 = inlined_call_operand.vmem [shape: bf16[2,18,18,8], index: 1, kind: input, shape index: {}]
  %s2 = inlined_call_operand.vmem [shape: bf16[9,8,8], index: 2, kind: input, shape index: {}]
  %s3 = inlined_call_operand.vmem [shape: f32[1,8], index: 3, kind: input, shape index: {}]
  %s4 = inlined_call_operand.vmem [shape: bf16[2,16,16,8], index: 4, kind: output, shape index: {}]
  %s5 = sld [smem:[#allocation0]]
  $region49: #{tpu_custom_call.1} parent=0
    _
  %s7 = ssub.s32 1, %s5
  %s8 = scalar_select 0, %s7, %s5
  loop: start=0, step=1, limit=6
  $region2: #{tpu_custom_call.1} parent=0 // loop_pre_header
    _
  $region3: #{tpu_custom_call.1} parent=0 // loop_header
    %s10 = sphi 0, %s14
    %p11 = scmp.ge.s32.totalorder %s10, 6
    %s17 = sphi 0, %s29
    %s18 = sphi 0, %s25
    %s19 = sphi 0, %s17
    %s20 = sphi 0, %s18
    %s21 = sphi 0, %s19
    %s22 = sphi 0, %s20
    %s34 = sphi 0, %s36
    %s37 = sphi 0, %s34
    %s38 = sphi 0, %s37
    %s54 = sphi 0, %s38
    %s66 = sphi 0, %s68
    %s69 = sphi 0, %s66
    %s70 = sphi 0, %s69
    %s86 = sphi 0, %s70
    %s90 = sphi 0, %s90
    %s92 = sphi 0, %s90
    %s93 = sphi 0, %s92
    %s107 = sphi 0, %s93
    %s111 = sphi 0, %s111
    %s113 = sphi 0, %s111
    %s114 = sphi 0, %s113
    %s128 = sphi 0, %s114
    %s136 = sphi 0, %s138
    %s139 = sphi 0, %s136
    %s140 = sphi 0, %s139
    %s156 = sphi 0, %s140
  $region4: #{tpu_custom_call.1} parent=0 // loop_header_branch
    %13 = sbr.rel (%p11) target = $region8
  $region5: #{tpu_custom_call.1} parent=0 // loop_body
    %s15 = ssub.s32 %s10, 1
    %s16 = ssub.s32 %s10, 2
    %s23 = sadd.s32 1, %s18
    %p24 = scmp.ge.s32.totalorder %s23, 2
    %s25 = scalar_select %p24, 0, %s23
    %s26 = sadd.s32 1, %s17
    %s27 = scalar_select %p24, %s26, %s17
    %p28 = scmp.ge.s32.totalorder %s27, 2
    %s29 = scalar_select %p28, 0, %s27
    %s30 = ssub.s32 %s17, %s29
    %s31 = ssub.s32 %s18, %s25
    %s32 = sor.u32 %s30, %s31
    %p33 = scmp.eq.s32.totalorder %s32, 0
    %s35 = sadd.s32 %s34, 1
    %s36 = scalar_select %p33, %s34, %s35
    %p39 = pneg %p33
    %p40 = scmp.eq.s32.totalorder %s10, 3
    %p41 = por %p39, %p40
    %p42 = scmp.ne.s32.totalorder %s34, %s37
    %p43 = scmp.eq.s32.totalorder %s10, 0
    %p44 = por %p42, %p43
    %p45 = scmp.ne.s32.totalorder %s34, %s37
    %p46 = scmp.eq.s32.totalorder %s15, 3
    %p47 = por %p45, %p46
    %p48 = scmp.ne.s32.totalorder %s37, %s38
    %p49 = scmp.eq.s32.totalorder %s15, 0
    %p50 = por %p48, %p49
    %p51 = scmp.ne.s32.totalorder %s37, %s38
    %p52 = scmp.eq.s32.totalorder %s16, 3
    %p53 = por %p51, %p52
    %p55 = scmp.ne.s32.totalorder %s38, %s54
    %p56 = scmp.eq.s32.totalorder %s16, 0
    %p57 = por %p55, %p56
    %s58 = sadd.s32 %s18, 1
    %s59 = smul.u32 %s58, 4
    %s60 = sadd.s32 %s25, 1
    %s61 = smul.u32 %s60, 4
    %s62 = ssub.s32 %s17, %s29
    %s63 = ssub.s32 %s59, %s61
    %s64 = sor.u32 %s62, %s63
    %p65 = scmp.eq.s32.totalorder %s64, 0
    %s67 = sadd.s32 %s66, 1
    %s68 = scalar_select %p65, %s66, %s67
    %p71 = pneg %p65
    %p72 = scmp.eq.s32.totalorder %s10, 3
    %p73 = por %p71, %p72
    %p74 = scmp.ne.s32.totalorder %s66, %s69
    %p75 = scmp.eq.s32.totalorder %s10, 0
    %p76 = por %p74, %p75
    %p77 = scmp.ne.s32.totalorder %s66, %s69
    %p78 = scmp.eq.s32.totalorder %s15, 3
    %p79 = por %p77, %p78
    %p80 = scmp.ne.s32.totalorder %s69, %s70
    %p81 = scmp.eq.s32.totalorder %s15, 0
    %p82 = por %p80, %p81
    %p83 = scmp.ne.s32.totalorder %s69, %s70
    %p84 = scmp.eq.s32.totalorder %s16, 3
    %p85 = por %p83, %p84
    %p87 = scmp.ne.s32.totalorder %s70, %s86
    %p88 = scmp.eq.s32.totalorder %s16, 0
    %p89 = por %p87, %p88
    %s91 = sadd.s32 %s90, 1
    %p94 = scmp.eq.s32.totalorder %s10, 3
    %p95 = scmp.ne.s32.totalorder %s90, %s92
    %p96 = scmp.eq.s32.totalorder %s10, 0
    %p97 = por %p95, %p96
    %p98 = scmp.ne.s32.totalorder %s90, %s92
    %p99 = scmp.eq.s32.totalorder %s15, 3
    %p100 = por %p98, %p99
    %p101 = scmp.ne.s32.totalorder %s92, %s93
    %p102 = scmp.eq.s32.totalorder %s15, 0
    %p103 = por %p101, %p102
    %p104 = scmp.ne.s32.totalorder %s92, %s93
    %p105 = scmp.eq.s32.totalorder %s16, 3
    %p106 = por %p104, %p105
    %p108 = scmp.ne.s32.totalorder %s93, %s107
    %p109 = scmp.eq.s32.totalorder %s16, 0
    %p110 = por %p108, %p109
    %s112 = sadd.s32 %s111, 1
    %p115 = scmp.eq.s32.totalorder %s10, 3
    %p116 = scmp.ne.s32.totalorder %s111, %s113
    %p117 = scmp.eq.s32.totalorder %s10, 0
    %p118 = por %p116, %p117
    %p119 = scmp.ne.s32.totalorder %s111, %s113
    %p120 = scmp.eq.s32.totalorder %s15, 3
    %p121 = por %p119, %p120
    %p122 = scmp.ne.s32.totalorder %s113, %s114
    %p123 = scmp.eq.s32.totalorder %s15, 0
    %p124 = por %p122, %p123
    %p125 = scmp.ne.s32.totalorder %s113, %s114
    %p126 = scmp.eq.s32.totalorder %s16, 3
    %p127 = por %p125, %p126
    %p129 = scmp.ne.s32.totalorder %s114, %s128
    %p130 = scmp.eq.s32.totalorder %s16, 0
    %p131 = por %p129, %p130
    %s132 = ssub.s32 %s17, %s29
    %s133 = ssub.s32 %s18, %s25
    %s134 = sor.u32 %s132, %s133
    %p135 = scmp.eq.s32.totalorder %s134, 0
    %s137 = sadd.s32 %s136, 1
    %s138 = scalar_select %p135, %s136, %s137
    %p141 = pneg %p135
    %p142 = scmp.eq.s32.totalorder %s10, 3
    %p143 = por %p141, %p142
    %p144 = scmp.ne.s32.totalorder %s136, %s139
    %p145 = scmp.eq.s32.totalorder %s10, 0
    %p146 = por %p144, %p145
    %p147 = scmp.ne.s32.totalorder %s136, %s139
    %p148 = scmp.eq.s32.totalorder %s15, 3
    %p149 = por %p147, %p148
    %p150 = scmp.ne.s32.totalorder %s139, %s140
    %p151 = scmp.eq.s32.totalorder %s15, 0
    %p152 = por %p150, %p151
    %p153 = scmp.ne.s32.totalorder %s139, %s140
    %p154 = scmp.eq.s32.totalorder %s16, 3
    %p155 = por %p153, %p154
    %p157 = scmp.ne.s32.totalorder %s140, %s156
    %p158 = scmp.eq.s32.totalorder %s16, 0
    %p159 = por %p157, %p158
    %p160 = scmp.le.s32.totalorder 1, %s10
    %p161 = scmp.lt.s32.totalorder %s10, 5
    %p162 = pnand %p160, %p161
    %p163 = pneg %p162
    // Predicated region
    $region9: #{tpu_custom_call.1} parent=5 // pred_check
      _
    $region10: #{tpu_custom_call.1} parent=5 // pred_check_branch
      %165 = sbr.rel (%p162) target = $region12
    $region11: #{tpu_custom_call.1} parent=5 // pred_region
      %s166 = ssub.s32 %s10, 1
      // Predicated region
      $region13: #{tpu_custom_call.1} parent=11 // pred_check
        %p167 = pneg %p103
      $region14: #{tpu_custom_call.1} parent=11 // pred_check_branch
        %169 = sbr.rel (%p167) target = $region16
      $region15: #{tpu_custom_call.1} parent=11 // pred_region
        _
      $region16: #{tpu_custom_call.1} parent=11 // pred_fallthru
        _
      // Predicated region
      $region17: #{tpu_custom_call.1} parent=11 // pred_check
        %p170 = pneg %p124
      $region18: #{tpu_custom_call.1} parent=11 // pred_check_branch
        %172 = sbr.rel (%p170) target = $region20
      $region19: #{tpu_custom_call.1} parent=11 // pred_region
        _
      $region20: #{tpu_custom_call.1} parent=11 // pred_fallthru
        _
    $region12: #{tpu_custom_call.1} parent=5 // pred_fallthru
      _
    %p173 = scmp.lt.s32.totalorder %s10, 4
    // Predicated region
    $region21: #{tpu_custom_call.1} parent=5 // pred_check
      %p174 = pneg %p173
    $region22: #{tpu_custom_call.1} parent=5 // pred_check_branch
      %176 = sbr.rel (%p174) target = $region24
    $region23: #{tpu_custom_call.1} parent=5 // pred_region
      // Predicated region
      $region25: #{tpu_custom_call.1} parent=23 // pred_check
        %p177 = pneg %p44
      $region26: #{tpu_custom_call.1} parent=23 // pred_check_branch
        %179 = sbr.rel (%p177) target = $region28
      $region27: #{tpu_custom_call.1} parent=23 // pred_region
        %s180 = smul.u32 8, %s18
        %s181 = ssub.s32 18, %s180
        %p182 = scmp.lt.s32.totalorder %s181, 8
        %s183 = scalar_select %p182, %s181, 8
        %s184 = smul.u32 64, %s183
        %s185 = smul.u32 %s184, 3
        %p186 = scmp.lt.s32.totalorder %s17, 1
        %s187 = scalar_select %p186, %s17, 1
        %p188 = scmp.lt.s32.totalorder %s180, 17
        %s189 = scalar_select %p188, %s180, 17
        %s190 = smul.addr %s189, 3
        %s191 = smul.addr %s187, 54
        %s192 = sadd.s32 %s190, %s191
        %s193 = smul.addr %s192, 4
        %s194 = scalar_lea.vmem %s0, %s193
        %s195 = smul.u32 8, %s18
        %s196 = ssub.s32 18, %s195
        %p197 = scmp.lt.s32.totalorder %s196, 8
        %s198 = scalar_select %p197, %s196, 8
        %s199 = smul.u32 64, %s198
        %s200 = smul.u32 %s199, 3
      $region28: #{tpu_custom_call.1} parent=23 // pred_fallthru
        _
      // Predicated region
      $region29: #{tpu_custom_call.1} parent=23 // pred_check
        %p201 = pneg %p76
      $region30: #{tpu_custom_call.1} parent=23 // pred_check_branch
        %203 = sbr.rel (%p201) target = $region32
      $region31: #{tpu_custom_call.1} parent=23 // pred_region
        %s204 = sadd.s32 %s18, 1
        %s205 = smul.u32 %s204, 4
        %s206 = smul.u32 2, %s205
        %p207 = scmp.lt.s32.totalorder %s17, 1
        %s208 = scalar_select %p207, %s17, 1
        %p209 = scmp.lt.s32.totalorder %s206, 17
        %s210 = scalar_select %p209, %s206, 17
        %s211 = smul.addr %s210, 3
        %s212 = smul.addr %s208, 54
        %s213 = sadd.s32 %s211, %s212
        %s214 = smul.addr %s213, 4
        %s215 = scalar_lea.vmem %s1, %s214
        %s216 = sadd.s32 %s18, 1
        %s217 = smul.u32 %s216, 4
        %s218 = smul.u32 2, %s217
      $region32: #{tpu_custom_call.1} parent=23 // pred_fallthru
        _
    $region24: #{tpu_custom_call.1} parent=5 // pred_fallthru
      _
    %p219 = scmp.le.s32.totalorder 1, %s10
    %p220 = scmp.lt.s32.totalorder %s10, 5
    %p221 = pnand %p219, %p220
    %p222 = pneg %p221
    // Predicated region
    $region33: #{tpu_custom_call.1} parent=5 // pred_check
      _
    $region34: #{tpu_custom_call.1} parent=5 // pred_check_branch
      %224 = sbr.rel (%p221) target = $region36
    $region35: #{tpu_custom_call.1} parent=5 // pred_region
      %s225 = ssub.s32 %s10, 1
      %s226 = smul.u32 8, %s20
      %s227 = ssub.s32 18, %s226
      %p228 = scmp.lt.s32.totalorder %s227, 8
      %s229 = scalar_select %p228, %s227, 8
      %s230 = smul.u32 64, %s229
      %s231 = smul.u32 %s230, 3
      %p232 = scmp.lt.s32.totalorder %s19, 1
      %s233 = scalar_select %p232, %s19, 1
      %p234 = scmp.lt.s32.totalorder %s226, 17
      %s235 = scalar_select %p234, %s226, 17
      %s236 = smul.addr %s235, 3
      %s237 = smul.addr %s233, 54
      %s238 = sadd.s32 %s236, %s237
      %s239 = smul.addr %s238, 4
      %s240 = scalar_lea.vmem %s0, %s239
      %p241 = pneg %p50
      %p242 = pneg %p47
      %s243 = sadd.s32 %s20, 1
      %s244 = smul.u32 %s243, 4
      %s245 = smul.u32 2, %s244
      %p246 = scmp.lt.s32.totalorder %s19, 1
      %s247 = scalar_select %p246, %s19, 1
      %p248 = scmp.lt.s32.totalorder %s245, 17
      %s249 = scalar_select %p248, %s245, 17
      %s250 = smul.addr %s249, 3
      %s251 = smul.addr %s247, 54
      %s252 = sadd.s32 %s250, %s251
      %s253 = smul.addr %s252, 4
      %s254 = scalar_lea.vmem %s1, %s253
      %p255 = pneg %p82
      %p256 = pneg %p79
      %p257 = pneg %p103
      %p258 = pneg %p100
      %p259 = pneg %p124
      %p260 = pneg %p121
      %p261 = pneg %p152
      %p262 = pneg %p149
      %s263 = smul.u32 8, %s20
      %p264 = scmp.lt.s32.totalorder %s19, 1
      %s265 = scalar_select %p264, %s19, 1
      %p266 = scmp.lt.s32.totalorder %s263, 15
      %s267 = scalar_select %p266, %s263, 15
      %s268 = smul.addr %s267, 2
      %s269 = smul.addr %s265, 32
      %s270 = sadd.s32 %s268, %s269
      %s271 = smul.addr %s270, 4
      %s272 = scalar_lea.vmem %s4, %s271
      %s273 = smul.u32 8, %s20
      %s274 = ssub.s32 18, %s273
      %p275 = scmp.lt.s32.totalorder %s274, 8
      %s276 = scalar_select %p275, %s274, 8
      %s277 = smul.u32 64, %s276
      %s278 = smul.u32 %s277, 3
      %p279 = scmp.lt.s32.totalorder %s19, 1
      %s280 = scalar_select %p279, %s19, 1
      %p281 = scmp.lt.s32.totalorder %s273, 17
      %s282 = scalar_select %p281, %s273, 17
      %s283 = smul.addr %s282, 3
      %s284 = smul.addr %s280, 54
      %s285 = sadd.s32 %s283, %s284
      %s286 = smul.addr %s285, 4
      %s287 = scalar_lea.vmem %s0, %s286
      %s288 = smul.u32 8, %s20
      %s289 = ssub.s32 18, %s288
      %p290 = scmp.lt.s32.totalorder %s289, 8
      %s291 = scalar_select %p290, %s289, 8
      %s292 = smul.u32 64, %s291
      %s293 = smul.u32 %s292, 3
      %s294 = sadd.s32 %s20, 1
      %s295 = smul.u32 %s294, 4
      %s296 = smul.u32 2, %s295
      %p297 = scmp.lt.s32.totalorder %s19, 1
      %s298 = scalar_select %p297, %s19, 1
      %p299 = scmp.lt.s32.totalorder %s296, 17
      %s300 = scalar_select %p299, %s296, 17
      %s301 = smul.addr %s300, 3
      %s302 = smul.addr %s298, 54
      %s303 = sadd.s32 %s301, %s302
      %s304 = smul.addr %s303, 4
      %s305 = scalar_lea.vmem %s1, %s304
      %s306 = sadd.s32 %s20, 1
      %s307 = smul.u32 %s306, 4
      %s308 = smul.u32 2, %s307
      %s309 = smul.u32 8, %s20
      %p310 = scmp.lt.s32.totalorder %s19, 1
      %s311 = scalar_select %p310, %s19, 1
      %p312 = scmp.lt.s32.totalorder %s309, 15
      %s313 = scalar_select %p312, %s309, 15
      %s314 = smul.addr %s313, 2
      %s315 = smul.addr %s311, 32
      %s316 = sadd.s32 %s314, %s315
      %s317 = smul.addr %s316, 4
      %s318 = scalar_lea.vmem %s4, %s317
      %s319 = smul.u32 8, %s20
      %s321 = scalar_lea.vmem %s287, 12
      %v322 = vld [vmem:[%s321] sm:$0xf]
      %v323 = vld [vmem:[%s321 + $0x4] sm:$0xf]
      %v324 = vld [vmem:[%s321 + $0x8] sm:$0x1]
      %v325 = vld [vmem:[%s321 + $0xc] sm:$0xf]
      %v326 = vld [vmem:[%s321 + $0x10] sm:$0xf]
      %v327 = vld [vmem:[%s321 + $0x14] sm:$0x1]
      %v328 = vld [vmem:[%s321 + $0x18] sm:$0xf]
      %v329 = vld [vmem:[%s321 + $0x1c] sm:$0xf]
      %v330 = vld [vmem:[%s321 + $0x20] sm:$0x1]
      %v331 = vld [vmem:[%s321 + $0x24] sm:$0xf]
      %v332 = vld [vmem:[%s321 + $0x28] sm:$0xf]
      %v333 = vld [vmem:[%s321 + $0x2c] sm:$0x1]
      %v334 = vld [vmem:[%s321 + $0x30] sm:$0xf]
      %v335 = vld [vmem:[%s321 + $0x34] sm:$0xf]
      %v336 = vld [vmem:[%s321 + $0x38] sm:$0x1]
      %v337 = vld [vmem:[%s321 + $0x3c] sm:$0xf]
      %v338 = vld [vmem:[%s321 + $0x40] sm:$0xf]
      %v339 = vld [vmem:[%s321 + $0x44] sm:$0x1]
      %v340 = vld [vmem:[%s321 + $0x48] sm:$0xf]
      %v341 = vld [vmem:[%s321 + $0x4c] sm:$0xf]
      %v342 = vld [vmem:[%s321 + $0x50] sm:$0x1]
      %vm343 = vsmask.f32 3328
      %vm344 = vsmask.f32 7440
      %vm345 = vmor %vm343, %vm344
      %v347 = vshrl.u32 %v322, 16
      %v349 = vrot.slane %v347, 4
      %v350 = vshll.u32 %v322, 16
      %v352 = vrot.slane %v350, 5
      %v353 = vor.u32 %v349, %v352
      %v354 = vrot.slane %v353, 4
      %v356 = vshll.u32 %v323, 16
      %v358 = vrot.slane %v356, 5
      %v359 = vsel %vm345, %v354, %v358
      %v360 = vshrl.u32 %v323, 16
      %v362 = vrot.slane %v360, 4
      %v363 = vor.u32 %v362, %v358
      %v364 = vrot.slane %v363, 4
      %v366 = vshll.u32 %v324, 16
      %v368 = vrot.slane %v366, 5
      %v369 = vsel %vm345, %v364, %v368
      %v371 = vshrl.u32 %v325, 16
      %v373 = vrot.slane %v371, 4
      %v374 = vshll.u32 %v325, 16
      %v376 = vrot.slane %v374, 5
      %v377 = vor.u32 %v373, %v376
      %v378 = vrot.slane %v377, 4
      %v380 = vshll.u32 %v326, 16
      %v382 = vrot.slane %v380, 5
      %v383 = vsel %vm345, %v378, %v382
      %v384 = vshrl.u32 %v326, 16
      %v386 = vrot.slane %v384, 4
      %v387 = vor.u32 %v386, %v382
      %v388 = vrot.slane %v387, 4
      %v390 = vshll.u32 %v327, 16
      %v392 = vrot.slane %v390, 5
      %v393 = vsel %vm345, %v388, %v392
      %v395 = vshrl.u32 %v328, 16
      %v397 = vrot.slane %v395, 4
      %v398 = vshll.u32 %v328, 16
      %v400 = vrot.slane %v398, 5
      %v401 = vor.u32 %v397, %v400
      %v402 = vrot.slane %v401, 4
      %v404 = vshll.u32 %v329, 16
      %v406 = vrot.slane %v404, 5
      %v407 = vsel %vm345, %v402, %v406
      %v408 = vshrl.u32 %v329, 16
      %v410 = vrot.slane %v408, 4
      %v411 = vor.u32 %v410, %v406
      %v412 = vrot.slane %v411, 4
      %v414 = vshll.u32 %v330, 16
      %v416 = vrot.slane %v414, 5
      %v417 = vsel %vm345, %v412, %v416
      %v419 = vshrl.u32 %v331, 16
      %v421 = vrot.slane %v419, 4
      %v422 = vshll.u32 %v331, 16
      %v424 = vrot.slane %v422, 5
      %v425 = vor.u32 %v421, %v424
      %v426 = vrot.slane %v425, 4
      %v428 = vshll.u32 %v332, 16
      %v430 = vrot.slane %v428, 5
      %v431 = vsel %vm345, %v426, %v430
      %v432 = vshrl.u32 %v332, 16
      %v434 = vrot.slane %v432, 4
      %v435 = vor.u32 %v434, %v430
      %v436 = vrot.slane %v435, 4
      %v438 = vshll.u32 %v333, 16
      %v440 = vrot.slane %v438, 5
      %v441 = vsel %vm345, %v436, %v440
      %v443 = vshrl.u32 %v334, 16
      %v445 = vrot.slane %v443, 4
      %v446 = vshll.u32 %v334, 16
      %v448 = vrot.slane %v446, 5
      %v449 = vor.u32 %v445, %v448
      %v450 = vrot.slane %v449, 4
      %v452 = vshll.u32 %v335, 16
      %v454 = vrot.slane %v452, 5
      %v455 = vsel %vm345, %v450, %v454
      %v456 = vshrl.u32 %v335, 16
      %v458 = vrot.slane %v456, 4
      %v459 = vor.u32 %v458, %v454
      %v460 = vrot.slane %v459, 4
      %v462 = vshll.u32 %v336, 16
      %v464 = vrot.slane %v462, 5
      %v465 = vsel %vm345, %v460, %v464
      %v467 = vshrl.u32 %v337, 16
      %v469 = vrot.slane %v467, 4
      %v470 = vshll.u32 %v337, 16
      %v472 = vrot.slane %v470, 5
      %v473 = vor.u32 %v469, %v472
      %v474 = vrot.slane %v473, 4
      %v476 = vshll.u32 %v338, 16
      %v478 = vrot.slane %v476, 5
      %v479 = vsel %vm345, %v474, %v478
      %v480 = vshrl.u32 %v338, 16
      %v482 = vrot.slane %v480, 4
      %v483 = vor.u32 %v482, %v478
      %v484 = vrot.slane %v483, 4
      %v486 = vshll.u32 %v339, 16
      %v488 = vrot.slane %v486, 5
      %v489 = vsel %vm345, %v484, %v488
      %v491 = vshrl.u32 %v340, 16
      %v493 = vrot.slane %v491, 4
      %v494 = vshll.u32 %v340, 16
      %v496 = vrot.slane %v494, 5
      %v497 = vor.u32 %v493, %v496
      %v498 = vrot.slane %v497, 4
      %v500 = vshll.u32 %v341, 16
      %v502 = vrot.slane %v500, 5
      %v503 = vsel %vm345, %v498, %v502
      %v504 = vshrl.u32 %v341, 16
      %v506 = vrot.slane %v504, 4
      %v507 = vor.u32 %v506, %v502
      %v508 = vrot.slane %v507, 4
      %v510 = vshll.u32 %v342, 16
      %v512 = vrot.slane %v510, 5
      %v513 = vsel %vm345, %v508, %v512
      %v528 = vunpack.c.l.bf16 %v359
      %v529 = vunpack.c.l.bf16 %v369
      %v530 = vunpack.c.l.bf16 %v383
      %v531 = vunpack.c.l.bf16 %v393
      %v532 = vunpack.c.l.bf16 %v407
      %v533 = vunpack.c.l.bf16 %v417
      %v534 = vunpack.c.l.bf16 %v431
      %v535 = vunpack.c.l.bf16 %v441
      %v536 = vunpack.c.l.bf16 %v455
      %v537 = vunpack.c.l.bf16 %v465
      %v538 = vunpack.c.l.bf16 %v479
      %v539 = vunpack.c.l.bf16 %v489
      %v540 = vunpack.c.l.bf16 %v503
      %v541 = vunpack.c.l.bf16 %v513
      %v542 = vld [vmem:[%s305] sm:$0xf]
      %v543 = vld [vmem:[%s305 + $0x4] sm:$0xf]
      %v544 = vld [vmem:[%s305 + $0x8] sm:$0x1]
      %v545 = vunpack.c.l.bf16 %v542
      %v546 = vunpack.c.l.bf16 %v543
      %v547 = vunpack.c.l.bf16 %v544
      %v548 = vld [vmem:[%s3] sm:$0x1]
      %v550 = vlaneseq
      %v551 = vshrl.u32 %v550, 7
      %v552 = vsub.s32 0, %v551
      %v553 = vrot.slane %v548, %v552
      %v555 = vadd.f32 %v553, %v528
      %v556 = vadd.f32 %v553, %v529
      %v557 = vadd.f32 %v553, %v530
      %v558 = vadd.f32 %v553, %v531
      %v559 = vadd.f32 %v553, %v532
      %v560 = vadd.f32 %v553, %v533
      %v561 = vadd.f32 %v553, %v534
      %v562 = vadd.f32 %v553, %v535
      %v563 = vadd.f32 %v553, %v536
      %v564 = vadd.f32 %v553, %v537
      %v565 = vadd.f32 %v553, %v538
      %v566 = vadd.f32 %v553, %v539
      %v567 = vadd.f32 %v553, %v540
      %v568 = vadd.f32 %v553, %v541
      %vm569 = vcmask 64512
      %570 = vst.msk [vmem:[#allocation2] sm:$0xff] %vm569, %v555
      %571 = vst.msk [vmem:[#allocation2 + $0x8] sm:$0xff] %vm569, %v556
      %572 = vst.msk [vmem:[#allocation2 + $0x10] sm:$0xff] %vm569, %v557
      %573 = vst.msk [vmem:[#allocation2 + $0x18] sm:$0xff] %vm569, %v558
      %574 = vst.msk [vmem:[#allocation2 + $0x20] sm:$0xff] %vm569, %v559
      %575 = vst.msk [vmem:[#allocation2 + $0x28] sm:$0xff] %vm569, %v560
      %576 = vst.msk [vmem:[#allocation2 + $0x30] sm:$0xff] %vm569, %v561
      %577 = vst.msk [vmem:[#allocation2 + $0x38] sm:$0xff] %vm569, %v562
      %578 = vst.msk [vmem:[#allocation2 + $0x40] sm:$0xff] %vm569, %v563
      %579 = vst.msk [vmem:[#allocation2 + $0x48] sm:$0xff] %vm569, %v564
      %580 = vst.msk [vmem:[#allocation2 + $0x50] sm:$0xff] %vm569, %v565
      %581 = vst.msk [vmem:[#allocation2 + $0x58] sm:$0xff] %vm569, %v566
      %582 = vst.msk [vmem:[#allocation2 + $0x60] sm:$0xff] %vm569, %v567
      %583 = vst.msk [vmem:[#allocation2 + $0x68] sm:$0xff] %vm569, %v568
      %v584 = vld [vmem:[%s3] sm:$0x1]
      %v586 = vlaneseq
      %v587 = vshrl.u32 %v586, 7
      %v588 = vsub.s32 0, %v587
      %v589 = vrot.slane %v584, %v588
      %v591 = vadd.f32 %v589, %v545
      %v592 = vadd.f32 %v589, %v546
      %v593 = vadd.f32 %v589, %v547
      %vm594 = vcmask 64513
      %595 = vst.msk [vmem:[#allocation2 + $0x6f] sm:$0xfe] %vm594, %v591
      %596 = vst.msk [vmem:[#allocation2 + $0x77] sm:$0xff] %vm569, %v592
      %vm597 = vcmask 57344
      %598 = vst.msk [vmem:[#allocation2 + $0x7f] sm:$0x1] %vm597, %v593
      %v599 = vld [vmem:[%s2] sm:$0xf]
      %v600 = vld [vmem:[%s287] sm:$0xf]
      %v601 = vld [vmem:[%s287 + $0x4] sm:$0xf]
      %v602 = vld [vmem:[%s287 + $0xc] sm:$0xf]
      %v603 = vld [vmem:[%s287 + $0x10] sm:$0xf]
      %v604 = vld [vmem:[%s287 + $0x18] sm:$0xf]
      %v605 = vld [vmem:[%s287 + $0x1c] sm:$0xf]
      %v606 = vld [vmem:[%s287 + $0x24] sm:$0xf]
      %v607 = vld [vmem:[%s287 + $0x28] sm:$0xf]
      %v608 = vld [vmem:[%s287 + $0x30] sm:$0xf]
      %v609 = vld [vmem:[%s287 + $0x34] sm:$0xf]
      %v610 = vld [vmem:[%s287 + $0x3c] sm:$0xf]
      %v611 = vld [vmem:[%s287 + $0x40] sm:$0xf]
      %v612 = vld [vmem:[%s287 + $0x48] sm:$0xf]
      %v613 = vld [vmem:[%s287 + $0x4c] sm:$0xf]
      %v614 = vld [vmem:[%s287 + $0x54] sm:$0xf]
      %v615 = vld [vmem:[%s287 + $0x58] sm:$0xf]
      %v616 = vld [vmem:[#allocation2] sm:$0xff]
      %v617 = vld [vmem:[#allocation2 + $0x8] sm:$0xff]
      %v618 = vld [vmem:[#allocation2 + $0x10] sm:$0xff]
      %v619 = vld [vmem:[#allocation2 + $0x18] sm:$0xff]
      %v620 = vld [vmem:[#allocation2 + $0x20] sm:$0xff]
      %v621 = vld [vmem:[#allocation2 + $0x28] sm:$0xff]
      %v622 = vld [vmem:[#allocation2 + $0x30] sm:$0xff]
      %v623 = vld [vmem:[#allocation2 + $0x38] sm:$0xff]
      %v624 = vld [vmem:[#allocation2 + $0x40] sm:$0xff]
      %v625 = vld [vmem:[#allocation2 + $0x48] sm:$0xff]
      %v626 = vld [vmem:[#allocation2 + $0x50] sm:$0xff]
      %v627 = vld [vmem:[#allocation2 + $0x58] sm:$0xff]
      %v628 = vld [vmem:[#allocation2 + $0x60] sm:$0xff]
      %v629 = vld [vmem:[#allocation2 + $0x68] sm:$0xff]
      %v630 = vld [vmem:[#allocation2 + $0x70] sm:$0xff]
      %v631 = vld [vmem:[#allocation2 + $0x78] sm:$0xff]
      %v648 = vunpack.c.l.b16 %v600
      %v649 = vunpack.c.l.b16 %v601
      %v650 = vunpack.c.l.b16 %v602
      %v651 = vunpack.c.l.b16 %v603
      %v652 = vunpack.c.l.b16 %v604
      %v653 = vunpack.c.l.b16 %v605
      %v654 = vunpack.c.l.b16 %v606
      %v655 = vunpack.c.l.b16 %v607
      %v656 = vunpack.c.l.b16 %v608
      %v657 = vunpack.c.l.b16 %v609
      %v658 = vunpack.c.l.b16 %v610
      %v659 = vunpack.c.l.b16 %v611
      %v660 = vunpack.c.l.b16 %v612
      %v661 = vunpack.c.l.b16 %v613
      %v662 = vunpack.c.l.b16 %v614
      %v663 = vunpack.c.l.b16 %v615
      %v664 = vpack.c.b16 %v649, %v648
      %v665 = vpack.c.b16 %v651, %v650
      %v666 = vpack.c.b16 %v653, %v652
      %v667 = vpack.c.b16 %v655, %v654
      %v668 = vpack.c.b16 %v657, %v656
      %v669 = vpack.c.b16 %v659, %v658
      %v670 = vpack.c.b16 %v661, %v660
      %v671 = vpack.c.b16 %v663, %v662
      %v673 = vsel %vm569, %v664, 0
      %v676 = vsel %vm569, %v665, 0
      %v679 = vsel %vm569, %v666, 0
      %v682 = vsel %vm569, %v667, 0
      %v685 = vsel %vm569, %v668, 0
      %v688 = vsel %vm569, %v669, 0
      %v691 = vsel %vm569, %v670, 0
      %v694 = vsel %vm569, %v671, 0
      %vm696 = vcmask 1043456
      %v698 = vsel %vm696, %v599, 0
      %700 = vmatprep.subr.bf16.mxu0 0
      %701 = vmatpush1.bf16.msra.mxu0 0
      %702 = vmatprep.subr.bf16.mxu0 0
      %703 = vmatpush1.bf16.msra.mxu0 0
      %704 = vmatprep.subr.bf16.mxu0 0
      %705 = vmatpush1.bf16.msra.mxu0 0
      %706 = vmatprep.subr.bf16.mxu0 0
      %707 = vmatpush1.bf16.msra.mxu0 0
      %708 = vmatprep.subr.bf16.mxu0 0
      %709 = vmatpush1.bf16.msra.mxu0 0
      %710 = vmatprep.subr.bf16.mxu0 0
      %711 = vmatpush1.bf16.msra.mxu0 0
      %712 = vmatprep.subr.bf16.mxu0 0
      %713 = vmatpush1.bf16.msra.mxu0 0
      %714 = vmatprep.subr.bf16.mxu0 0
      %715 = vmatpush1.bf16.msra.mxu0 %v698
      %716 = vmatprep.subr.bf16.mxu0 0
      %717 = vmatpush2.bf16.msra.mxu0 0
      %718 = vmatprep.subr.bf16.mxu0 0
      %719 = vmatpush2.bf16.msra.mxu0 0
      %720 = vmatprep.subr.bf16.mxu0 0
      %721 = vmatpush2.bf16.msra.mxu0 0
      %722 = vmatprep.subr.bf16.mxu0 0
      %723 = vmatpush2.bf16.msra.mxu0 0
      %724 = vmatprep.subr.bf16.mxu0 0
      %725 = vmatpush2.bf16.msra.mxu0 0
      %726 = vmatprep.subr.bf16.mxu0 0
      %727 = vmatpush2.bf16.msra.mxu0 0
      %728 = vmatprep.subr.bf16.mxu0 0
      %729 = vmatpush2.bf16.msra.mxu0 0
      %730 = vmatprep.subr.bf16.mxu0 0
      %731 = vmatpush2.bf16.msra.mxu0 0
      %732 = vmatprep.mubr.bf16.mxu0 0
      %733 = vmatmul.mubr.bf16.gmra.mxu0 %v673
      %v734 = vpop.f32.mrf.mxu0
      %v735 = vadd.f32 0.0, %v734
      %v736 = vpop.f32.mrf.mxu0
      %v737 = vpop.f32.mrf.mxu0
      %v738 = vadd.f32 0.0, %v737
      %v739 = vpop.f32.mrf.mxu0
      %740 = vmatprep.mubr.bf16.mxu0 0
      %741 = vmatmul.mubr.bf16.gmra.mxu0 %v676
      %v742 = vpop.f32.mrf.mxu0
      %v743 = vadd.f32 0.0, %v742
      %v744 = vpop.f32.mrf.mxu0
      %v745 = vpop.f32.mrf.mxu0
      %v746 = vadd.f32 0.0, %v745
      %v747 = vpop.f32.mrf.mxu0
      %748 = vmatprep.mubr.bf16.mxu0 0
      %749 = vmatmul.mubr.bf16.gmra.mxu0 %v679
      %v750 = vpop.f32.mrf.mxu0
      %v751 = vadd.f32 0.0, %v750
      %v752 = vpop.f32.mrf.mxu0
      %v753 = vpop.f32.mrf.mxu0
      %v754 = vadd.f32 0.0, %v753
      %v755 = vpop.f32.mrf.mxu0
      %756 = vmatprep.mubr.bf16.mxu0 0
      %757 = vmatmul.mubr.bf16.gmra.mxu0 %v682
      %v758 = vpop.f32.mrf.mxu0
      %v759 = vadd.f32 0.0, %v758
      %v760 = vpop.f32.mrf.mxu0
      %v761 = vpop.f32.mrf.mxu0
      %v762 = vadd.f32 0.0, %v761
      %v763 = vpop.f32.mrf.mxu0
      %764 = vmatprep.mubr.bf16.mxu0 0
      %765 = vmatmul.mubr.bf16.gmra.mxu0 %v685
      %v766 = vpop.f32.mrf.mxu0
      %v767 = vadd.f32 0.0, %v766
      %v768 = vpop.f32.mrf.mxu0
      %v769 = vpop.f32.mrf.mxu0
      %v770 = vadd.f32 0.0, %v769
      %v771 = vpop.f32.mrf.mxu0
      %772 = vmatprep.mubr.bf16.mxu0 0
      %773 = vmatmul.mubr.bf16.gmra.mxu0 %v688
      %v774 = vpop.f32.mrf.mxu0
      %v775 = vadd.f32 0.0, %v774
      %v776 = vpop.f32.mrf.mxu0
      %v777 = vpop.f32.mrf.mxu0
      %v778 = vadd.f32 0.0, %v777
      %v779 = vpop.f32.mrf.mxu0
      %780 = vmatprep.mubr.bf16.mxu0 0
      %781 = vmatmul.mubr.bf16.gmra.mxu0 %v691
      %v782 = vpop.f32.mrf.mxu0
      %v783 = vadd.f32 0.0, %v782
      %v784 = vpop.f32.mrf.mxu0
      %v785 = vpop.f32.mrf.mxu0
      %v786 = vadd.f32 0.0, %v785
      %v787 = vpop.f32.mrf.mxu0
      %788 = vmatprep.mubr.bf16.mxu0 0
      %789 = vmatmul.mubr.bf16.gmra.mxu0 %v694
      %v790 = vpop.f32.mrf.mxu0
      %v791 = vadd.f32 0.0, %v790
      %v792 = vpop.f32.mrf.mxu0
      %v793 = vpop.f32.mrf.mxu0
      %v794 = vadd.f32 0.0, %v793
      %v795 = vpop.f32.mrf.mxu0
      %796 = vdwg.mxu0
      %v797 = vadd.f32 %v616, %v735
      %v798 = vadd.f32 %v617, %v738
      %v799 = vadd.f32 %v618, %v743
      %v800 = vadd.f32 %v619, %v746
      %v801 = vadd.f32 %v620, %v751
      %v802 = vadd.f32 %v621, %v754
      %v803 = vadd.f32 %v622, %v759
      %v804 = vadd.f32 %v623, %v762
      %v805 = vadd.f32 %v624, %v767
      %v806 = vadd.f32 %v625, %v770
      %v807 = vadd.f32 %v626, %v775
      %v808 = vadd.f32 %v627, %v778
      %v809 = vadd.f32 %v628, %v783
      %v810 = vadd.f32 %v629, %v786
      %v811 = vadd.f32 %v630, %v791
      %v812 = vadd.f32 %v631, %v794
      %813 = vst.msk [vmem:[#allocation2] sm:$0xff] %vm569, %v797
      %814 = vst.msk [vmem:[#allocation2 + $0x8] sm:$0xff] %vm569, %v798
      %815 = vst.msk [vmem:[#allocation2 + $0x10] sm:$0xff] %vm569, %v799
      %816 = vst.msk [vmem:[#allocation2 + $0x18] sm:$0xff] %vm569, %v800
      %817 = vst.msk [vmem:[#allocation2 + $0x20] sm:$0xff] %vm569, %v801
      %818 = vst.msk [vmem:[#allocation2 + $0x28] sm:$0xff] %vm569, %v802
      %819 = vst.msk [vmem:[#allocation2 + $0x30] sm:$0xff] %vm569, %v803
      %820 = vst.msk [vmem:[#allocation2 + $0x38] sm:$0xff] %vm569, %v804
      %821 = vst.msk [vmem:[#allocation2 + $0x40] sm:$0xff] %vm569, %v805
      %822 = vst.msk [vmem:[#allocation2 + $0x48] sm:$0xff] %vm569, %v806
      %823 = vst.msk [vmem:[#allocation2 + $0x50] sm:$0xff] %vm569, %v807
      %824 = vst.msk [vmem:[#allocation2 + $0x58] sm:$0xff] %vm569, %v808
      %825 = vst.msk [vmem:[#allocation2 + $0x60] sm:$0xff] %vm569, %v809
      %826 = vst.msk [vmem:[#allocation2 + $0x68] sm:$0xff] %vm569, %v810
      %827 = vst.msk [vmem:[#allocation2 + $0x70] sm:$0xff] %vm569, %v811
      %828 = vst.msk [vmem:[#allocation2 + $0x78] sm:$0xff] %vm569, %v812
      %s829 = scalar_lea.vmem %s2, 4
      %v830 = vld [vmem:[%s829] sm:$0xf]
      %v831 = vld [vmem:[%s287] sm:$0xf]
      %v832 = vld [vmem:[%s287 + $0x4] sm:$0xf]
      %v833 = vld [vmem:[%s287 + $0x8] sm:$0x1]
      %v834 = vld [vmem:[%s287 + $0xc] sm:$0xf]
      %v835 = vld [vmem:[%s287 + $0x10] sm:$0xf]
      %v836 = vld [vmem:[%s287 + $0x14] sm:$0x1]
      %v837 = vld [vmem:[%s287 + $0x18] sm:$0xf]
      %v838 = vld [vmem:[%s287 + $0x1c] sm:$0xf]
      %v839 = vld [vmem:[%s287 + $0x20] sm:$0x1]
      %v840 = vld [vmem:[%s287 + $0x24] sm:$0xf]
      %v841 = vld [vmem:[%s287 + $0x28] sm:$0xf]
      %v842 = vld [vmem:[%s287 + $0x2c] sm:$0x1]
      %v843 = vld [vmem:[%s287 + $0x30] sm:$0xf]
      %v844 = vld [vmem:[%s287 + $0x34] sm:$0xf]
      %v845 = vld [vmem:[%s287 + $0x38] sm:$0x1]
      %v846 = vld [vmem:[%s287 + $0x3c] sm:$0xf]
      %v847 = vld [vmem:[%s287 + $0x40] sm:$0xf]
      %v848 = vld [vmem:[%s287 + $0x44] sm:$0x1]
      %v849 = vld [vmem:[%s287 + $0x48] sm:$0xf]
      %v850 = vld [vmem:[%s287 + $0x4c] sm:$0xf]
      %v851 = vld [vmem:[%s287 + $0x50] sm:$0x1]
      %v852 = vld [vmem:[%s287 + $0x54] sm:$0xf]
      %v853 = vld [vmem:[%s287 + $0x58] sm:$0xf]
      %v854 = vld [vmem:[%s287 + $0x5c] sm:$0x1]
      %v856 = vshrl.u32 %v831, 16
      %v858 = vrot.slane %v856, 4
      %v859 = vshll.u32 %v831, 16
      %v861 = vrot.slane %v859, 5
      %v862 = vor.u32 %v858, %v861
      %v863 = vrot.slane %v862, 4
      %v865 = vshll.u32 %v832, 16
      %v867 = vrot.slane %v865, 5
      %v868 = vsel %vm345, %v863, %v867
      %v869 = vshrl.u32 %v832, 16
      %v871 = vrot.slane %v869, 4
      %v872 = vor.u32 %v871, %v867
      %v873 = vrot.slane %v872, 4
      %v875 = vshll.u32 %v833, 16
      %v877 = vrot.slane %v875, 5
      %v878 = vsel %vm345, %v873, %v877
      %v880 = vshrl.u32 %v834, 16
      %v882 = vrot.slane %v880, 4
      %v883 = vshll.u32 %v834, 16
      %v885 = vrot.slane %v883, 5
      %v886 = vor.u32 %v882, %v885
      %v887 = vrot.slane %v886, 4
      %v889 = vshll.u32 %v835, 16
      %v891 = vrot.slane %v889, 5
      %v892 = vsel %vm345, %v887, %v891
      %v893 = vshrl.u32 %v835, 16
      %v895 = vrot.slane %v893, 4
      %v896 = vor.u32 %v895, %v891
      %v897 = vrot.slane %v896, 4
      %v899 = vshll.u32 %v836, 16
      %v901 = vrot.slane %v899, 5
      %v902 = vsel %vm345, %v897, %v901
      %v904 = vshrl.u32 %v837, 16
      %v906 = vrot.slane %v904, 4
      %v907 = vshll.u32 %v837, 16
      %v909 = vrot.slane %v907, 5
      %v910 = vor.u32 %v906, %v909
      %v911 = vrot.slane %v910, 4
      %v913 = vshll.u32 %v838, 16
      %v915 = vrot.slane %v913, 5
      %v916 = vsel %vm345, %v911, %v915
      %v917 = vshrl.u32 %v838, 16
      %v919 = vrot.slane %v917, 4
      %v920 = vor.u32 %v919, %v915
      %v921 = vrot.slane %v920, 4
      %v923 = vshll.u32 %v839, 16
      %v925 = vrot.slane %v923, 5
      %v926 = vsel %vm345, %v921, %v925
      %v928 = vshrl.u32 %v840, 16
      %v930 = vrot.slane %v928, 4
      %v931 = vshll.u32 %v840, 16
      %v933 = vrot.slane %v931, 5
      %v934 = vor.u32 %v930, %v933
      %v935 = vrot.slane %v934, 4
      %v937 = vshll.u32 %v841, 16
      %v939 = vrot.slane %v937, 5
      %v940 = vsel %vm345, %v935, %v939
      %v941 = vshrl.u32 %v841, 16
      %v943 = vrot.slane %v941, 4
      %v944 = vor.u32 %v943, %v939
      %v945 = vrot.slane %v944, 4
      %v947 = vshll.u32 %v842, 16
      %v949 = vrot.slane %v947, 5
      %v950 = vsel %vm345, %v945, %v949
      %v952 = vshrl.u32 %v843, 16
      %v954 = vrot.slane %v952, 4
      %v955 = vshll.u32 %v843, 16
      %v957 = vrot.slane %v955, 5
      %v958 = vor.u32 %v954, %v957
      %v959 = vrot.slane %v958, 4
      %v961 = vshll.u32 %v844, 16
      %v963 = vrot.slane %v961, 5
      %v964 = vsel %vm345, %v959, %v963
      %v965 = vshrl.u32 %v844, 16
      %v967 = vrot.slane %v965, 4
      %v968 = vor.u32 %v967, %v963
      %v969 = vrot.slane %v968, 4
      %v971 = vshll.u32 %v845, 16
      %v973 = vrot.slane %v971, 5
      %v974 = vsel %vm345, %v969, %v973
      %v976 = vshrl.u32 %v846, 16
      %v978 = vrot.slane %v976, 4
      %v979 = vshll.u32 %v846, 16
      %v981 = vrot.slane %v979, 5
      %v982 = vor.u32 %v978, %v981
      %v983 = vrot.slane %v982, 4
      %v985 = vshll.u32 %v847, 16
      %v987 = vrot.slane %v985, 5
      %v988 = vsel %vm345, %v983, %v987
      %v989 = vshrl.u32 %v847, 16
      %v991 = vrot.slane %v989, 4
      %v992 = vor.u32 %v991, %v987
      %v993 = vrot.slane %v992, 4
      %v995 = vshll.u32 %v848, 16
      %v997 = vrot.slane %v995, 5
      %v998 = vsel %vm345, %v993, %v997
      %v1000 = vshrl.u32 %v849, 16
      %v1002 = vrot.slane %v1000, 4
      %v1003 = vshll.u32 %v849, 16
      %v1005 = vrot.slane %v1003, 5
      %v1006 = vor.u32 %v1002, %v1005
      %v1007 = vrot.slane %v1006, 4
      %v1009 = vshll.u32 %v850, 16
      %v1011 = vrot.slane %v1009, 5
      %v1012 = vsel %vm345, %v1007, %v1011
      %v1013 = vshrl.u32 %v850, 16
      %v1015 = vrot.slane %v1013, 4
      %v1016 = vor.u32 %v1015, %v1011
      %v1017 = vrot.slane %v1016, 4
      %v1019 = vshll.u32 %v851, 16
      %v1021 = vrot.slane %v1019, 5
      %v1022 = vsel %vm345, %v1017, %v1021
      %v1024 = vshrl.u32 %v852, 16
      %v1026 = vrot.slane %v1024, 4
      %v1027 = vshll.u32 %v852, 16
      %v1029 = vrot.slane %v1027, 5
      %v1030 = vor.u32 %v1026, %v1029
      %v1031 = vrot.slane %v1030, 4
      %v1033 = vshll.u32 %v853, 16
      %v1035 = vrot.slane %v1033, 5
      %v1036 = vsel %vm345, %v1031, %v1035
      %v1037 = vshrl.u32 %v853, 16
      %v1039 = vrot.slane %v1037, 4
      %v1040 = vor.u32 %v1039, %v1035
      %v1041 = vrot.slane %v1040, 4
      %v1043 = vshll.u32 %v854, 16
      %v1045 = vrot.slane %v1043, 5
      %v1046 = vsel %vm345, %v1041, %v1045
      %v1047 = vld [vmem:[#allocation2] sm:$0xff]
      %v1048 = vld [vmem:[#allocation2 + $0x8] sm:$0xff]
      %v1049 = vld [vmem:[#allocation2 + $0x10] sm:$0xff]
      %v1050 = vld [vmem:[#allocation2 + $0x18] sm:$0xff]
      %v1051 = vld [vmem:[#allocation2 + $0x20] sm:$0xff]
      %v1052 = vld [vmem:[#allocation2 + $0x28] sm:$0xff]
      %v1053 = vld [vmem:[#allocation2 + $0x30] sm:$0xff]
      %v1054 = vld [vmem:[#allocation2 + $0x38] sm:$0xff]
      %v1055 = vld [vmem:[#allocation2 + $0x40] sm:$0xff]
      %v1056 = vld [vmem:[#allocation2 + $0x48] sm:$0xff]
      %v1057 = vld [vmem:[#allocation2 + $0x50] sm:$0xff]
      %v1058 = vld [vmem:[#allocation2 + $0x58] sm:$0xff]
      %v1059 = vld [vmem:[#allocation2 + $0x60] sm:$0xff]
      %v1060 = vld [vmem:[#allocation2 + $0x68] sm:$0xff]
      %v1061 = vld [vmem:[#allocation2 + $0x70] sm:$0xff]
      %v1062 = vld [vmem:[#allocation2 + $0x78] sm:$0xff]
      %v1063 = vunpack.c.l.b16 %v868
      %v1064 = vunpack.c.l.b16 %v878
      %v1065 = vunpack.c.l.b16 %v892
      %v1066 = vunpack.c.l.b16 %v902
      %v1067 = vunpack.c.l.b16 %v916
      %v1068 = vunpack.c.l.b16 %v926
      %v1069 = vunpack.c.l.b16 %v940
      %v1070 = vunpack.c.l.b16 %v950
      %v1071 = vunpack.c.l.b16 %v964
      %v1072 = vunpack.c.l.b16 %v974
      %v1073 = vunpack.c.l.b16 %v988
      %v1074 = vunpack.c.l.b16 %v998
      %v1075 = vunpack.c.l.b16 %v1012
      %v1076 = vunpack.c.l.b16 %v1022
      %v1077 = vunpack.c.l.b16 %v1036
      %v1078 = vunpack.c.l.b16 %v1046
      %v1079 = vpack.c.b16 %v1064, %v1063
      %v1080 = vpack.c.b16 %v1066, %v1065
      %v1081 = vpack.c.b16 %v1068, %v1067
      %v1082 = vpack.c.b16 %v1070, %v1069
      %v1083 = vpack.c.b16 %v1072, %v1071
      %v1084 = vpack.c.b16 %v1074, %v1073
      %v1085 = vpack.c.b16 %v1076, %v1075
      %v1086 = vpack.c.b16 %v1078, %v1077
      %v1088 = vsel %vm569, %v1079, 0
      %v1091 = vsel %vm569, %v1080, 0
      %v1094 = vsel %vm569, %v1081, 0
      %v1097 = vsel %vm569, %v1082, 0
      %v1100 = vsel %vm569, %v1083, 0
      %v1103 = vsel %vm569, %v1084, 0
      %v1106 = vsel %vm569, %v1085, 0
      %v1109 = vsel %vm569, %v1086, 0
      %v1112 = vsel %vm696, %v830, 0
      %1114 = vmatprep.subr.bf16.mxu0 0
      %1115 = vmatpush1.bf16.msra.mxu0 0
      %1116 = vmatprep.subr.bf16.mxu0 0
      %1117 = vmatpush1.bf16.msra.mxu0 0
      %1118 = vmatprep.subr.bf16.mxu0 0
      %1119 = vmatpush1.bf16.msra.mxu0 0
      %1120 = vmatprep.subr.bf16.mxu0 0
      %1121 = vmatpush1.bf16.msra.mxu0 0
      %1122 = vmatprep.subr.bf16.mxu0 0
      %1123 = vmatpush1.bf16.msra.mxu0 0
      %1124 = vmatprep.subr.bf16.mxu0 0
      %1125 = vmatpush1.bf16.msra.mxu0 0
      %1126 = vmatprep.subr.bf16.mxu0 0
      %1127 = vmatpush1.bf16.msra.mxu0 0
      %1128 = vmatprep.subr.bf16.mxu0 0
      %1129 = vmatpush1.bf16.msra.mxu0 %v1112
      %1130 = vmatprep.subr.bf16.mxu0 0
      %1131 = vmatpush2.bf16.msra.mxu0 0
      %1132 = vmatprep.subr.bf16.mxu0 0
      %1133 = vmatpush2.bf16.msra.mxu0 0
      %1134 = vmatprep.subr.bf16.mxu0 0
      %1135 = vmatpush2.bf16.msra.mxu0 0
      %1136 = vmatprep.subr.bf16.mxu0 0
      %1137 = vmatpush2.bf16.msra.mxu0 0
      %1138 = vmatprep.subr.bf16.mxu0 0
      %1139 = vmatpush2.bf16.msra.mxu0 0
      %1140 = vmatprep.subr.bf16.mxu0 0
      %1141 = vmatpush2.bf16.msra.mxu0 0
      %1142 = vmatprep.subr.bf16.mxu0 0
      %1143 = vmatpush2.bf16.msra.mxu0 0
      %1144 = vmatprep.subr.bf16.mxu0 0
      %1145 = vmatpush2.bf16.msra.mxu0 0
      %1146 = vmatprep.mubr.bf16.mxu0 0
      %1147 = vmatmul.mubr.bf16.gmra.mxu0 %v1088
      %v1148 = vpop.f32.mrf.mxu0
      %v1149 = vadd.f32 0.0, %v1148
      %v1150 = vpop.f32.mrf.mxu0
      %v1151 = vpop.f32.mrf.mxu0
      %v1152 = vadd.f32 0.0, %v1151
      %v1153 = vpop.f32.mrf.mxu0
      %1154 = vmatprep.mubr.bf16.mxu0 0
      %1155 = vmatmul.mubr.bf16.gmra.mxu0 %v1091
      %v1156 = vpop.f32.mrf.mxu0
      %v1157 = vadd.f32 0.0, %v1156
      %v1158 = vpop.f32.mrf.mxu0
      %v1159 = vpop.f32.mrf.mxu0
      %v1160 = vadd.f32 0.0, %v1159
      %v1161 = vpop.f32.mrf.mxu0
      %1162 = vmatprep.mubr.bf16.mxu0 0
      %1163 = vmatmul.mubr.bf16.gmra.mxu0 %v1094
      %v1164 = vpop.f32.mrf.mxu0
      %v1165 = vadd.f32 0.0, %v1164
      %v1166 = vpop.f32.mrf.mxu0
      %v1167 = vpop.f32.mrf.mxu0
      %v1168 = vadd.f32 0.0, %v1167
      %v1169 = vpop.f32.mrf.mxu0
      %1170 = vmatprep.mubr.bf16.mxu0 0
      %1171 = vmatmul.mubr.bf16.gmra.mxu0 %v1097
      %v1172 = vpop.f32.mrf.mxu0
      %v1173 = vadd.f32 0.0, %v1172
      %v1174 = vpop.f32.mrf.mxu0
      %v1175 = vpop.f32.mrf.mxu0
      %v1176 = vadd.f32 0.0, %v1175
      %v1177 = vpop.f32.mrf.mxu0
      %1178 = vmatprep.mubr.bf16.mxu0 0
      %1179 = vmatmul.mubr.bf16.gmra.mxu0 %v1100
      %v1180 = vpop.f32.mrf.mxu0
      %v1181 = vadd.f32 0.0, %v1180
      %v1182 = vpop.f32.mrf.mxu0
      %v1183 = vpop.f32.mrf.mxu0
      %v1184 = vadd.f32 0.0, %v1183
      %v1185 = vpop.f32.mrf.mxu0
      %1186 = vmatprep.mubr.bf16.mxu0 0
      %1187 = vmatmul.mubr.bf16.gmra.mxu0 %v1103
      %v1188 = vpop.f32.mrf.mxu0
      %v1189 = vadd.f32 0.0, %v1188
      %v1190 = vpop.f32.mrf.mxu0
      %v1191 = vpop.f32.mrf.mxu0
      %v1192 = vadd.f32 0.0, %v1191
      %v1193 = vpop.f32.mrf.mxu0
      %1194 = vmatprep.mubr.bf16.mxu0 0
      %1195 = vmatmul.mubr.bf16.gmra.mxu0 %v1106
      %v1196 = vpop.f32.mrf.mxu0
      %v1197 = vadd.f32 0.0, %v1196
      %v1198 = vpop.f32.mrf.mxu0
      %v1199 = vpop.f32.mrf.mxu0
      %v1200 = vadd.f32 0.0, %v1199
      %v1201 = vpop.f32.mrf.mxu0
      %1202 = vmatprep.mubr.bf16.mxu0 0
      %1203 = vmatmul.mubr.bf16.gmra.mxu0 %v1109
      %v1204 = vpop.f32.mrf.mxu0
      %v1205 = vadd.f32 0.0, %v1204
      %v1206 = vpop.f32.mrf.mxu0
      %v1207 = vpop.f32.mrf.mxu0
      %v1208 = vadd.f32 0.0, %v1207
      %v1209 = vpop.f32.mrf.mxu0
      %1210 = vdwg.mxu0
      %v1211 = vadd.f32 %v1047, %v1149
      %v1212 = vadd.f32 %v1048, %v1152
      %v1213 = vadd.f32 %v1049, %v1157
      %v1214 = vadd.f32 %v1050, %v1160
      %v1215 = vadd.f32 %v1051, %v1165
      %v1216 = vadd.f32 %v1052, %v1168
      %v1217 = vadd.f32 %v1053, %v1173
      %v1218 = vadd.f32 %v1054, %v1176
      %v1219 = vadd.f32 %v1055, %v1181
      %v1220 = vadd.f32 %v1056, %v1184
      %v1221 = vadd.f32 %v1057, %v1189
      %v1222 = vadd.f32 %v1058, %v1192
      %v1223 = vadd.f32 %v1059, %v1197
      %v1224 = vadd.f32 %v1060, %v1200
      %v1225 = vadd.f32 %v1061, %v1205
      %v1226 = vadd.f32 %v1062, %v1208
      %1227 = vst.msk [vmem:[#allocation2] sm:$0xff] %vm569, %v1211
      %1228 = vst.msk [vmem:[#allocation2 + $0x8] sm:$0xff] %vm569, %v1212
      %1229 = vst.msk [vmem:[#allocation2 + $0x10] sm:$0xff] %vm569, %v1213
      %1230 = vst.msk [vmem:[#allocation2 + $0x18] sm:$0xff] %vm569, %v1214
      %1231 = vst.msk [vmem:[#allocation2 + $0x20] sm:$0xff] %vm569, %v1215
      %1232 = vst.msk [vmem:[#allocation2 + $0x28] sm:$0xff] %vm569, %v1216
      %1233 = vst.msk [vmem:[#allocation2 + $0x30] sm:$0xff] %vm569, %v1217
      %1234 = vst.msk [vmem:[#allocation2 + $0x38] sm:$0xff] %vm569, %v1218
      %1235 = vst.msk [vmem:[#allocation2 + $0x40] sm:$0xff] %vm569, %v1219
      %1236 = vst.msk [vmem:[#allocation2 + $0x48] sm:$0xff] %vm569, %v1220
      %1237 = vst.msk [vmem:[#allocation2 + $0x50] sm:$0xff] %vm569, %v1221
      %1238 = vst.msk [vmem:[#allocation2 + $0x58] sm:$0xff] %vm569, %v1222
      %1239 = vst.msk [vmem:[#allocation2 + $0x60] sm:$0xff] %vm569, %v1223
      %1240 = vst.msk [vmem:[#allocation2 + $0x68] sm:$0xff] %vm569, %v1224
      %1241 = vst.msk [vmem:[#allocation2 + $0x70] sm:$0xff] %vm569, %v1225
      %1242 = vst.msk [vmem:[#allocation2 + $0x78] sm:$0xff] %vm569, %v1226
      %s1243 = scalar_lea.vmem %s2, 8
      %v1244 = vld [vmem:[%s1243] sm:$0xf]
      %v1245 = vld [vmem:[%s287] sm:$0xe]
      %v1246 = vld [vmem:[%s287 + $0x4] sm:$0xf]
      %v1247 = vld [vmem:[%s287 + $0x8] sm:$0x1]
      %v1248 = vld [vmem:[%s287 + $0xc] sm:$0xe]
      %v1249 = vld [vmem:[%s287 + $0x10] sm:$0xf]
      %v1250 = vld [vmem:[%s287 + $0x14] sm:$0x1]
      %v1251 = vld [vmem:[%s287 + $0x18] sm:$0xe]
      %v1252 = vld [vmem:[%s287 + $0x1c] sm:$0xf]
      %v1253 = vld [vmem:[%s287 + $0x20] sm:$0x1]
      %v1254 = vld [vmem:[%s287 + $0x24] sm:$0xe]
      %v1255 = vld [vmem:[%s287 + $0x28] sm:$0xf]
      %v1256 = vld [vmem:[%s287 + $0x2c] sm:$0x1]
      %v1257 = vld [vmem:[%s287 + $0x30] sm:$0xe]
      %v1258 = vld [vmem:[%s287 + $0x34] sm:$0xf]
      %v1259 = vld [vmem:[%s287 + $0x38] sm:$0x1]
      %v1260 = vld [vmem:[%s287 + $0x3c] sm:$0xe]
      %v1261 = vld [vmem:[%s287 + $0x40] sm:$0xf]
      %v1262 = vld [vmem:[%s287 + $0x44] sm:$0x1]
      %v1263 = vld [vmem:[%s287 + $0x48] sm:$0xe]
      %v1264 = vld [vmem:[%s287 + $0x4c] sm:$0xf]
      %v1265 = vld [vmem:[%s287 + $0x50] sm:$0x1]
      %v1266 = vld [vmem:[%s287 + $0x54] sm:$0xe]
      %v1267 = vld [vmem:[%s287 + $0x58] sm:$0xf]
      %v1268 = vld [vmem:[%s287 + $0x5c] sm:$0x1]
      %vm1293 = vcmask 1042432
      %vm1294 = vcmask 1046532
      %vm1295 = vmor %vm1293, %vm1294
      %v1296 = vrot.slane %v1245, 5
      %v1297 = vrot.slane %v1296, 4
      %v1298 = vrot.slane %v1246, 5
      %v1299 = vsel %vm1295, %v1297, %v1298
      %v1300 = vrot.slane %v1298, 4
      %v1301 = vrot.slane %v1247, 5
      %v1302 = vsel %vm1295, %v1300, %v1301
      %v1303 = vrot.slane %v1248, 5
      %v1304 = vrot.slane %v1303, 4
      %v1305 = vrot.slane %v1249, 5
      %v1306 = vsel %vm1295, %v1304, %v1305
      %v1307 = vrot.slane %v1305, 4
      %v1308 = vrot.slane %v1250, 5
      %v1309 = vsel %vm1295, %v1307, %v1308
      %v1310 = vrot.slane %v1251, 5
      %v1311 = vrot.slane %v1310, 4
      %v1312 = vrot.slane %v1252, 5
      %v1313 = vsel %vm1295, %v1311, %v1312
      %v1314 = vrot.slane %v1312, 4
      %v1315 = vrot.slane %v1253, 5
      %v1316 = vsel %vm1295, %v1314, %v1315
      %v1317 = vrot.slane %v1254, 5
      %v1318 = vrot.slane %v1317, 4
      %v1319 = vrot.slane %v1255, 5
      %v1320 = vsel %vm1295, %v1318, %v1319
      %v1321 = vrot.slane %v1319, 4
      %v1322 = vrot.slane %v1256, 5
      %v1323 = vsel %vm1295, %v1321, %v1322
      %v1324 = vrot.slane %v1257, 5
      %v1325 = vrot.slane %v1324, 4
      %v1326 = vrot.slane %v1258, 5
      %v1327 = vsel %vm1295, %v1325, %v1326
      %v1328 = vrot.slane %v1326, 4
      %v1329 = vrot.slane %v1259, 5
      %v1330 = vsel %vm1295, %v1328, %v1329
      %v1331 = vrot.slane %v1260, 5
      %v1332 = vrot.slane %v1331, 4
      %v1333 = vrot.slane %v1261, 5
      %v1334 = vsel %vm1295, %v1332, %v1333
      %v1335 = vrot.slane %v1333, 4
      %v1336 = vrot.slane %v1262, 5
      %v1337 = vsel %vm1295, %v1335, %v1336
      %v1338 = vrot.slane %v1263, 5
      %v1339 = vrot.slane %v1338, 4
      %v1340 = vrot.slane %v1264, 5
      %v1341 = vsel %vm1295, %v1339, %v1340
      %v1342 = vrot.slane %v1340, 4
      %v1343 = vrot.slane %v1265, 5
      %v1344 = vsel %vm1295, %v1342, %v1343
      %v1345 = vrot.slane %v1266, 5
      %v1346 = vrot.slane %v1345, 4
      %v1347 = vrot.slane %v1267, 5
      %v1348 = vsel %vm1295, %v1346, %v1347
      %v1349 = vrot.slane %v1347, 4
      %v1350 = vrot.slane %v1268, 5
      %v1351 = vsel %vm1295, %v1349, %v1350
      %v1352 = vld [vmem:[#allocation2] sm:$0xff]
      %v1353 = vld [vmem:[#allocation2 + $0x8] sm:$0xff]
      %v1354 = vld [vmem:[#allocation2 + $0x10] sm:$0xff]
      %v1355 = vld [vmem:[#allocation2 + $0x18] sm:$0xff]
      %v1356 = vld [vmem:[#allocation2 + $0x20] sm:$0xff]
      %v1357 = vld [vmem:[#allocation2 + $0x28] sm:$0xff]
      %v1358 = vld [vmem:[#allocation2 + $0x30] sm:$0xff]
      %v1359 = vld [vmem:[#allocation2 + $0x38] sm:$0xff]
      %v1360 = vld [vmem:[#allocation2 + $0x40] sm:$0xff]
      %v1361 = vld [vmem:[#allocation2 + $0x48] sm:$0xff]
      %v1362 = vld [vmem:[#allocation2 + $0x50] sm:$0xff]
      %v1363 = vld [vmem:[#allocation2 + $0x58] sm:$0xff]
      %v1364 = vld [vmem:[#allocation2 + $0x60] sm:$0xff]
      %v1365 = vld [vmem:[#allocation2 + $0x68] sm:$0xff]
      %v1366 = vld [vmem:[#allocation2 + $0x70] sm:$0xff]
      %v1367 = vld [vmem:[#allocation2 + $0x78] sm:$0xff]
      %v1368 = vunpack.c.l.b16 %v1299
      %v1369 = vunpack.c.l.b16 %v1302
      %v1370 = vunpack.c.l.b16 %v1306
      %v1371 = vunpack.c.l.b16 %v1309
      %v1372 = vunpack.c.l.b16 %v1313
      %v1373 = vunpack.c.l.b16 %v1316
      %v1374 = vunpack.c.l.b16 %v1320
      %v1375 = vunpack.c.l.b16 %v1323
      %v1376 = vunpack.c.l.b16 %v1327
      %v1377 = vunpack.c.l.b16 %v1330
      %v1378 = vunpack.c.l.b16 %v1334
      %v1379 = vunpack.c.l.b16 %v1337
      %v1380 = vunpack.c.l.b16 %v1341
      %v1381 = vunpack.c.l.b16 %v1344
      %v1382 = vunpack.c.l.b16 %v1348
      %v1383 = vunpack.c.l.b16 %v1351
      %v1384 = vpack.c.b16 %v1369, %v1368
      %v1385 = vpack.c.b16 %v1371, %v1370
      %v1386 = vpack.c.b16 %v1373, %v1372
      %v1387 = vpack.c.b16 %v1375, %v1374
      %v1388 = vpack.c.b16 %v1377, %v1376
      %v1389 = vpack.c.b16 %v1379, %v1378
      %v1390 = vpack.c.b16 %v1381, %v1380
      %v1391 = vpack.c.b16 %v1383, %v1382
      %v1393 = vsel %vm569, %v1384, 0
      %v1396 = vsel %vm569, %v1385, 0
      %v1399 = vsel %vm569, %v1386, 0
      %v1402 = vsel %vm569, %v1387, 0
      %v1405 = vsel %vm569, %v1388, 0
      %v1408 = vsel %vm569, %v1389, 0
      %v1411 = vsel %vm569, %v1390, 0
      %v1414 = vsel %vm569, %v1391, 0
      %v1417 = vsel %vm696, %v1244, 0
      %1419 = vmatprep.subr.bf16.mxu0 0
      %1420 = vmatpush1.bf16.msra.mxu0 0
      %1421 = vmatprep.subr.bf16.mxu0 0
      %1422 = vmatpush1.bf16.msra.mxu0 0
      %1423 = vmatprep.subr.bf16.mxu0 0
      %1424 = vmatpush1.bf16.msra.mxu0 0
      %1425 = vmatprep.subr.bf16.mxu0 0
      %1426 = vmatpush1.bf16.msra.mxu0 0
      %1427 = vmatprep.subr.bf16.mxu0 0
      %1428 = vmatpush1.bf16.msra.mxu0 0
      %1429 = vmatprep.subr.bf16.mxu0 0
      %1430 = vmatpush1.bf16.msra.mxu0 0
      %1431 = vmatprep.subr.bf16.mxu0 0
      %1432 = vmatpush1.bf16.msra.mxu0 0
      %1433 = vmatprep.subr.bf16.mxu0 0
      %1434 = vmatpush1.bf16.msra.mxu0 %v1417
      %1435 = vmatprep.subr.bf16.mxu0 0
      %1436 = vmatpush2.bf16.msra.mxu0 0
      %1437 = vmatprep.subr.bf16.mxu0 0
      %1438 = vmatpush2.bf16.msra.mxu0 0
      %1439 = vmatprep.subr.bf16.mxu0 0
      %1440 = vmatpush2.bf16.msra.mxu0 0
      %1441 = vmatprep.subr.bf16.mxu0 0
      %1442 = vmatpush2.bf16.msra.mxu0 0
      %1443 = vmatprep.subr.bf16.mxu0 0
      %1444 = vmatpush2.bf16.msra.mxu0 0
      %1445 = vmatprep.subr.bf16.mxu0 0
      %1446 = vmatpush2.bf16.msra.mxu0 0
      %1447 = vmatprep.subr.bf16.mxu0 0
      %1448 = vmatpush2.bf16.msra.mxu0 0
      %1449 = vmatprep.subr.bf16.mxu0 0
      %1450 = vmatpush2.bf16.msra.mxu0 0
      %1451 = vmatprep.mubr.bf16.mxu0 0
      %1452 = vmatmul.mubr.bf16.gmra.mxu0 %v1393
      %v1453 = vpop.f32.mrf.mxu0
      %v1454 = vadd.f32 0.0, %v1453
      %v1455 = vpop.f32.mrf.mxu0
      %v1456 = vpop.f32.mrf.mxu0
      %v1457 = vadd.f32 0.0, %v1456
      %v1458 = vpop.f32.mrf.mxu0
      %1459 = vmatprep.mubr.bf16.mxu0 0
      %1460 = vmatmul.mubr.bf16.gmra.mxu0 %v1396
      %v1461 = vpop.f32.mrf.mxu0
      %v1462 = vadd.f32 0.0, %v1461
      %v1463 = vpop.f32.mrf.mxu0
      %v1464 = vpop.f32.mrf.mxu0
      %v1465 = vadd.f32 0.0, %v1464
      %v1466 = vpop.f32.mrf.mxu0
      %1467 = vmatprep.mubr.bf16.mxu0 0
      %1468 = vmatmul.mubr.bf16.gmra.mxu0 %v1399
      %v1469 = vpop.f32.mrf.mxu0
      %v1470 = vadd.f32 0.0, %v1469
      %v1471 = vpop.f32.mrf.mxu0
      %v1472 = vpop.f32.mrf.mxu0
      %v1473 = vadd.f32 0.0, %v1472
      %v1474 = vpop.f32.mrf.mxu0
      %1475 = vmatprep.mubr.bf16.mxu0 0
      %1476 = vmatmul.mubr.bf16.gmra.mxu0 %v1402
      %v1477 = vpop.f32.mrf.mxu0
      %v1478 = vadd.f32 0.0, %v1477
      %v1479 = vpop.f32.mrf.mxu0
      %v1480 = vpop.f32.mrf.mxu0
      %v1481 = vadd.f32 0.0, %v1480
      %v1482 = vpop.f32.mrf.mxu0
      %1483 = vmatprep.mubr.bf16.mxu0 0
      %1484 = vmatmul.mubr.bf16.gmra.mxu0 %v1405
      %v1485 = vpop.f32.mrf.mxu0
      %v1486 = vadd.f32 0.0, %v1485
      %v1487 = vpop.f32.mrf.mxu0
      %v1488 = vpop.f32.mrf.mxu0
      %v1489 = vadd.f32 0.0, %v1488
      %v1490 = vpop.f32.mrf.mxu0
      %1491 = vmatprep.mubr.bf16.mxu0 0
      %1492 = vmatmul.mubr.bf16.gmra.mxu0 %v1408
      %v1493 = vpop.f32.mrf.mxu0
      %v1494 = vadd.f32 0.0, %v1493
      %v1495 = vpop.f32.mrf.mxu0
      %v1496 = vpop.f32.mrf.mxu0
      %v1497 = vadd.f32 0.0, %v1496
      %v1498 = vpop.f32.mrf.mxu0
      %1499 = vmatprep.mubr.bf16.mxu0 0
      %1500 = vmatmul.mubr.bf16.gmra.mxu0 %v1411
      %v1501 = vpop.f32.mrf.mxu0
      %v1502 = vadd.f32 0.0, %v1501
      %v1503 = vpop.f32.mrf.mxu0
      %v1504 = vpop.f32.mrf.mxu0
      %v1505 = vadd.f32 0.0, %v1504
      %v1506 = vpop.f32.mrf.mxu0
      %1507 = vmatprep.mubr.bf16.mxu0 0
      %1508 = vmatmul.mubr.bf16.gmra.mxu0 %v1414
      %v1509 = vpop.f32.mrf.mxu0
      %v1510 = vadd.f32 0.0, %v1509
      %v1511 = vpop.f32.mrf.mxu0
      %v1512 = vpop.f32.mrf.mxu0
      %v1513 = vadd.f32 0.0, %v1512
      %v1514 = vpop.f32.mrf.mxu0
      %1515 = vdwg.mxu0
      %v1516 = vadd.f32 %v1352, %v1454
      %v1517 = vadd.f32 %v1353, %v1457
      %v1518 = vadd.f32 %v1354, %v1462
      %v1519 = vadd.f32 %v1355, %v1465
      %v1520 = vadd.f32 %v1356, %v1470
      %v1521 = vadd.f32 %v1357, %v1473
      %v1522 = vadd.f32 %v1358, %v1478
      %v1523 = vadd.f32 %v1359, %v1481
      %v1524 = vadd.f32 %v1360, %v1486
      %v1525 = vadd.f32 %v1361, %v1489
      %v1526 = vadd.f32 %v1362, %v1494
      %v1527 = vadd.f32 %v1363, %v1497
      %v1528 = vadd.f32 %v1364, %v1502
      %v1529 = vadd.f32 %v1365, %v1505
      %v1530 = vadd.f32 %v1366, %v1510
      %v1531 = vadd.f32 %v1367, %v1513
      %1532 = vst.msk [vmem:[#allocation2] sm:$0xff] %vm569, %v1516
      %1533 = vst.msk [vmem:[#allocation2 + $0x8] sm:$0xff] %vm569, %v1517
      %1534 = vst.msk [vmem:[#allocation2 + $0x10] sm:$0xff] %vm569, %v1518
      %1535 = vst.msk [vmem:[#allocation2 + $0x18] sm:$0xff] %vm569, %v1519
      %1536 = vst.msk [vmem:[#allocation2 + $0x20] sm:$0xff] %vm569, %v1520
      %1537 = vst.msk [vmem:[#allocation2 + $0x28] sm:$0xff] %vm569, %v1521
      %1538 = vst.msk [vmem:[#allocation2 + $0x30] sm:$0xff] %vm569, %v1522
      %1539 = vst.msk [vmem:[#allocation2 + $0x38] sm:$0xff] %vm569, %v1523
      %1540 = vst.msk [vmem:[#allocation2 + $0x40] sm:$0xff] %vm569, %v1524
      %1541 = vst.msk [vmem:[#allocation2 + $0x48] sm:$0xff] %vm569, %v1525
      %1542 = vst.msk [vmem:[#allocation2 + $0x50] sm:$0xff] %vm569, %v1526
      %1543 = vst.msk [vmem:[#allocation2 + $0x58] sm:$0xff] %vm569, %v1527
      %1544 = vst.msk [vmem:[#allocation2 + $0x60] sm:$0xff] %vm569, %v1528
      %1545 = vst.msk [vmem:[#allocation2 + $0x68] sm:$0xff] %vm569, %v1529
      %1546 = vst.msk [vmem:[#allocation2 + $0x70] sm:$0xff] %vm569, %v1530
      %1547 = vst.msk [vmem:[#allocation2 + $0x78] sm:$0xff] %vm569, %v1531
      %s1548 = scalar_lea.vmem %s2, 12
      %v1549 = vld [vmem:[%s1548] sm:$0xf]
      %v1550 = vld [vmem:[%s321] sm:$0xf]
      %v1551 = vld [vmem:[%s321 + $0x4] sm:$0xf]
      %v1552 = vld [vmem:[%s321 + $0xc] sm:$0xf]
      %v1553 = vld [vmem:[%s321 + $0x10] sm:$0xf]
      %v1554 = vld [vmem:[%s321 + $0x18] sm:$0xf]
      %v1555 = vld [vmem:[%s321 + $0x1c] sm:$0xf]
      %v1556 = vld [vmem:[%s321 + $0x24] sm:$0xf]
      %v1557 = vld [vmem:[%s321 + $0x28] sm:$0xf]
      %v1558 = vld [vmem:[%s321 + $0x30] sm:$0xf]
      %v1559 = vld [vmem:[%s321 + $0x34] sm:$0xf]
      %v1560 = vld [vmem:[%s321 + $0x3c] sm:$0xf]
      %v1561 = vld [vmem:[%s321 + $0x40] sm:$0xf]
      %v1562 = vld [vmem:[%s321 + $0x48] sm:$0xf]
      %v1563 = vld [vmem:[%s321 + $0x4c] sm:$0xf]
      %v1564 = vld [vmem:[#allocation2] sm:$0xff]
      %v1565 = vld [vmem:[#allocation2 + $0x8] sm:$0xff]
      %v1566 = vld [vmem:[#allocation2 + $0x10] sm:$0xff]
      %v1567 = vld [vmem:[#allocation2 + $0x18] sm:$0xff]
      %v1568 = vld [vmem:[#allocation2 + $0x20] sm:$0xff]
      %v1569 = vld [vmem:[#allocation2 + $0x28] sm:$0xff]
      %v1570 = vld [vmem:[#allocation2 + $0x30] sm:$0xff]
      %v1571 = vld [vmem:[#allocation2 + $0x38] sm:$0xff]
      %v1572 = vld [vmem:[#allocation2 + $0x40] sm:$0xff]
      %v1573 = vld [vmem:[#allocation2 + $0x48] sm:$0xff]
      %v1574 = vld [vmem:[#allocation2 + $0x50] sm:$0xff]
      %v1575 = vld [vmem:[#allocation2 + $0x58] sm:$0xff]
      %v1576 = vld [vmem:[#allocation2 + $0x60] sm:$0xff]
      %v1577 = vld [vmem:[#allocation2 + $0x68] sm:$0xff]
      %v1592 = vunpack.c.l.b16 %v1550
      %v1593 = vunpack.c.l.b16 %v1551
      %v1594 = vunpack.c.l.b16 %v1552
      %v1595 = vunpack.c.l.b16 %v1553
      %v1596 = vunpack.c.l.b16 %v1554
      %v1597 = vunpack.c.l.b16 %v1555
      %v1598 = vunpack.c.l.b16 %v1556
      %v1599 = vunpack.c.l.b16 %v1557
      %v1600 = vunpack.c.l.b16 %v1558
      %v1601 = vunpack.c.l.b16 %v1559
      %v1602 = vunpack.c.l.b16 %v1560
      %v1603 = vunpack.c.l.b16 %v1561
      %v1604 = vunpack.c.l.b16 %v1562
      %v1605 = vunpack.c.l.b16 %v1563
      %v1606 = vpack.c.b16 %v1593, %v1592
      %v1607 = vpack.c.b16 %v1595, %v1594
      %v1608 = vpack.c.b16 %v1597, %v1596
      %v1609 = vpack.c.b16 %v1599, %v1598
      %v1610 = vpack.c.b16 %v1601, %v1600
      %v1611 = vpack.c.b16 %v1603, %v1602
      %v1612 = vpack.c.b16 %v1605, %v1604
      %v1614 = vsel %vm569, %v1606, 0
      %v1617 = vsel %vm569, %v1607, 0
      %v1620 = vsel %vm569, %v1608, 0
      %v1623 = vsel %vm569, %v1609, 0
      %v1626 = vsel %vm569, %v1610, 0
      %v1629 = vsel %vm569, %v1611, 0
      %v1632 = vsel %vm569, %v1612, 0
      %v1635 = vsel %vm696, %v1549, 0
      %1637 = vmatprep.subr.bf16.mxu0 0
      %1638 = vmatpush1.bf16.msra.mxu0 0
      %1639 = vmatprep.subr.bf16.mxu0 0
      %1640 = vmatpush1.bf16.msra.mxu0 0
      %1641 = vmatprep.subr.bf16.mxu0 0
      %1642 = vmatpush1.bf16.msra.mxu0 0
      %1643 = vmatprep.subr.bf16.mxu0 0
      %1644 = vmatpush1.bf16.msra.mxu0 0
      %1645 = vmatprep.subr.bf16.mxu0 0
      %1646 = vmatpush1.bf16.msra.mxu0 0
      %1647 = vmatprep.subr.bf16.mxu0 0
      %1648 = vmatpush1.bf16.msra.mxu0 0
      %1649 = vmatprep.subr.bf16.mxu0 0
      %1650 = vmatpush1.bf16.msra.mxu0 0
      %1651 = vmatprep.subr.bf16.mxu0 0
      %1652 = vmatpush1.bf16.msra.mxu0 %v1635
      %1653 = vmatprep.subr.bf16.mxu0 0
      %1654 = vmatpush2.bf16.msra.mxu0 0
      %1655 = vmatprep.subr.bf16.mxu0 0
      %1656 = vmatpush2.bf16.msra.mxu0 0
      %1657 = vmatprep.subr.bf16.mxu0 0
      %1658 = vmatpush2.bf16.msra.mxu0 0
      %1659 = vmatprep.subr.bf16.mxu0 0
      %1660 = vmatpush2.bf16.msra.mxu0 0
      %1661 = vmatprep.subr.bf16.mxu0 0
      %1662 = vmatpush2.bf16.msra.mxu0 0
      %1663 = vmatprep.subr.bf16.mxu0 0
      %1664 = vmatpush2.bf16.msra.mxu0 0
      %1665 = vmatprep.subr.bf16.mxu0 0
      %1666 = vmatpush2.bf16.msra.mxu0 0
      %1667 = vmatprep.subr.bf16.mxu0 0
      %1668 = vmatpush2.bf16.msra.mxu0 0
      %1669 = vmatprep.mubr.bf16.mxu0 0
      %1670 = vmatmul.mubr.bf16.gmra.mxu0 %v1614
      %v1671 = vpop.f32.mrf.mxu0
      %v1672 = vadd.f32 0.0, %v1671
      %v1673 = vpop.f32.mrf.mxu0
      %v1674 = vpop.f32.mrf.mxu0
      %v1675 = vadd.f32 0.0, %v1674
      %v1676 = vpop.f32.mrf.mxu0
      %1677 = vmatprep.mubr.bf16.mxu0 0
      %1678 = vmatmul.mubr.bf16.gmra.mxu0 %v1617
      %v1679 = vpop.f32.mrf.mxu0
      %v1680 = vadd.f32 0.0, %v1679
      %v1681 = vpop.f32.mrf.mxu0
      %v1682 = vpop.f32.mrf.mxu0
      %v1683 = vadd.f32 0.0, %v1682
      %v1684 = vpop.f32.mrf.mxu0
      %1685 = vmatprep.mubr.bf16.mxu0 0
      %1686 = vmatmul.mubr.bf16.gmra.mxu0 %v1620
      %v1687 = vpop.f32.mrf.mxu0
      %v1688 = vadd.f32 0.0, %v1687
      %v1689 = vpop.f32.mrf.mxu0
      %v1690 = vpop.f32.mrf.mxu0
      %v1691 = vadd.f32 0.0, %v1690
      %v1692 = vpop.f32.mrf.mxu0
      %1693 = vmatprep.mubr.bf16.mxu0 0
      %1694 = vmatmul.mubr.bf16.gmra.mxu0 %v1623
      %v1695 = vpop.f32.mrf.mxu0
      %v1696 = vadd.f32 0.0, %v1695
      %v1697 = vpop.f32.mrf.mxu0
      %v1698 = vpop.f32.mrf.mxu0
      %v1699 = vadd.f32 0.0, %v1698
      %v1700 = vpop.f32.mrf.mxu0
      %1701 = vmatprep.mubr.bf16.mxu0 0
      %1702 = vmatmul.mubr.bf16.gmra.mxu0 %v1626
      %v1703 = vpop.f32.mrf.mxu0
      %v1704 = vadd.f32 0.0, %v1703
      %v1705 = vpop.f32.mrf.mxu0
      %v1706 = vpop.f32.mrf.mxu0
      %v1707 = vadd.f32 0.0, %v1706
      %v1708 = vpop.f32.mrf.mxu0
      %1709 = vmatprep.mubr.bf16.mxu0 0
      %1710 = vmatmul.mubr.bf16.gmra.mxu0 %v1629
      %v1711 = vpop.f32.mrf.mxu0
      %v1712 = vadd.f32 0.0, %v1711
      %v1713 = vpop.f32.mrf.mxu0
      %v1714 = vpop.f32.mrf.mxu0
      %v1715 = vadd.f32 0.0, %v1714
      %v1716 = vpop.f32.mrf.mxu0
      %1717 = vmatprep.mubr.bf16.mxu0 0
      %1718 = vmatmul.mubr.bf16.gmra.mxu0 %v1632
      %v1719 = vpop.f32.mrf.mxu0
      %v1720 = vadd.f32 0.0, %v1719
      %v1721 = vpop.f32.mrf.mxu0
      %v1722 = vpop.f32.mrf.mxu0
      %v1723 = vadd.f32 0.0, %v1722
      %v1724 = vpop.f32.mrf.mxu0
      %1725 = vdwg.mxu0
      %v1726 = vadd.f32 %v1564, %v1672
      %v1727 = vadd.f32 %v1565, %v1675
      %v1728 = vadd.f32 %v1566, %v1680
      %v1729 = vadd.f32 %v1567, %v1683
      %v1730 = vadd.f32 %v1568, %v1688
      %v1731 = vadd.f32 %v1569, %v1691
      %v1732 = vadd.f32 %v1570, %v1696
      %v1733 = vadd.f32 %v1571, %v1699
      %v1734 = vadd.f32 %v1572, %v1704
      %v1735 = vadd.f32 %v1573, %v1707
      %v1736 = vadd.f32 %v1574, %v1712
      %v1737 = vadd.f32 %v1575, %v1715
      %v1738 = vadd.f32 %v1576, %v1720
      %v1739 = vadd.f32 %v1577, %v1723
      %1740 = vst.msk [vmem:[#allocation2] sm:$0xff] %vm569, %v1726
      %1741 = vst.msk [vmem:[#allocation2 + $0x8] sm:$0xff] %vm569, %v1727
      %1742 = vst.msk [vmem:[#allocation2 + $0x10] sm:$0xff] %vm569, %v1728
      %1743 = vst.msk [vmem:[#allocation2 + $0x18] sm:$0xff] %vm569, %v1729
      %1744 = vst.msk [vmem:[#allocation2 + $0x20] sm:$0xff] %vm569, %v1730
      %1745 = vst.msk [vmem:[#allocation2 + $0x28] sm:$0xff] %vm569, %v1731
      %1746 = vst.msk [vmem:[#allocation2 + $0x30] sm:$0xff] %vm569, %v1732
      %1747 = vst.msk [vmem:[#allocation2 + $0x38] sm:$0xff] %vm569, %v1733
      %1748 = vst.msk [vmem:[#allocation2 + $0x40] sm:$0xff] %vm569, %v1734
      %1749 = vst.msk [vmem:[#allocation2 + $0x48] sm:$0xff] %vm569, %v1735
      %1750 = vst.msk [vmem:[#allocation2 + $0x50] sm:$0xff] %vm569, %v1736
      %1751 = vst.msk [vmem:[#allocation2 + $0x58] sm:$0xff] %vm569, %v1737
      %1752 = vst.msk [vmem:[#allocation2 + $0x60] sm:$0xff] %vm569, %v1738
      %1753 = vst.msk [vmem:[#allocation2 + $0x68] sm:$0xff] %vm569, %v1739
      %v1754 = vld [vmem:[%s305] sm:$0xf]
      %v1755 = vld [vmem:[%s305 + $0x4] sm:$0xf]
      %v1756 = vld [vmem:[#allocation2 + $0x70] sm:$0xff]
      %v1757 = vld [vmem:[#allocation2 + $0x78] sm:$0xff]
      %v1760 = vunpack.c.l.b16 %v1754
      %v1761 = vunpack.c.l.b16 %v1755
      %v1762 = vpack.c.b16 %v1761, %v1760
      %v1764 = vsel %vm569, %v1762, 0
      %1766 = vmatprep.subr.bf16.mxu0 0
      %1767 = vmatpush1.bf16.msra.mxu0 0
      %1768 = vmatprep.subr.bf16.mxu0 0
      %1769 = vmatpush1.bf16.msra.mxu0 0
      %1770 = vmatprep.subr.bf16.mxu0 0
      %1771 = vmatpush1.bf16.msra.mxu0 0
      %1772 = vmatprep.subr.bf16.mxu0 0
      %1773 = vmatpush1.bf16.msra.mxu0 0
      %1774 = vmatprep.subr.bf16.mxu0 0
      %1775 = vmatpush1.bf16.msra.mxu0 0
      %1776 = vmatprep.subr.bf16.mxu0 0
      %1777 = vmatpush1.bf16.msra.mxu0 0
      %1778 = vmatprep.subr.bf16.mxu0 0
      %1779 = vmatpush1.bf16.msra.mxu0 0
      %1780 = vmatprep.subr.bf16.mxu0 0
      %1781 = vmatpush1.bf16.msra.mxu0 %v1635
      %1782 = vmatprep.subr.bf16.mxu0 0
      %1783 = vmatpush2.bf16.msra.mxu0 0
      %1784 = vmatprep.subr.bf16.mxu0 0
      %1785 = vmatpush2.bf16.msra.mxu0 0
      %1786 = vmatprep.subr.bf16.mxu0 0
      %1787 = vmatpush2.bf16.msra.mxu0 0
      %1788 = vmatprep.subr.bf16.mxu0 0
      %1789 = vmatpush2.bf16.msra.mxu0 0
      %1790 = vmatprep.subr.bf16.mxu0 0
      %1791 = vmatpush2.bf16.msra.mxu0 0
      %1792 = vmatprep.subr.bf16.mxu0 0
      %1793 = vmatpush2.bf16.msra.mxu0 0
      %1794 = vmatprep.subr.bf16.mxu0 0
      %1795 = vmatpush2.bf16.msra.mxu0 0
      %1796 = vmatprep.subr.bf16.mxu0 0
      %1797 = vmatpush2.bf16.msra.mxu0 0
      %1798 = vmatprep.mubr.bf16.mxu0 0
      %1799 = vmatmul.mubr.bf16.gmra.mxu0 %v1764
      %v1800 = vpop.f32.mrf.mxu0
      %v1801 = vadd.f32 0.0, %v1800
      %v1802 = vpop.f32.mrf.mxu0
      %v1803 = vpop.f32.mrf.mxu0
      %v1804 = vadd.f32 0.0, %v1803
      %v1805 = vpop.f32.mrf.mxu0
      %1806 = vdwg.mxu0
      %v1807 = vadd.f32 %v1756, %v1801
      %v1808 = vadd.f32 %v1757, %v1804
      %1809 = vst.msk [vmem:[#allocation2 + $0x70] sm:$0xff] %vm569, %v1807
      %1810 = vst.msk [vmem:[#allocation2 + $0x78] sm:$0xff] %vm569, %v1808
      %s1811 = scalar_lea.vmem %s2, 16
      %v1812 = vld [vmem:[%s1811] sm:$0xf]
      %v1813 = vld [vmem:[%s321] sm:$0xf]
      %v1814 = vld [vmem:[%s321 + $0x4] sm:$0xf]
      %v1815 = vld [vmem:[%s321 + $0x8] sm:$0x1]
      %v1816 = vld [vmem:[%s321 + $0xc] sm:$0xf]
      %v1817 = vld [vmem:[%s321 + $0x10] sm:$0xf]
      %v1818 = vld [vmem:[%s321 + $0x14] sm:$0x1]
      %v1819 = vld [vmem:[%s321 + $0x18] sm:$0xf]
      %v1820 = vld [vmem:[%s321 + $0x1c] sm:$0xf]
      %v1821 = vld [vmem:[%s321 + $0x20] sm:$0x1]
      %v1822 = vld [vmem:[%s321 + $0x24] sm:$0xf]
      %v1823 = vld [vmem:[%s321 + $0x28] sm:$0xf]
      %v1824 = vld [vmem:[%s321 + $0x2c] sm:$0x1]
      %v1825 = vld [vmem:[%s321 + $0x30] sm:$0xf]
      %v1826 = vld [vmem:[%s321 + $0x34] sm:$0xf]
      %v1827 = vld [vmem:[%s321 + $0x38] sm:$0x1]
      %v1828 = vld [vmem:[%s321 + $0x3c] sm:$0xf]
      %v1829 = vld [vmem:[%s321 + $0x40] sm:$0xf]
      %v1830 = vld [vmem:[%s321 + $0x44] sm:$0x1]
      %v1831 = vld [vmem:[%s321 + $0x48] sm:$0xf]
      %v1832 = vld [vmem:[%s321 + $0x4c] sm:$0xf]
      %v1833 = vld [vmem:[%s321 + $0x50] sm:$0x1]
      %v1835 = vshrl.u32 %v1813, 16
      %v1837 = vrot.slane %v1835, 4
      %v1838 = vshll.u32 %v1813, 16
      %v1840 = vrot.slane %v1838, 5
      %v1841 = vor.u32 %v1837, %v1840
      %v1842 = vrot.slane %v1841, 4
      %v1844 = vshll.u32 %v1814, 16
      %v1846 = vrot.slane %v1844, 5
      %v1847 = vsel %vm345, %v1842, %v1846
      %v1848 = vshrl.u32 %v1814, 16
      %v1850 = vrot.slane %v1848, 4
      %v1851 = vor.u32 %v1850, %v1846
      %v1852 = vrot.slane %v1851, 4
      %v1854 = vshll.u32 %v1815, 16
      %v1856 = vrot.slane %v1854, 5
      %v1857 = vsel %vm345, %v1852, %v1856
      %v1859 = vshrl.u32 %v1816, 16
      %v1861 = vrot.slane %v1859, 4
      %v1862 = vshll.u32 %v1816, 16
      %v1864 = vrot.slane %v1862, 5
      %v1865 = vor.u32 %v1861, %v1864
      %v1866 = vrot.slane %v1865, 4
      %v1868 = vshll.u32 %v1817, 16
      %v1870 = vrot.slane %v1868, 5
      %v1871 = vsel %vm345, %v1866, %v1870
      %v1872 = vshrl.u32 %v1817, 16
      %v1874 = vrot.slane %v1872, 4
      %v1875 = vor.u32 %v1874, %v1870
      %v1876 = vrot.slane %v1875, 4
      %v1878 = vshll.u32 %v1818, 16
      %v1880 = vrot.slane %v1878, 5
      %v1881 = vsel %vm345, %v1876, %v1880
      %v1883 = vshrl.u32 %v1819, 16
      %v1885 = vrot.slane %v1883, 4
      %v1886 = vshll.u32 %v1819, 16
      %v1888 = vrot.slane %v1886, 5
      %v1889 = vor.u32 %v1885, %v1888
      %v1890 = vrot.slane %v1889, 4
      %v1892 = vshll.u32 %v1820, 16
      %v1894 = vrot.slane %v1892, 5
      %v1895 = vsel %vm345, %v1890, %v1894
      %v1896 = vshrl.u32 %v1820, 16
      %v1898 = vrot.slane %v1896, 4
      %v1899 = vor.u32 %v1898, %v1894
      %v1900 = vrot.slane %v1899, 4
      %v1902 = vshll.u32 %v1821, 16
      %v1904 = vrot.slane %v1902, 5
      %v1905 = vsel %vm345, %v1900, %v1904
      %v1907 = vshrl.u32 %v1822, 16
      %v1909 = vrot.slane %v1907, 4
      %v1910 = vshll.u32 %v1822, 16
      %v1912 = vrot.slane %v1910, 5
      %v1913 = vor.u32 %v1909, %v1912
      %v1914 = vrot.slane %v1913, 4
      %v1916 = vshll.u32 %v1823, 16
      %v1918 = vrot.slane %v1916, 5
      %v1919 = vsel %vm345, %v1914, %v1918
      %v1920 = vshrl.u32 %v1823, 16
      %v1922 = vrot.slane %v1920, 4
      %v1923 = vor.u32 %v1922, %v1918
      %v1924 = vrot.slane %v1923, 4
      %v1926 = vshll.u32 %v1824, 16
      %v1928 = vrot.slane %v1926, 5
      %v1929 = vsel %vm345, %v1924, %v1928
      %v1931 = vshrl.u32 %v1825, 16
      %v1933 = vrot.slane %v1931, 4
      %v1934 = vshll.u32 %v1825, 16
      %v1936 = vrot.slane %v1934, 5
      %v1937 = vor.u32 %v1933, %v1936
      %v1938 = vrot.slane %v1937, 4
      %v1940 = vshll.u32 %v1826, 16
      %v1942 = vrot.slane %v1940, 5
      %v1943 = vsel %vm345, %v1938, %v1942
      %v1944 = vshrl.u32 %v1826, 16
      %v1946 = vrot.slane %v1944, 4
      %v1947 = vor.u32 %v1946, %v1942
      %v1948 = vrot.slane %v1947, 4
      %v1950 = vshll.u32 %v1827, 16
      %v1952 = vrot.slane %v1950, 5
      %v1953 = vsel %vm345, %v1948, %v1952
      %v1955 = vshrl.u32 %v1828, 16
      %v1957 = vrot.slane %v1955, 4
      %v1958 = vshll.u32 %v1828, 16
      %v1960 = vrot.slane %v1958, 5
      %v1961 = vor.u32 %v1957, %v1960
      %v1962 = vrot.slane %v1961, 4
      %v1964 = vshll.u32 %v1829, 16
      %v1966 = vrot.slane %v1964, 5
      %v1967 = vsel %vm345, %v1962, %v1966
      %v1968 = vshrl.u32 %v1829, 16
      %v1970 = vrot.slane %v1968, 4
      %v1971 = vor.u32 %v1970, %v1966
      %v1972 = vrot.slane %v1971, 4
      %v1974 = vshll.u32 %v1830, 16
      %v1976 = vrot.slane %v1974, 5
      %v1977 = vsel %vm345, %v1972, %v1976
      %v1979 = vshrl.u32 %v1831, 16
      %v1981 = vrot.slane %v1979, 4
      %v1982 = vshll.u32 %v1831, 16
      %v1984 = vrot.slane %v1982, 5
      %v1985 = vor.u32 %v1981, %v1984
      %v1986 = vrot.slane %v1985, 4
      %v1988 = vshll.u32 %v1832, 16
      %v1990 = vrot.slane %v1988, 5
      %v1991 = vsel %vm345, %v1986, %v1990
      %v1992 = vshrl.u32 %v1832, 16
      %v1994 = vrot.slane %v1992, 4
      %v1995 = vor.u32 %v1994, %v1990
      %v1996 = vrot.slane %v1995, 4
      %v1998 = vshll.u32 %v1833, 16
      %v2000 = vrot.slane %v1998, 5
      %v2001 = vsel %vm345, %v1996, %v2000
      %v2002 = vld [vmem:[#allocation2] sm:$0xff]
      %v2003 = vld [vmem:[#allocation2 + $0x8] sm:$0xff]
      %v2004 = vld [vmem:[#allocation2 + $0x10] sm:$0xff]
      %v2005 = vld [vmem:[#allocation2 + $0x18] sm:$0xff]
      %v2006 = vld [vmem:[#allocation2 + $0x20] sm:$0xff]
      %v2007 = vld [vmem:[#allocation2 + $0x28] sm:$0xff]
      %v2008 = vld [vmem:[#allocation2 + $0x30] sm:$0xff]
      %v2009 = vld [vmem:[#allocation2 + $0x38] sm:$0xff]
      %v2010 = vld [vmem:[#allocation2 + $0x40] sm:$0xff]
      %v2011 = vld [vmem:[#allocation2 + $0x48] sm:$0xff]
      %v2012 = vld [vmem:[#allocation2 + $0x50] sm:$0xff]
      %v2013 = vld [vmem:[#allocation2 + $0x58] sm:$0xff]
      %v2014 = vld [vmem:[#allocation2 + $0x60] sm:$0xff]
      %v2015 = vld [vmem:[#allocation2 + $0x68] sm:$0xff]
      %v2016 = vunpack.c.l.b16 %v1847
      %v2017 = vunpack.c.l.b16 %v1857
      %v2018 = vunpack.c.l.b16 %v1871
      %v2019 = vunpack.c.l.b16 %v1881
      %v2020 = vunpack.c.l.b16 %v1895
      %v2021 = vunpack.c.l.b16 %v1905
      %v2022 = vunpack.c.l.b16 %v1919
      %v2023 = vunpack.c.l.b16 %v1929
      %v2024 = vunpack.c.l.b16 %v1943
      %v2025 = vunpack.c.l.b16 %v1953
      %v2026 = vunpack.c.l.b16 %v1967
      %v2027 = vunpack.c.l.b16 %v1977
      %v2028 = vunpack.c.l.b16 %v1991
      %v2029 = vunpack.c.l.b16 %v2001
      %v2030 = vpack.c.b16 %v2017, %v2016
      %v2031 = vpack.c.b16 %v2019, %v2018
      %v2032 = vpack.c.b16 %v2021, %v2020
      %v2033 = vpack.c.b16 %v2023, %v2022
      %v2034 = vpack.c.b16 %v2025, %v2024
      %v2035 = vpack.c.b16 %v2027, %v2026
      %v2036 = vpack.c.b16 %v2029, %v2028
      %v2038 = vsel %vm569, %v2030, 0
      %v2041 = vsel %vm569, %v2031, 0
      %v2044 = vsel %vm569, %v2032, 0
      %v2047 = vsel %vm569, %v2033, 0
      %v2050 = vsel %vm569, %v2034, 0
      %v2053 = vsel %vm569, %v2035, 0
      %v2056 = vsel %vm569, %v2036, 0
      %v2059 = vsel %vm696, %v1812, 0
      %2061 = vmatprep.subr.bf16.mxu0 0
      %2062 = vmatpush1.bf16.msra.mxu0 0
      %2063 = vmatprep.subr.bf16.mxu0 0
      %2064 = vmatpush1.bf16.msra.mxu0 0
      %2065 = vmatprep.subr.bf16.mxu0 0
      %2066 = vmatpush1.bf16.msra.mxu0 0
      %2067 = vmatprep.subr.bf16.mxu0 0
      %2068 = vmatpush1.bf16.msra.mxu0 0
      %2069 = vmatprep.subr.bf16.mxu0 0
      %2070 = vmatpush1.bf16.msra.mxu0 0
      %2071 = vmatprep.subr.bf16.mxu0 0
      %2072 = vmatpush1.bf16.msra.mxu0 0
      %2073 = vmatprep.subr.bf16.mxu0 0
      %2074 = vmatpush1.bf16.msra.mxu0 0
      %2075 = vmatprep.subr.bf16.mxu0 0
      %2076 = vmatpush1.bf16.msra.mxu0 %v2059
      %2077 = vmatprep.subr.bf16.mxu0 0
      %2078 = vmatpush2.bf16.msra.mxu0 0
      %2079 = vmatprep.subr.bf16.mxu0 0
      %2080 = vmatpush2.bf16.msra.mxu0 0
      %2081 = vmatprep.subr.bf16.mxu0 0
      %2082 = vmatpush2.bf16.msra.mxu0 0
      %2083 = vmatprep.subr.bf16.mxu0 0
      %2084 = vmatpush2.bf16.msra.mxu0 0
      %2085 = vmatprep.subr.bf16.mxu0 0
      %2086 = vmatpush2.bf16.msra.mxu0 0
      %2087 = vmatprep.subr.bf16.mxu0 0
      %2088 = vmatpush2.bf16.msra.mxu0 0
      %2089 = vmatprep.subr.bf16.mxu0 0
      %2090 = vmatpush2.bf16.msra.mxu0 0
      %2091 = vmatprep.subr.bf16.mxu0 0
      %2092 = vmatpush2.bf16.msra.mxu0 0
      %2093 = vmatprep.mubr.bf16.mxu0 0
      %2094 = vmatmul.mubr.bf16.gmra.mxu0 %v2038
      %v2095 = vpop.f32.mrf.mxu0
      %v2096 = vadd.f32 0.0, %v2095
      %v2097 = vpop.f32.mrf.mxu0
      %v2098 = vpop.f32.mrf.mxu0
      %v2099 = vadd.f32 0.0, %v2098
      %v2100 = vpop.f32.mrf.mxu0
      %2101 = vmatprep.mubr.bf16.mxu0 0
      %2102 = vmatmul.mubr.bf16.gmra.mxu0 %v2041
      %v2103 = vpop.f32.mrf.mxu0
      %v2104 = vadd.f32 0.0, %v2103
      %v2105 = vpop.f32.mrf.mxu0
      %v2106 = vpop.f32.mrf.mxu0
      %v2107 = vadd.f32 0.0, %v2106
      %v2108 = vpop.f32.mrf.mxu0
      %2109 = vmatprep.mubr.bf16.mxu0 0
      %2110 = vmatmul.mubr.bf16.gmra.mxu0 %v2044
      %v2111 = vpop.f32.mrf.mxu0
      %v2112 = vadd.f32 0.0, %v2111
      %v2113 = vpop.f32.mrf.mxu0
      %v2114 = vpop.f32.mrf.mxu0
      %v2115 = vadd.f32 0.0, %v2114
      %v2116 = vpop.f32.mrf.mxu0
      %2117 = vmatprep.mubr.bf16.mxu0 0
      %2118 = vmatmul.mubr.bf16.gmra.mxu0 %v2047
      %v2119 = vpop.f32.mrf.mxu0
      %v2120 = vadd.f32 0.0, %v2119
      %v2121 = vpop.f32.mrf.mxu0
      %v2122 = vpop.f32.mrf.mxu0
      %v2123 = vadd.f32 0.0, %v2122
      %v2124 = vpop.f32.mrf.mxu0
      %2125 = vmatprep.mubr.bf16.mxu0 0
      %2126 = vmatmul.mubr.bf16.gmra.mxu0 %v2050
      %v2127 = vpop.f32.mrf.mxu0
      %v2128 = vadd.f32 0.0, %v2127
      %v2129 = vpop.f32.mrf.mxu0
      %v2130 = vpop.f32.mrf.mxu0
      %v2131 = vadd.f32 0.0, %v2130
      %v2132 = vpop.f32.mrf.mxu0
      %2133 = vmatprep.mubr.bf16.mxu0 0
      %2134 = vmatmul.mubr.bf16.gmra.mxu0 %v2053
      %v2135 = vpop.f32.mrf.mxu0
      %v2136 = vadd.f32 0.0, %v2135
      %v2137 = vpop.f32.mrf.mxu0
      %v2138 = vpop.f32.mrf.mxu0
      %v2139 = vadd.f32 0.0, %v2138
      %v2140 = vpop.f32.mrf.mxu0
      %2141 = vmatprep.mubr.bf16.mxu0 0
      %2142 = vmatmul.mubr.bf16.gmra.mxu0 %v2056
      %v2143 = vpop.f32.mrf.mxu0
      %v2144 = vadd.f32 0.0, %v2143
      %v2145 = vpop.f32.mrf.mxu0
      %v2146 = vpop.f32.mrf.mxu0
      %v2147 = vadd.f32 0.0, %v2146
      %v2148 = vpop.f32.mrf.mxu0
      %2149 = vdwg.mxu0
      %v2150 = vadd.f32 %v2002, %v2096
      %v2151 = vadd.f32 %v2003, %v2099
      %v2152 = vadd.f32 %v2004, %v2104
      %v2153 = vadd.f32 %v2005, %v2107
      %v2154 = vadd.f32 %v2006, %v2112
      %v2155 = vadd.f32 %v2007, %v2115
      %v2156 = vadd.f32 %v2008, %v2120
      %v2157 = vadd.f32 %v2009, %v2123
      %v2158 = vadd.f32 %v2010, %v2128
      %v2159 = vadd.f32 %v2011, %v2131
      %v2160 = vadd.f32 %v2012, %v2136
      %v2161 = vadd.f32 %v2013, %v2139
      %v2162 = vadd.f32 %v2014, %v2144
      %v2163 = vadd.f32 %v2015, %v2147
      %2164 = vst.msk [vmem:[#allocation2] sm:$0xff] %vm569, %v2150
      %2165 = vst.msk [vmem:[#allocation2 + $0x8] sm:$0xff] %vm569, %v2151
      %2166 = vst.msk [vmem:[#allocation2 + $0x10] sm:$0xff] %vm569, %v2152
      %2167 = vst.msk [vmem:[#allocation2 + $0x18] sm:$0xff] %vm569, %v2153
      %2168 = vst.msk [vmem:[#allocation2 + $0x20] sm:$0xff] %vm569, %v2154
      %2169 = vst.msk [vmem:[#allocation2 + $0x28] sm:$0xff] %vm569, %v2155
      %2170 = vst.msk [vmem:[#allocation2 + $0x30] sm:$0xff] %vm569, %v2156
      %2171 = vst.msk [vmem:[#allocation2 + $0x38] sm:$0xff] %vm569, %v2157
      %2172 = vst.msk [vmem:[#allocation2 + $0x40] sm:$0xff] %vm569, %v2158
      %2173 = vst.msk [vmem:[#allocation2 + $0x48] sm:$0xff] %vm569, %v2159
      %2174 = vst.msk [vmem:[#allocation2 + $0x50] sm:$0xff] %vm569, %v2160
      %2175 = vst.msk [vmem:[#allocation2 + $0x58] sm:$0xff] %vm569, %v2161
      %2176 = vst.msk [vmem:[#allocation2 + $0x60] sm:$0xff] %vm569, %v2162
      %2177 = vst.msk [vmem:[#allocation2 + $0x68] sm:$0xff] %vm569, %v2163
      %v2178 = vld [vmem:[%s305] sm:$0xf]
      %v2179 = vld [vmem:[%s305 + $0x4] sm:$0xf]
      %v2180 = vld [vmem:[%s305 + $0x8] sm:$0x1]
      %v2181 = vld [vmem:[#allocation2 + $0x70] sm:$0xff]
      %v2182 = vld [vmem:[#allocation2 + $0x78] sm:$0xff]
      %v2186 = vunpack.c.l.b16 %v2178
      %v2187 = vunpack.c.l.b16 %v2179
      %v2188 = vunpack.c.l.b16 %v2180
      %v2189 = vpack.c.b16 %v2187, %v2186
      %v2190 = vpack.c.b16 %v2188, %v2188
      %vm2191 = vsmask.f32 7424
      %v2193 = vshrl.u32 %v2189, 16
      %v2195 = vshll.u32 %v2189, 16
      %v2197 = vrot.slane %v2195, 1
      %v2198 = vor.u32 %v2193, %v2197
      %v2200 = vshll.u32 %v2190, 16
      %v2202 = vrot.slane %v2200, 1
      %v2203 = vsel %vm2191, %v2198, %v2202
      %v2205 = vsel %vm569, %v2203, 0
      %2207 = vmatprep.subr.bf16.mxu0 0
      %2208 = vmatpush1.bf16.msra.mxu0 0
      %2209 = vmatprep.subr.bf16.mxu0 0
      %2210 = vmatpush1.bf16.msra.mxu0 0
      %2211 = vmatprep.subr.bf16.mxu0 0
      %2212 = vmatpush1.bf16.msra.mxu0 0
      %2213 = vmatprep.subr.bf16.mxu0 0
      %2214 = vmatpush1.bf16.msra.mxu0 0
      %2215 = vmatprep.subr.bf16.mxu0 0
      %2216 = vmatpush1.bf16.msra.mxu0 0
      %2217 = vmatprep.subr.bf16.mxu0 0
      %2218 = vmatpush1.bf16.msra.mxu0 0
      %2219 = vmatprep.subr.bf16.mxu0 0
      %2220 = vmatpush1.bf16.msra.mxu0 0
      %2221 = vmatprep.subr.bf16.mxu0 0
      %2222 = vmatpush1.bf16.msra.mxu0 %v2059
      %2223 = vmatprep.subr.bf16.mxu0 0
      %2224 = vmatpush2.bf16.msra.mxu0 0
      %2225 = vmatprep.subr.bf16.mxu0 0
      %2226 = vmatpush2.bf16.msra.mxu0 0
      %2227 = vmatprep.subr.bf16.mxu0 0
      %2228 = vmatpush2.bf16.msra.mxu0 0
      %2229 = vmatprep.subr.bf16.mxu0 0
      %2230 = vmatpush2.bf16.msra.mxu0 0
      %2231 = vmatprep.subr.bf16.mxu0 0
      %2232 = vmatpush2.bf16.msra.mxu0 0
      %2233 = vmatprep.subr.bf16.mxu0 0
      %2234 = vmatpush2.bf16.msra.mxu0 0
      %2235 = vmatprep.subr.bf16.mxu0 0
      %2236 = vmatpush2.bf16.msra.mxu0 0
      %2237 = vmatprep.subr.bf16.mxu0 0
      %2238 = vmatpush2.bf16.msra.mxu0 0
      %2239 = vmatprep.mubr.bf16.mxu0 0
      %2240 = vmatmul.mubr.bf16.gmra.mxu0 %v2205
      %v2241 = vpop.f32.mrf.mxu0
      %v2242 = vadd.f32 0.0, %v2241
      %v2243 = vpop.f32.mrf.mxu0
      %v2244 = vpop.f32.mrf.mxu0
      %v2245 = vadd.f32 0.0, %v2244
      %v2246 = vpop.f32.mrf.mxu0
      %2247 = vdwg.mxu0
      %v2248 = vadd.f32 %v2181, %v2242
      %v2249 = vadd.f32 %v2182, %v2245
      %2250 = vst.msk [vmem:[#allocation2 + $0x70] sm:$0xff] %vm569, %v2248
      %2251 = vst.msk [vmem:[#allocation2 + $0x78] sm:$0xff] %vm569, %v2249
      %s2252 = scalar_lea.vmem %s2, 20
      %v2253 = vld [vmem:[%s2252] sm:$0xf]
      %v2254 = vld [vmem:[%s321] sm:$0xe]
      %v2255 = vld [vmem:[%s321 + $0x4] sm:$0xf]
      %v2256 = vld [vmem:[%s321 + $0x8] sm:$0x1]
      %v2257 = vld [vmem:[%s321 + $0xc] sm:$0xe]
      %v2258 = vld [vmem:[%s321 + $0x10] sm:$0xf]
      %v2259 = vld [vmem:[%s321 + $0x14] sm:$0x1]
      %v2260 = vld [vmem:[%s321 + $0x18] sm:$0xe]
      %v2261 = vld [vmem:[%s321 + $0x1c] sm:$0xf]
      %v2262 = vld [vmem:[%s321 + $0x20] sm:$0x1]
      %v2263 = vld [vmem:[%s321 + $0x24] sm:$0xe]
      %v2264 = vld [vmem:[%s321 + $0x28] sm:$0xf]
      %v2265 = vld [vmem:[%s321 + $0x2c] sm:$0x1]
      %v2266 = vld [vmem:[%s321 + $0x30] sm:$0xe]
      %v2267 = vld [vmem:[%s321 + $0x34] sm:$0xf]
      %v2268 = vld [vmem:[%s321 + $0x38] sm:$0x1]
      %v2269 = vld [vmem:[%s321 + $0x3c] sm:$0xe]
      %v2270 = vld [vmem:[%s321 + $0x40] sm:$0xf]
      %v2271 = vld [vmem:[%s321 + $0x44] sm:$0x1]
      %v2272 = vld [vmem:[%s321 + $0x48] sm:$0xe]
      %v2273 = vld [vmem:[%s321 + $0x4c] sm:$0xf]
      %v2274 = vld [vmem:[%s321 + $0x50] sm:$0x1]
      %v2296 = vrot.slane %v2254, 5
      %v2297 = vrot.slane %v2296, 4
      %v2298 = vrot.slane %v2255, 5
      %v2299 = vsel %vm1295, %v2297, %v2298
      %v2300 = vrot.slane %v2298, 4
      %v2301 = vrot.slane %v2256, 5
      %v2302 = vsel %vm1295, %v2300, %v2301
      %v2303 = vrot.slane %v2257, 5
      %v2304 = vrot.slane %v2303, 4
      %v2305 = vrot.slane %v2258, 5
      %v2306 = vsel %vm1295, %v2304, %v2305
      %v2307 = vrot.slane %v2305, 4
      %v2308 = vrot.slane %v2259, 5
      %v2309 = vsel %vm1295, %v2307, %v2308
      %v2310 = vrot.slane %v2260, 5
      %v2311 = vrot.slane %v2310, 4
      %v2312 = vrot.slane %v2261, 5
      %v2313 = vsel %vm1295, %v2311, %v2312
      %v2314 = vrot.slane %v2312, 4
      %v2315 = vrot.slane %v2262, 5
      %v2316 = vsel %vm1295, %v2314, %v2315
      %v2317 = vrot.slane %v2263, 5
      %v2318 = vrot.slane %v2317, 4
      %v2319 = vrot.slane %v2264, 5
      %v2320 = vsel %vm1295, %v2318, %v2319
      %v2321 = vrot.slane %v2319, 4
      %v2322 = vrot.slane %v2265, 5
      %v2323 = vsel %vm1295, %v2321, %v2322
      %v2324 = vrot.slane %v2266, 5
      %v2325 = vrot.slane %v2324, 4
      %v2326 = vrot.slane %v2267, 5
      %v2327 = vsel %vm1295, %v2325, %v2326
      %v2328 = vrot.slane %v2326, 4
      %v2329 = vrot.slane %v2268, 5
      %v2330 = vsel %vm1295, %v2328, %v2329
      %v2331 = vrot.slane %v2269, 5
      %v2332 = vrot.slane %v2331, 4
      %v2333 = vrot.slane %v2270, 5
      %v2334 = vsel %vm1295, %v2332, %v2333
      %v2335 = vrot.slane %v2333, 4
      %v2336 = vrot.slane %v2271, 5
      %v2337 = vsel %vm1295, %v2335, %v2336
      %v2338 = vrot.slane %v2272, 5
      %v2339 = vrot.slane %v2338, 4
      %v2340 = vrot.slane %v2273, 5
      %v2341 = vsel %vm1295, %v2339, %v2340
      %v2342 = vrot.slane %v2340, 4
      %v2343 = vrot.slane %v2274, 5
      %v2344 = vsel %vm1295, %v2342, %v2343
      %v2345 = vld [vmem:[#allocation2] sm:$0xff]
      %v2346 = vld [vmem:[#allocation2 + $0x8] sm:$0xff]
      %v2347 = vld [vmem:[#allocation2 + $0x10] sm:$0xff]
      %v2348 = vld [vmem:[#allocation2 + $0x18] sm:$0xff]
      %v2349 = vld [vmem:[#allocation2 + $0x20] sm:$0xff]
      %v2350 = vld [vmem:[#allocation2 + $0x28] sm:$0xff]
      %v2351 = vld [vmem:[#allocation2 + $0x30] sm:$0xff]
      %v2352 = vld [vmem:[#allocation2 + $0x38] sm:$0xff]
      %v2353 = vld [vmem:[#allocation2 + $0x40] sm:$0xff]
      %v2354 = vld [vmem:[#allocation2 + $0x48] sm:$0xff]
      %v2355 = vld [vmem:[#allocation2 + $0x50] sm:$0xff]
      %v2356 = vld [vmem:[#allocation2 + $0x58] sm:$0xff]
      %v2357 = vld [vmem:[#allocation2 + $0x60] sm:$0xff]
      %v2358 = vld [vmem:[#allocation2 + $0x68] sm:$0xff]
      %v2359 = vunpack.c.l.b16 %v2299
      %v2360 = vunpack.c.l.b16 %v2302
      %v2361 = vunpack.c.l.b16 %v2306
      %v2362 = vunpack.c.l.b16 %v2309
      %v2363 = vunpack.c.l.b16 %v2313
      %v2364 = vunpack.c.l.b16 %v2316
      %v2365 = vunpack.c.l.b16 %v2320
      %v2366 = vunpack.c.l.b16 %v2323
      %v2367 = vunpack.c.l.b16 %v2327
      %v2368 = vunpack.c.l.b16 %v2330
      %v2369 = vunpack.c.l.b16 %v2334
      %v2370 = vunpack.c.l.b16 %v2337
      %v2371 = vunpack.c.l.b16 %v2341
      %v2372 = vunpack.c.l.b16 %v2344
      %v2373 = vpack.c.b16 %v2360, %v2359
      %v2374 = vpack.c.b16 %v2362, %v2361
      %v2375 = vpack.c.b16 %v2364, %v2363
      %v2376 = vpack.c.b16 %v2366, %v2365
      %v2377 = vpack.c.b16 %v2368, %v2367
      %v2378 = vpack.c.b16 %v2370, %v2369
      %v2379 = vpack.c.b16 %v2372, %v2371
      %v2381 = vsel %vm569, %v2373, 0
      %v2384 = vsel %vm569, %v2374, 0
      %v2387 = vsel %vm569, %v2375, 0
      %v2390 = vsel %vm569, %v2376, 0
      %v2393 = vsel %vm569, %v2377, 0
      %v2396 = vsel %vm569, %v2378, 0
      %v2399 = vsel %vm569, %v2379, 0
      %v2402 = vsel %vm696, %v2253, 0
      %2404 = vmatprep.subr.bf16.mxu0 0
      %2405 = vmatpush1.bf16.msra.mxu0 0
      %2406 = vmatprep.subr.bf16.mxu0 0
      %2407 = vmatpush1.bf16.msra.mxu0 0
      %2408 = vmatprep.subr.bf16.mxu0 0
      %2409 = vmatpush1.bf16.msra.mxu0 0
      %2410 = vmatprep.subr.bf16.mxu0 0
      %2411 = vmatpush1.bf16.msra.mxu0 0
      %2412 = vmatprep.subr.bf16.mxu0 0
      %2413 = vmatpush1.bf16.msra.mxu0 0
      %2414 = vmatprep.subr.bf16.mxu0 0
      %2415 = vmatpush1.bf16.msra.mxu0 0
      %2416 = vmatprep.subr.bf16.mxu0 0
      %2417 = vmatpush1.bf16.msra.mxu0 0
      %2418 = vmatprep.subr.bf16.mxu0 0
      %2419 = vmatpush1.bf16.msra.mxu0 %v2402
      %2420 = vmatprep.subr.bf16.mxu0 0
      %2421 = vmatpush2.bf16.msra.mxu0 0
      %2422 = vmatprep.subr.bf16.mxu0 0
      %2423 = vmatpush2.bf16.msra.mxu0 0
      %2424 = vmatprep.subr.bf16.mxu0 0
      %2425 = vmatpush2.bf16.msra.mxu0 0
      %2426 = vmatprep.subr.bf16.mxu0 0
      %2427 = vmatpush2.bf16.msra.mxu0 0
      %2428 = vmatprep.subr.bf16.mxu0 0
      %2429 = vmatpush2.bf16.msra.mxu0 0
      %2430 = vmatprep.subr.bf16.mxu0 0
      %2431 = vmatpush2.bf16.msra.mxu0 0
      %2432 = vmatprep.subr.bf16.mxu0 0
      %2433 = vmatpush2.bf16.msra.mxu0 0
      %2434 = vmatprep.subr.bf16.mxu0 0
      %2435 = vmatpush2.bf16.msra.mxu0 0
      %2436 = vmatprep.mubr.bf16.mxu0 0
      %2437 = vmatmul.mubr.bf16.gmra.mxu0 %v2381
      %v2438 = vpop.f32.mrf.mxu0
      %v2439 = vadd.f32 0.0, %v2438
      %v2440 = vpop.f32.mrf.mxu0
      %v2441 = vpop.f32.mrf.mxu0
      %v2442 = vadd.f32 0.0, %v2441
      %v2443 = vpop.f32.mrf.mxu0
      %2444 = vmatprep.mubr.bf16.mxu0 0
      %2445 = vmatmul.mubr.bf16.gmra.mxu0 %v2384
      %v2446 = vpop.f32.mrf.mxu0
      %v2447 = vadd.f32 0.0, %v2446
      %v2448 = vpop.f32.mrf.mxu0
      %v2449 = vpop.f32.mrf.mxu0
      %v2450 = vadd.f32 0.0, %v2449
      %v2451 = vpop.f32.mrf.mxu0
      %2452 = vmatprep.mubr.bf16.mxu0 0
      %2453 = vmatmul.mubr.bf16.gmra.mxu0 %v2387
      %v2454 = vpop.f32.mrf.mxu0
      %v2455 = vadd.f32 0.0, %v2454
      %v2456 = vpop.f32.mrf.mxu0
      %v2457 = vpop.f32.mrf.mxu0
      %v2458 = vadd.f32 0.0, %v2457
      %v2459 = vpop.f32.mrf.mxu0
      %2460 = vmatprep.mubr.bf16.mxu0 0
      %2461 = vmatmul.mubr.bf16.gmra.mxu0 %v2390
      %v2462 = vpop.f32.mrf.mxu0
      %v2463 = vadd.f32 0.0, %v2462
      %v2464 = vpop.f32.mrf.mxu0
      %v2465 = vpop.f32.mrf.mxu0
      %v2466 = vadd.f32 0.0, %v2465
      %v2467 = vpop.f32.mrf.mxu0
      %2468 = vmatprep.mubr.bf16.mxu0 0
      %2469 = vmatmul.mubr.bf16.gmra.mxu0 %v2393
      %v2470 = vpop.f32.mrf.mxu0
      %v2471 = vadd.f32 0.0, %v2470
      %v2472 = vpop.f32.mrf.mxu0
      %v2473 = vpop.f32.mrf.mxu0
      %v2474 = vadd.f32 0.0, %v2473
      %v2475 = vpop.f32.mrf.mxu0
      %2476 = vmatprep.mubr.bf16.mxu0 0
      %2477 = vmatmul.mubr.bf16.gmra.mxu0 %v2396
      %v2478 = vpop.f32.mrf.mxu0
      %v2479 = vadd.f32 0.0, %v2478
      %v2480 = vpop.f32.mrf.mxu0
      %v2481 = vpop.f32.mrf.mxu0
      %v2482 = vadd.f32 0.0, %v2481
      %v2483 = vpop.f32.mrf.mxu0
      %2484 = vmatprep.mubr.bf16.mxu0 0
      %2485 = vmatmul.mubr.bf16.gmra.mxu0 %v2399
      %v2486 = vpop.f32.mrf.mxu0
      %v2487 = vadd.f32 0.0, %v2486
      %v2488 = vpop.f32.mrf.mxu0
      %v2489 = vpop.f32.mrf.mxu0
      %v2490 = vadd.f32 0.0, %v2489
      %v2491 = vpop.f32.mrf.mxu0
      %2492 = vdwg.mxu0
      %v2493 = vadd.f32 %v2345, %v2439
      %v2494 = vadd.f32 %v2346, %v2442
      %v2495 = vadd.f32 %v2347, %v2447
      %v2496 = vadd.f32 %v2348, %v2450
      %v2497 = vadd.f32 %v2349, %v2455
      %v2498 = vadd.f32 %v2350, %v2458
      %v2499 = vadd.f32 %v2351, %v2463
      %v2500 = vadd.f32 %v2352, %v2466
      %v2501 = vadd.f32 %v2353, %v2471
      %v2502 = vadd.f32 %v2354, %v2474
      %v2503 = vadd.f32 %v2355, %v2479
      %v2504 = vadd.f32 %v2356, %v2482
      %v2505 = vadd.f32 %v2357, %v2487
      %v2506 = vadd.f32 %v2358, %v2490
      %2507 = vst.msk [vmem:[#allocation2] sm:$0xff] %vm569, %v2493
      %2508 = vst.msk [vmem:[#allocation2 + $0x8] sm:$0xff] %vm569, %v2494
      %2509 = vst.msk [vmem:[#allocation2 + $0x10] sm:$0xff] %vm569, %v2495
      %2510 = vst.msk [vmem:[#allocation2 + $0x18] sm:$0xff] %vm569, %v2496
      %2511 = vst.msk [vmem:[#allocation2 + $0x20] sm:$0xff] %vm569, %v2497
      %2512 = vst.msk [vmem:[#allocation2 + $0x28] sm:$0xff] %vm569, %v2498
      %2513 = vst.msk [vmem:[#allocation2 + $0x30] sm:$0xff] %vm569, %v2499
      %2514 = vst.msk [vmem:[#allocation2 + $0x38] sm:$0xff] %vm569, %v2500
      %2515 = vst.msk [vmem:[#allocation2 + $0x40] sm:$0xff] %vm569, %v2501
      %2516 = vst.msk [vmem:[#allocation2 + $0x48] sm:$0xff] %vm569, %v2502
      %2517 = vst.msk [vmem:[#allocation2 + $0x50] sm:$0xff] %vm569, %v2503
      %2518 = vst.msk [vmem:[#allocation2 + $0x58] sm:$0xff] %vm569, %v2504
      %2519 = vst.msk [vmem:[#allocation2 + $0x60] sm:$0xff] %vm569, %v2505
      %2520 = vst.msk [vmem:[#allocation2 + $0x68] sm:$0xff] %vm569, %v2506
      %v2521 = vld [vmem:[%s305] sm:$0xe]
      %v2522 = vld [vmem:[%s305 + $0x4] sm:$0xf]
      %v2523 = vld [vmem:[%s305 + $0x8] sm:$0x1]
      %v2524 = vld [vmem:[#allocation2 + $0x70] sm:$0xff]
      %v2525 = vld [vmem:[#allocation2 + $0x78] sm:$0xff]
      %v2529 = vunpack.c.l.b16 %v2521
      %v2530 = vunpack.c.l.b16 %v2522
      %v2531 = vunpack.c.l.b16 %v2523
      %v2532 = vpack.c.b16 %v2530, %v2529
      %v2533 = vpack.c.b16 %v2531, %v2531
      %vm2534 = vcmask 1046528
      %v2535 = vrot.slane %v2532, 1
      %v2536 = vrot.slane %v2533, 1
      %v2537 = vsel %vm2534, %v2535, %v2536
      %v2539 = vsel %vm569, %v2537, 0
      %2541 = vmatprep.subr.bf16.mxu0 0
      %2542 = vmatpush1.bf16.msra.mxu0 0
      %2543 = vmatprep.subr.bf16.mxu0 0
      %2544 = vmatpush1.bf16.msra.mxu0 0
      %2545 = vmatprep.subr.bf16.mxu0 0
      %2546 = vmatpush1.bf16.msra.mxu0 0
      %2547 = vmatprep.subr.bf16.mxu0 0
      %2548 = vmatpush1.bf16.msra.mxu0 0
      %2549 = vmatprep.subr.bf16.mxu0 0
      %2550 = vmatpush1.bf16.msra.mxu0 0
      %2551 = vmatprep.subr.bf16.mxu0 0
      %2552 = vmatpush1.bf16.msra.mxu0 0
      %2553 = vmatprep.subr.bf16.mxu0 0
      %2554 = vmatpush1.bf16.msra.mxu0 0
      %2555 = vmatprep.subr.bf16.mxu0 0
      %2556 = vmatpush1.bf16.msra.mxu0 %v2402
      %2557 = vmatprep.subr.bf16.mxu0 0
      %2558 = vmatpush2.bf16.msra.mxu0 0
      %2559 = vmatprep.subr.bf16.mxu0 0
      %2560 = vmatpush2.bf16.msra.mxu0 0
      %2561 = vmatprep.subr.bf16.mxu0 0
      %2562 = vmatpush2.bf16.msra.mxu0 0
      %2563 = vmatprep.subr.bf16.mxu0 0
      %2564 = vmatpush2.bf16.msra.mxu0 0
      %2565 = vmatprep.subr.bf16.mxu0 0
      %2566 = vmatpush2.bf16.msra.mxu0 0
      %2567 = vmatprep.subr.bf16.mxu0 0
      %2568 = vmatpush2.bf16.msra.mxu0 0
      %2569 = vmatprep.subr.bf16.mxu0 0
      %2570 = vmatpush2.bf16.msra.mxu0 0
      %2571 = vmatprep.subr.bf16.mxu0 0
      %2572 = vmatpush2.bf16.msra.mxu0 0
      %2573 = vmatprep.mubr.bf16.mxu0 0
      %2574 = vmatmul.mubr.bf16.gmra.mxu0 %v2539
      %v2575 = vpop.f32.mrf.mxu0
      %v2576 = vadd.f32 0.0, %v2575
      %v2577 = vpop.f32.mrf.mxu0
      %v2578 = vpop.f32.mrf.mxu0
      %v2579 = vadd.f32 0.0, %v2578
      %v2580 = vpop.f32.mrf.mxu0
      %2581 = vdwg.mxu0
      %v2582 = vadd.f32 %v2524, %v2576
      %v2583 = vadd.f32 %v2525, %v2579
      %2584 = vst.msk [vmem:[#allocation2 + $0x70] sm:$0xff] %vm569, %v2582
      %2585 = vst.msk [vmem:[#allocation2 + $0x78] sm:$0xff] %vm569, %v2583
      %s2586 = scalar_lea.vmem %s2, 24
      %v2587 = vld [vmem:[%s2586] sm:$0xf]
      %s2588 = scalar_lea.vmem %s287, 24
      %v2589 = vld [vmem:[%s2588] sm:$0xf]
      %v2590 = vld [vmem:[%s2588 + $0x4] sm:$0xf]
      %v2591 = vld [vmem:[%s2588 + $0xc] sm:$0xf]
      %v2592 = vld [vmem:[%s2588 + $0x10] sm:$0xf]
      %v2593 = vld [vmem:[%s2588 + $0x18] sm:$0xf]
      %v2594 = vld [vmem:[%s2588 + $0x1c] sm:$0xf]
      %v2595 = vld [vmem:[%s2588 + $0x24] sm:$0xf]
      %v2596 = vld [vmem:[%s2588 + $0x28] sm:$0xf]
      %v2597 = vld [vmem:[%s2588 + $0x30] sm:$0xf]
      %v2598 = vld [vmem:[%s2588 + $0x34] sm:$0xf]
      %v2599 = vld [vmem:[%s2588 + $0x3c] sm:$0xf]
      %v2600 = vld [vmem:[%s2588 + $0x40] sm:$0xf]
      %v2601 = vld [vmem:[#allocation2] sm:$0xff]
      %v2602 = vld [vmem:[#allocation2 + $0x8] sm:$0xff]
      %v2603 = vld [vmem:[#allocation2 + $0x10] sm:$0xff]
      %v2604 = vld [vmem:[#allocation2 + $0x18] sm:$0xff]
      %v2605 = vld [vmem:[#allocation2 + $0x20] sm:$0xff]
      %v2606 = vld [vmem:[#allocation2 + $0x28] sm:$0xff]
      %v2607 = vld [vmem:[#allocation2 + $0x30] sm:$0xff]
      %v2608 = vld [vmem:[#allocation2 + $0x38] sm:$0xff]
      %v2609 = vld [vmem:[#allocation2 + $0x40] sm:$0xff]
      %v2610 = vld [vmem:[#allocation2 + $0x48] sm:$0xff]
      %v2611 = vld [vmem:[#allocation2 + $0x50] sm:$0xff]
      %v2612 = vld [vmem:[#allocation2 + $0x58] sm:$0xff]
      %v2625 = vunpack.c.l.b16 %v2589
      %v2626 = vunpack.c.l.b16 %v2590
      %v2627 = vunpack.c.l.b16 %v2591
      %v2628 = vunpack.c.l.b16 %v2592
      %v2629 = vunpack.c.l.b16 %v2593
      %v2630 = vunpack.c.l.b16 %v2594
      %v2631 = vunpack.c.l.b16 %v2595
      %v2632 = vunpack.c.l.b16 %v2596
      %v2633 = vunpack.c.l.b16 %v2597
      %v2634 = vunpack.c.l.b16 %v2598
      %v2635 = vunpack.c.l.b16 %v2599
      %v2636 = vunpack.c.l.b16 %v2600
      %v2637 = vpack.c.b16 %v2626, %v2625
      %v2638 = vpack.c.b16 %v2628, %v2627
      %v2639 = vpack.c.b16 %v2630, %v2629
      %v2640 = vpack.c.b16 %v2632, %v2631
      %v2641 = vpack.c.b16 %v2634, %v2633
      %v2642 = vpack.c.b16 %v2636, %v2635
      %v2644 = vsel %vm569, %v2637, 0
      %v2647 = vsel %vm569, %v2638, 0
      %v2650 = vsel %vm569, %v2639, 0
      %v2653 = vsel %vm569, %v2640, 0
      %v2656 = vsel %vm569, %v2641, 0
      %v2659 = vsel %vm569, %v2642, 0
      %v2662 = vsel %vm696, %v2587, 0
      %2664 = vmatprep.subr.bf16.mxu0 0
      %2665 = vmatpush1.bf16.msra.mxu0 0
      %2666 = vmatprep.subr.bf16.mxu0 0
      %2667 = vmatpush1.bf16.msra.mxu0 0
      %2668 = vmatprep.subr.bf16.mxu0 0
      %2669 = vmatpush1.bf16.msra.mxu0 0
      %2670 = vmatprep.subr.bf16.mxu0 0
      %2671 = vmatpush1.bf16.msra.mxu0 0
      %2672 = vmatprep.subr.bf16.mxu0 0
      %2673 = vmatpush1.bf16.msra.mxu0 0
      %2674 = vmatprep.subr.bf16.mxu0 0
      %2675 = vmatpush1.bf16.msra.mxu0 0
      %2676 = vmatprep.subr.bf16.mxu0 0
      %2677 = vmatpush1.bf16.msra.mxu0 0
      %2678 = vmatprep.subr.bf16.mxu0 0
      %2679 = vmatpush1.bf16.msra.mxu0 %v2662
      %2680 = vmatprep.subr.bf16.mxu0 0
      %2681 = vmatpush2.bf16.msra.mxu0 0
      %2682 = vmatprep.subr.bf16.mxu0 0
      %2683 = vmatpush2.bf16.msra.mxu0 0
      %2684 = vmatprep.subr.bf16.mxu0 0
      %2685 = vmatpush2.bf16.msra.mxu0 0
      %2686 = vmatprep.subr.bf16.mxu0 0
      %2687 = vmatpush2.bf16.msra.mxu0 0
      %2688 = vmatprep.subr.bf16.mxu0 0
      %2689 = vmatpush2.bf16.msra.mxu0 0
      %2690 = vmatprep.subr.bf16.mxu0 0
      %2691 = vmatpush2.bf16.msra.mxu0 0
      %2692 = vmatprep.subr.bf16.mxu0 0
      %2693 = vmatpush2.bf16.msra.mxu0 0
      %2694 = vmatprep.subr.bf16.mxu0 0
      %2695 = vmatpush2.bf16.msra.mxu0 0
      %2696 = vmatprep.mubr.bf16.mxu0 0
      %2697 = vmatmul.mubr.bf16.gmra.mxu0 %v2644
      %v2698 = vpop.f32.mrf.mxu0
      %v2699 = vadd.f32 0.0, %v2698
      %v2700 = vpop.f32.mrf.mxu0
      %v2701 = vpop.f32.mrf.mxu0
      %v2702 = vadd.f32 0.0, %v2701
      %v2703 = vpop.f32.mrf.mxu0
      %2704 = vmatprep.mubr.bf16.mxu0 0
      %2705 = vmatmul.mubr.bf16.gmra.mxu0 %v2647
      %v2706 = vpop.f32.mrf.mxu0
      %v2707 = vadd.f32 0.0, %v2706
      %v2708 = vpop.f32.mrf.mxu0
      %v2709 = vpop.f32.mrf.mxu0
      %v2710 = vadd.f32 0.0, %v2709
      %v2711 = vpop.f32.mrf.mxu0
      %2712 = vmatprep.mubr.bf16.mxu0 0
      %2713 = vmatmul.mubr.bf16.gmra.mxu0 %v2650
      %v2714 = vpop.f32.mrf.mxu0
      %v2715 = vadd.f32 0.0, %v2714
      %v2716 = vpop.f32.mrf.mxu0
      %v2717 = vpop.f32.mrf.mxu0
      %v2718 = vadd.f32 0.0, %v2717
      %v2719 = vpop.f32.mrf.mxu0
      %2720 = vmatprep.mubr.bf16.mxu0 0
      %2721 = vmatmul.mubr.bf16.gmra.mxu0 %v2653
      %v2722 = vpop.f32.mrf.mxu0
      %v2723 = vadd.f32 0.0, %v2722
      %v2724 = vpop.f32.mrf.mxu0
      %v2725 = vpop.f32.mrf.mxu0
      %v2726 = vadd.f32 0.0, %v2725
      %v2727 = vpop.f32.mrf.mxu0
      %2728 = vmatprep.mubr.bf16.mxu0 0
      %2729 = vmatmul.mubr.bf16.gmra.mxu0 %v2656
      %v2730 = vpop.f32.mrf.mxu0
      %v2731 = vadd.f32 0.0, %v2730
      %v2732 = vpop.f32.mrf.mxu0
      %v2733 = vpop.f32.mrf.mxu0
      %v2734 = vadd.f32 0.0, %v2733
      %v2735 = vpop.f32.mrf.mxu0
      %2736 = vmatprep.mubr.bf16.mxu0 0
      %2737 = vmatmul.mubr.bf16.gmra.mxu0 %v2659
      %v2738 = vpop.f32.mrf.mxu0
      %v2739 = vadd.f32 0.0, %v2738
      %v2740 = vpop.f32.mrf.mxu0
      %v2741 = vpop.f32.mrf.mxu0
      %v2742 = vadd.f32 0.0, %v2741
      %v2743 = vpop.f32.mrf.mxu0
      %2744 = vdwg.mxu0
      %v2745 = vadd.f32 %v2601, %v2699
      %v2746 = vadd.f32 %v2602, %v2702
      %v2747 = vadd.f32 %v2603, %v2707
      %v2748 = vadd.f32 %v2604, %v2710
      %v2749 = vadd.f32 %v2605, %v2715
      %v2750 = vadd.f32 %v2606, %v2718
      %v2751 = vadd.f32 %v2607, %v2723
      %v2752 = vadd.f32 %v2608, %v2726
      %v2753 = vadd.f32 %v2609, %v2731
      %v2754 = vadd.f32 %v2610, %v2734
      %v2755 = vadd.f32 %v2611, %v2739
      %v2756 = vadd.f32 %v2612, %v2742
      %2757 = vst.msk [vmem:[#allocation2] sm:$0xff] %vm569, %v2745
      %2758 = vst.msk [vmem:[#allocation2 + $0x8] sm:$0xff] %vm569, %v2746
      %2759 = vst.msk [vmem:[#allocation2 + $0x10] sm:$0xff] %vm569, %v2747
      %2760 = vst.msk [vmem:[#allocation2 + $0x18] sm:$0xff] %vm569, %v2748
      %2761 = vst.msk [vmem:[#allocation2 + $0x20] sm:$0xff] %vm569, %v2749
      %2762 = vst.msk [vmem:[#allocation2 + $0x28] sm:$0xff] %vm569, %v2750
      %2763 = vst.msk [vmem:[#allocation2 + $0x30] sm:$0xff] %vm569, %v2751
      %2764 = vst.msk [vmem:[#allocation2 + $0x38] sm:$0xff] %vm569, %v2752
      %2765 = vst.msk [vmem:[#allocation2 + $0x40] sm:$0xff] %vm569, %v2753
      %2766 = vst.msk [vmem:[#allocation2 + $0x48] sm:$0xff] %vm569, %v2754
      %2767 = vst.msk [vmem:[#allocation2 + $0x50] sm:$0xff] %vm569, %v2755
      %2768 = vst.msk [vmem:[#allocation2 + $0x58] sm:$0xff] %vm569, %v2756
      %v2769 = vld [vmem:[%s305] sm:$0xf]
      %v2770 = vld [vmem:[%s305 + $0x4] sm:$0xf]
      %v2771 = vld [vmem:[%s305 + $0xc] sm:$0xf]
      %v2772 = vld [vmem:[%s305 + $0x10] sm:$0xf]
      %v2773 = vld [vmem:[#allocation2 + $0x60] sm:$0xff]
      %v2774 = vld [vmem:[#allocation2 + $0x68] sm:$0xff]
      %v2775 = vld [vmem:[#allocation2 + $0x70] sm:$0xff]
      %v2776 = vld [vmem:[#allocation2 + $0x78] sm:$0xff]
      %v2781 = vunpack.c.l.b16 %v2769
      %v2782 = vunpack.c.l.b16 %v2770
      %v2783 = vunpack.c.l.b16 %v2771
      %v2784 = vunpack.c.l.b16 %v2772
      %v2785 = vpack.c.b16 %v2782, %v2781
      %v2786 = vpack.c.b16 %v2784, %v2783
      %v2788 = vsel %vm569, %v2785, 0
      %v2791 = vsel %vm569, %v2786, 0
      %2793 = vmatprep.subr.bf16.mxu0 0
      %2794 = vmatpush1.bf16.msra.mxu0 0
      %2795 = vmatprep.subr.bf16.mxu0 0
      %2796 = vmatpush1.bf16.msra.mxu0 0
      %2797 = vmatprep.subr.bf16.mxu0 0
      %2798 = vmatpush1.bf16.msra.mxu0 0
      %2799 = vmatprep.subr.bf16.mxu0 0
      %2800 = vmatpush1.bf16.msra.mxu0 0
      %2801 = vmatprep.subr.bf16.mxu0 0
      %2802 = vmatpush1.bf16.msra.mxu0 0
      %2803 = vmatprep.subr.bf16.mxu0 0
      %2804 = vmatpush1.bf16.msra.mxu0 0
      %2805 = vmatprep.subr.bf16.mxu0 0
      %2806 = vmatpush1.bf16.msra.mxu0 0
      %2807 = vmatprep.subr.bf16.mxu0 0
      %2808 = vmatpush1.bf16.msra.mxu0 %v2662
      %2809 = vmatprep.subr.bf16.mxu0 0
      %2810 = vmatpush2.bf16.msra.mxu0 0
      %2811 = vmatprep.subr.bf16.mxu0 0
      %2812 = vmatpush2.bf16.msra.mxu0 0
      %2813 = vmatprep.subr.bf16.mxu0 0
      %2814 = vmatpush2.bf16.msra.mxu0 0
      %2815 = vmatprep.subr.bf16.mxu0 0
      %2816 = vmatpush2.bf16.msra.mxu0 0
      %2817 = vmatprep.subr.bf16.mxu0 0
      %2818 = vmatpush2.bf16.msra.mxu0 0
      %2819 = vmatprep.subr.bf16.mxu0 0
      %2820 = vmatpush2.bf16.msra.mxu0 0
      %2821 = vmatprep.subr.bf16.mxu0 0
      %2822 = vmatpush2.bf16.msra.mxu0 0
      %2823 = vmatprep.subr.bf16.mxu0 0
      %2824 = vmatpush2.bf16.msra.mxu0 0
      %2825 = vmatprep.mubr.bf16.mxu0 0
      %2826 = vmatmul.mubr.bf16.gmra.mxu0 %v2788
      %v2827 = vpop.f32.mrf.mxu0
      %v2828 = vadd.f32 0.0, %v2827
      %v2829 = vpop.f32.mrf.mxu0
      %v2830 = vpop.f32.mrf.mxu0
      %v2831 = vadd.f32 0.0, %v2830
      %v2832 = vpop.f32.mrf.mxu0
      %2833 = vmatprep.mubr.bf16.mxu0 0
      %2834 = vmatmul.mubr.bf16.gmra.mxu0 %v2791
      %v2835 = vpop.f32.mrf.mxu0
      %v2836 = vadd.f32 0.0, %v2835
      %v2837 = vpop.f32.mrf.mxu0
      %v2838 = vpop.f32.mrf.mxu0
      %v2839 = vadd.f32 0.0, %v2838
      %v2840 = vpop.f32.mrf.mxu0
      %2841 = vdwg.mxu0
      %v2842 = vadd.f32 %v2773, %v2828
      %v2843 = vadd.f32 %v2774, %v2831
      %v2844 = vadd.f32 %v2775, %v2836
      %v2845 = vadd.f32 %v2776, %v2839
      %2846 = vst.msk [vmem:[#allocation2 + $0x60] sm:$0xff] %vm569, %v2842
      %2847 = vst.msk [vmem:[#allocation2 + $0x68] sm:$0xff] %vm569, %v2843
      %2848 = vst.msk [vmem:[#allocation2 + $0x70] sm:$0xff] %vm569, %v2844
      %2849 = vst.msk [vmem:[#allocation2 + $0x78] sm:$0xff] %vm569, %v2845
      %s2850 = scalar_lea.vmem %s2, 28
      %v2851 = vld [vmem:[%s2850] sm:$0xf]
      %v2852 = vld [vmem:[%s2588] sm:$0xf]
      %v2853 = vld [vmem:[%s2588 + $0x4] sm:$0xf]
      %v2854 = vld [vmem:[%s2588 + $0x8] sm:$0x1]
      %v2855 = vld [vmem:[%s2588 + $0xc] sm:$0xf]
      %v2856 = vld [vmem:[%s2588 + $0x10] sm:$0xf]
      %v2857 = vld [vmem:[%s2588 + $0x14] sm:$0x1]
      %v2858 = vld [vmem:[%s2588 + $0x18] sm:$0xf]
      %v2859 = vld [vmem:[%s2588 + $0x1c] sm:$0xf]
      %v2860 = vld [vmem:[%s2588 + $0x20] sm:$0x1]
      %v2861 = vld [vmem:[%s2588 + $0x24] sm:$0xf]
      %v2862 = vld [vmem:[%s2588 + $0x28] sm:$0xf]
      %v2863 = vld [vmem:[%s2588 + $0x2c] sm:$0x1]
      %v2864 = vld [vmem:[%s2588 + $0x30] sm:$0xf]
      %v2865 = vld [vmem:[%s2588 + $0x34] sm:$0xf]
      %v2866 = vld [vmem:[%s2588 + $0x38] sm:$0x1]
      %v2867 = vld [vmem:[%s2588 + $0x3c] sm:$0xf]
      %v2868 = vld [vmem:[%s2588 + $0x40] sm:$0xf]
      %v2869 = vld [vmem:[%s2588 + $0x44] sm:$0x1]
      %v2871 = vshrl.u32 %v2852, 16
      %v2873 = vrot.slane %v2871, 4
      %v2874 = vshll.u32 %v2852, 16
      %v2876 = vrot.slane %v2874, 5
      %v2877 = vor.u32 %v2873, %v2876
      %v2878 = vrot.slane %v2877, 4
      %v2880 = vshll.u32 %v2853, 16
      %v2882 = vrot.slane %v2880, 5
      %v2883 = vsel %vm345, %v2878, %v2882
      %v2884 = vshrl.u32 %v2853, 16
      %v2886 = vrot.slane %v2884, 4
      %v2887 = vor.u32 %v2886, %v2882
      %v2888 = vrot.slane %v2887, 4
      %v2890 = vshll.u32 %v2854, 16
      %v2892 = vrot.slane %v2890, 5
      %v2893 = vsel %vm345, %v2888, %v2892
      %v2895 = vshrl.u32 %v2855, 16
      %v2897 = vrot.slane %v2895, 4
      %v2898 = vshll.u32 %v2855, 16
      %v2900 = vrot.slane %v2898, 5
      %v2901 = vor.u32 %v2897, %v2900
      %v2902 = vrot.slane %v2901, 4
      %v2904 = vshll.u32 %v2856, 16
      %v2906 = vrot.slane %v2904, 5
      %v2907 = vsel %vm345, %v2902, %v2906
      %v2908 = vshrl.u32 %v2856, 16
      %v2910 = vrot.slane %v2908, 4
      %v2911 = vor.u32 %v2910, %v2906
      %v2912 = vrot.slane %v2911, 4
      %v2914 = vshll.u32 %v2857, 16
      %v2916 = vrot.slane %v2914, 5
      %v2917 = vsel %vm345, %v2912, %v2916
      %v2919 = vshrl.u32 %v2858, 16
      %v2921 = vrot.slane %v2919, 4
      %v2922 = vshll.u32 %v2858, 16
      %v2924 = vrot.slane %v2922, 5
      %v2925 = vor.u32 %v2921, %v2924
      %v2926 = vrot.slane %v2925, 4
      %v2928 = vshll.u32 %v2859, 16
      %v2930 = vrot.slane %v2928, 5
      %v2931 = vsel %vm345, %v2926, %v2930
      %v2932 = vshrl.u32 %v2859, 16
      %v2934 = vrot.slane %v2932, 4
      %v2935 = vor.u32 %v2934, %v2930
      %v2936 = vrot.slane %v2935, 4
      %v2938 = vshll.u32 %v2860, 16
      %v2940 = vrot.slane %v2938, 5
      %v2941 = vsel %vm345, %v2936, %v2940
      %v2943 = vshrl.u32 %v2861, 16
      %v2945 = vrot.slane %v2943, 4
      %v2946 = vshll.u32 %v2861, 16
      %v2948 = vrot.slane %v2946, 5
      %v2949 = vor.u32 %v2945, %v2948
      %v2950 = vrot.slane %v2949, 4
      %v2952 = vshll.u32 %v2862, 16
      %v2954 = vrot.slane %v2952, 5
      %v2955 = vsel %vm345, %v2950, %v2954
      %v2956 = vshrl.u32 %v2862, 16
      %v2958 = vrot.slane %v2956, 4
      %v2959 = vor.u32 %v2958, %v2954
      %v2960 = vrot.slane %v2959, 4
      %v2962 = vshll.u32 %v2863, 16
      %v2964 = vrot.slane %v2962, 5
      %v2965 = vsel %vm345, %v2960, %v2964
      %v2967 = vshrl.u32 %v2864, 16
      %v2969 = vrot.slane %v2967, 4
      %v2970 = vshll.u32 %v2864, 16
      %v2972 = vrot.slane %v2970, 5
      %v2973 = vor.u32 %v2969, %v2972
      %v2974 = vrot.slane %v2973, 4
      %v2976 = vshll.u32 %v2865, 16
      %v2978 = vrot.slane %v2976, 5
      %v2979 = vsel %vm345, %v2974, %v2978
      %v2980 = vshrl.u32 %v2865, 16
      %v2982 = vrot.slane %v2980, 4
      %v2983 = vor.u32 %v2982, %v2978
      %v2984 = vrot.slane %v2983, 4
      %v2986 = vshll.u32 %v2866, 16
      %v2988 = vrot.slane %v2986, 5
      %v2989 = vsel %vm345, %v2984, %v2988
      %v2991 = vshrl.u32 %v2867, 16
      %v2993 = vrot.slane %v2991, 4
      %v2994 = vshll.u32 %v2867, 16
      %v2996 = vrot.slane %v2994, 5
      %v2997 = vor.u32 %v2993, %v2996
      %v2998 = vrot.slane %v2997, 4
      %v3000 = vshll.u32 %v2868, 16
      %v3002 = vrot.slane %v3000, 5
      %v3003 = vsel %vm345, %v2998, %v3002
      %v3004 = vshrl.u32 %v2868, 16
      %v3006 = vrot.slane %v3004, 4
      %v3007 = vor.u32 %v3006, %v3002
      %v3008 = vrot.slane %v3007, 4
      %v3010 = vshll.u32 %v2869, 16
      %v3012 = vrot.slane %v3010, 5
      %v3013 = vsel %vm345, %v3008, %v3012
      %v3014 = vld [vmem:[#allocation2] sm:$0xff]
      %v3015 = vld [vmem:[#allocation2 + $0x8] sm:$0xff]
      %v3016 = vld [vmem:[#allocation2 + $0x10] sm:$0xff]
      %v3017 = vld [vmem:[#allocation2 + $0x18] sm:$0xff]
      %v3018 = vld [vmem:[#allocation2 + $0x20] sm:$0xff]
      %v3019 = vld [vmem:[#allocation2 + $0x28] sm:$0xff]
      %v3020 = vld [vmem:[#allocation2 + $0x30] sm:$0xff]
      %v3021 = vld [vmem:[#allocation2 + $0x38] sm:$0xff]
      %v3022 = vld [vmem:[#allocation2 + $0x40] sm:$0xff]
      %v3023 = vld [vmem:[#allocation2 + $0x48] sm:$0xff]
      %v3024 = vld [vmem:[#allocation2 + $0x50] sm:$0xff]
      %v3025 = vld [vmem:[#allocation2 + $0x58] sm:$0xff]
      %v3026 = vunpack.c.l.b16 %v2883
      %v3027 = vunpack.c.l.b16 %v2893
      %v3028 = vunpack.c.l.b16 %v2907
      %v3029 = vunpack.c.l.b16 %v2917
      %v3030 = vunpack.c.l.b16 %v2931
      %v3031 = vunpack.c.l.b16 %v2941
      %v3032 = vunpack.c.l.b16 %v2955
      %v3033 = vunpack.c.l.b16 %v2965
      %v3034 = vunpack.c.l.b16 %v2979
      %v3035 = vunpack.c.l.b16 %v2989
      %v3036 = vunpack.c.l.b16 %v3003
      %v3037 = vunpack.c.l.b16 %v3013
      %v3038 = vpack.c.b16 %v3027, %v3026
      %v3039 = vpack.c.b16 %v3029, %v3028
      %v3040 = vpack.c.b16 %v3031, %v3030
      %v3041 = vpack.c.b16 %v3033, %v3032
      %v3042 = vpack.c.b16 %v3035, %v3034
      %v3043 = vpack.c.b16 %v3037, %v3036
      %v3045 = vsel %vm569, %v3038, 0
      %v3048 = vsel %vm569, %v3039, 0
      %v3051 = vsel %vm569, %v3040, 0
      %v3054 = vsel %vm569, %v3041, 0
      %v3057 = vsel %vm569, %v3042, 0
      %v3060 = vsel %vm569, %v3043, 0
      %v3063 = vsel %vm696, %v2851, 0
      %3065 = vmatprep.subr.bf16.mxu0 0
      %3066 = vmatpush1.bf16.msra.mxu0 0
      %3067 = vmatprep.subr.bf16.mxu0 0
      %3068 = vmatpush1.bf16.msra.mxu0 0
      %3069 = vmatprep.subr.bf16.mxu0 0
      %3070 = vmatpush1.bf16.msra.mxu0 0
      %3071 = vmatprep.subr.bf16.mxu0 0
      %3072 = vmatpush1.bf16.msra.mxu0 0
      %3073 = vmatprep.subr.bf16.mxu0 0
      %3074 = vmatpush1.bf16.msra.mxu0 0
      %3075 = vmatprep.subr.bf16.mxu0 0
      %3076 = vmatpush1.bf16.msra.mxu0 0
      %3077 = vmatprep.subr.bf16.mxu0 0
      %3078 = vmatpush1.bf16.msra.mxu0 0
      %3079 = vmatprep.subr.bf16.mxu0 0
      %3080 = vmatpush1.bf16.msra.mxu0 %v3063
      %3081 = vmatprep.subr.bf16.mxu0 0
      %3082 = vmatpush2.bf16.msra.mxu0 0
      %3083 = vmatprep.subr.bf16.mxu0 0
      %3084 = vmatpush2.bf16.msra.mxu0 0
      %3085 = vmatprep.subr.bf16.mxu0 0
      %3086 = vmatpush2.bf16.msra.mxu0 0
      %3087 = vmatprep.subr.bf16.mxu0 0
      %3088 = vmatpush2.bf16.msra.mxu0 0
      %3089 = vmatprep.subr.bf16.mxu0 0
      %3090 = vmatpush2.bf16.msra.mxu0 0
      %3091 = vmatprep.subr.bf16.mxu0 0
      %3092 = vmatpush2.bf16.msra.mxu0 0
      %3093 = vmatprep.subr.bf16.mxu0 0
      %3094 = vmatpush2.bf16.msra.mxu0 0
      %3095 = vmatprep.subr.bf16.mxu0 0
      %3096 = vmatpush2.bf16.msra.mxu0 0
      %3097 = vmatprep.mubr.bf16.mxu0 0
      %3098 = vmatmul.mubr.bf16.gmra.mxu0 %v3045
      %v3099 = vpop.f32.mrf.mxu0
      %v3100 = vadd.f32 0.0, %v3099
      %v3101 = vpop.f32.mrf.mxu0
      %v3102 = vpop.f32.mrf.mxu0
      %v3103 = vadd.f32 0.0, %v3102
      %v3104 = vpop.f32.mrf.mxu0
      %3105 = vmatprep.mubr.bf16.mxu0 0
      %3106 = vmatmul.mubr.bf16.gmra.mxu0 %v3048
      %v3107 = vpop.f32.mrf.mxu0
      %v3108 = vadd.f32 0.0, %v3107
      %v3109 = vpop.f32.mrf.mxu0
      %v3110 = vpop.f32.mrf.mxu0
      %v3111 = vadd.f32 0.0, %v3110
      %v3112 = vpop.f32.mrf.mxu0
      %3113 = vmatprep.mubr.bf16.mxu0 0
      %3114 = vmatmul.mubr.bf16.gmra.mxu0 %v3051
      %v3115 = vpop.f32.mrf.mxu0
      %v3116 = vadd.f32 0.0, %v3115
      %v3117 = vpop.f32.mrf.mxu0
      %v3118 = vpop.f32.mrf.mxu0
      %v3119 = vadd.f32 0.0, %v3118
      %v3120 = vpop.f32.mrf.mxu0
      %3121 = vmatprep.mubr.bf16.mxu0 0
      %3122 = vmatmul.mubr.bf16.gmra.mxu0 %v3054
      %v3123 = vpop.f32.mrf.mxu0
      %v3124 = vadd.f32 0.0, %v3123
      %v3125 = vpop.f32.mrf.mxu0
      %v3126 = vpop.f32.mrf.mxu0
      %v3127 = vadd.f32 0.0, %v3126
      %v3128 = vpop.f32.mrf.mxu0
      %3129 = vmatprep.mubr.bf16.mxu0 0
      %3130 = vmatmul.mubr.bf16.gmra.mxu0 %v3057
      %v3131 = vpop.f32.mrf.mxu0
      %v3132 = vadd.f32 0.0, %v3131
      %v3133 = vpop.f32.mrf.mxu0
      %v3134 = vpop.f32.mrf.mxu0
      %v3135 = vadd.f32 0.0, %v3134
      %v3136 = vpop.f32.mrf.mxu0
      %3137 = vmatprep.mubr.bf16.mxu0 0
      %3138 = vmatmul.mubr.bf16.gmra.mxu0 %v3060
      %v3139 = vpop.f32.mrf.mxu0
      %v3140 = vadd.f32 0.0, %v3139
      %v3141 = vpop.f32.mrf.mxu0
      %v3142 = vpop.f32.mrf.mxu0
      %v3143 = vadd.f32 0.0, %v3142
      %v3144 = vpop.f32.mrf.mxu0
      %3145 = vdwg.mxu0
      %v3146 = vadd.f32 %v3014, %v3100
      %v3147 = vadd.f32 %v3015, %v3103
      %v3148 = vadd.f32 %v3016, %v3108
      %v3149 = vadd.f32 %v3017, %v3111
      %v3150 = vadd.f32 %v3018, %v3116
      %v3151 = vadd.f32 %v3019, %v3119
      %v3152 = vadd.f32 %v3020, %v3124
      %v3153 = vadd.f32 %v3021, %v3127
      %v3154 = vadd.f32 %v3022, %v3132
      %v3155 = vadd.f32 %v3023, %v3135
      %v3156 = vadd.f32 %v3024, %v3140
      %v3157 = vadd.f32 %v3025, %v3143
      %3158 = vst.msk [vmem:[#allocation2] sm:$0xff] %vm569, %v3146
      %3159 = vst.msk [vmem:[#allocation2 + $0x8] sm:$0xff] %vm569, %v3147
      %3160 = vst.msk [vmem:[#allocation2 + $0x10] sm:$0xff] %vm569, %v3148
      %3161 = vst.msk [vmem:[#allocation2 + $0x18] sm:$0xff] %vm569, %v3149
      %3162 = vst.msk [vmem:[#allocation2 + $0x20] sm:$0xff] %vm569, %v3150
      %3163 = vst.msk [vmem:[#allocation2 + $0x28] sm:$0xff] %vm569, %v3151
      %3164 = vst.msk [vmem:[#allocation2 + $0x30] sm:$0xff] %vm569, %v3152
      %3165 = vst.msk [vmem:[#allocation2 + $0x38] sm:$0xff] %vm569, %v3153
      %3166 = vst.msk [vmem:[#allocation2 + $0x40] sm:$0xff] %vm569, %v3154
      %3167 = vst.msk [vmem:[#allocation2 + $0x48] sm:$0xff] %vm569, %v3155
      %3168 = vst.msk [vmem:[#allocation2 + $0x50] sm:$0xff] %vm569, %v3156
      %3169 = vst.msk [vmem:[#allocation2 + $0x58] sm:$0xff] %vm569, %v3157
      %v3170 = vld [vmem:[%s305] sm:$0xf]
      %v3171 = vld [vmem:[%s305 + $0x4] sm:$0xf]
      %v3172 = vld [vmem:[%s305 + $0x8] sm:$0x1]
      %v3173 = vld [vmem:[%s305 + $0xc] sm:$0xf]
      %v3174 = vld [vmem:[%s305 + $0x10] sm:$0xf]
      %v3175 = vld [vmem:[%s305 + $0x14] sm:$0x1]
      %v3177 = vshrl.u32 %v3170, 16
      %v3179 = vrot.slane %v3177, 4
      %v3180 = vshll.u32 %v3170, 16
      %v3182 = vrot.slane %v3180, 5
      %v3183 = vor.u32 %v3179, %v3182
      %v3184 = vrot.slane %v3183, 4
      %v3186 = vshll.u32 %v3171, 16
      %v3188 = vrot.slane %v3186, 5
      %v3189 = vsel %vm345, %v3184, %v3188
      %v3190 = vshrl.u32 %v3171, 16
      %v3192 = vrot.slane %v3190, 4
      %v3193 = vor.u32 %v3192, %v3188
      %v3194 = vrot.slane %v3193, 4
      %v3196 = vshll.u32 %v3172, 16
      %v3198 = vrot.slane %v3196, 5
      %v3199 = vsel %vm345, %v3194, %v3198
      %v3201 = vshrl.u32 %v3173, 16
      %v3203 = vrot.slane %v3201, 4
      %v3204 = vshll.u32 %v3173, 16
      %v3206 = vrot.slane %v3204, 5
      %v3207 = vor.u32 %v3203, %v3206
      %v3208 = vrot.slane %v3207, 4
      %v3210 = vshll.u32 %v3174, 16
      %v3212 = vrot.slane %v3210, 5
      %v3213 = vsel %vm345, %v3208, %v3212
      %v3214 = vshrl.u32 %v3174, 16
      %v3216 = vrot.slane %v3214, 4
      %v3217 = vor.u32 %v3216, %v3212
      %v3218 = vrot.slane %v3217, 4
      %v3220 = vshll.u32 %v3175, 16
      %v3222 = vrot.slane %v3220, 5
      %v3223 = vsel %vm345, %v3218, %v3222
      %v3224 = vld [vmem:[#allocation2 + $0x60] sm:$0xff]
      %v3225 = vld [vmem:[#allocation2 + $0x68] sm:$0xff]
      %v3226 = vld [vmem:[#allocation2 + $0x70] sm:$0xff]
      %v3227 = vld [vmem:[#allocation2 + $0x78] sm:$0xff]
      %v3228 = vunpack.c.l.b16 %v3189
      %v3229 = vunpack.c.l.b16 %v3199
      %v3230 = vunpack.c.l.b16 %v3213
      %v3231 = vunpack.c.l.b16 %v3223
      %v3232 = vpack.c.b16 %v3229, %v3228
      %v3233 = vpack.c.b16 %v3231, %v3230
      %v3235 = vsel %vm569, %v3232, 0
      %v3238 = vsel %vm569, %v3233, 0
      %3240 = vmatprep.subr.bf16.mxu0 0
      %3241 = vmatpush1.bf16.msra.mxu0 0
      %3242 = vmatprep.subr.bf16.mxu0 0
      %3243 = vmatpush1.bf16.msra.mxu0 0
      %3244 = vmatprep.subr.bf16.mxu0 0
      %3245 = vmatpush1.bf16.msra.mxu0 0
      %3246 = vmatprep.subr.bf16.mxu0 0
      %3247 = vmatpush1.bf16.msra.mxu0 0
      %3248 = vmatprep.subr.bf16.mxu0 0
      %3249 = vmatpush1.bf16.msra.mxu0 0
      %3250 = vmatprep.subr.bf16.mxu0 0
      %3251 = vmatpush1.bf16.msra.mxu0 0
      %3252 = vmatprep.subr.bf16.mxu0 0
      %3253 = vmatpush1.bf16.msra.mxu0 0
      %3254 = vmatprep.subr.bf16.mxu0 0
      %3255 = vmatpush1.bf16.msra.mxu0 %v3063
      %3256 = vmatprep.subr.bf16.mxu0 0
      %3257 = vmatpush2.bf16.msra.mxu0 0
      %3258 = vmatprep.subr.bf16.mxu0 0
      %3259 = vmatpush2.bf16.msra.mxu0 0
      %3260 = vmatprep.subr.bf16.mxu0 0
      %3261 = vmatpush2.bf16.msra.mxu0 0
      %3262 = vmatprep.subr.bf16.mxu0 0
      %3263 = vmatpush2.bf16.msra.mxu0 0
      %3264 = vmatprep.subr.bf16.mxu0 0
      %3265 = vmatpush2.bf16.msra.mxu0 0
      %3266 = vmatprep.subr.bf16.mxu0 0
      %3267 = vmatpush2.bf16.msra.mxu0 0
      %3268 = vmatprep.subr.bf16.mxu0 0
      %3269 = vmatpush2.bf16.msra.mxu0 0
      %3270 = vmatprep.subr.bf16.mxu0 0
      %3271 = vmatpush2.bf16.msra.mxu0 0
      %3272 = vmatprep.mubr.bf16.mxu0 0
      %3273 = vmatmul.mubr.bf16.gmra.mxu0 %v3235
      %v3274 = vpop.f32.mrf.mxu0
      %v3275 = vadd.f32 0.0, %v3274
      %v3276 = vpop.f32.mrf.mxu0
      %v3277 = vpop.f32.mrf.mxu0
      %v3278 = vadd.f32 0.0, %v3277
      %v3279 = vpop.f32.mrf.mxu0
      %3280 = vmatprep.mubr.bf16.mxu0 0
      %3281 = vmatmul.mubr.bf16.gmra.mxu0 %v3238
      %v3282 = vpop.f32.mrf.mxu0
      %v3283 = vadd.f32 0.0, %v3282
      %v3284 = vpop.f32.mrf.mxu0
      %v3285 = vpop.f32.mrf.mxu0
      %v3286 = vadd.f32 0.0, %v3285
      %v3287 = vpop.f32.mrf.mxu0
      %3288 = vdwg.mxu0
      %v3289 = vadd.f32 %v3224, %v3275
      %v3290 = vadd.f32 %v3225, %v3278
      %v3291 = vadd.f32 %v3226, %v3283
      %v3292 = vadd.f32 %v3227, %v3286
      %3293 = vst.msk [vmem:[#allocation2 + $0x60] sm:$0xff] %vm569, %v3289
      %3294 = vst.msk [vmem:[#allocation2 + $0x68] sm:$0xff] %vm569, %v3290
      %3295 = vst.msk [vmem:[#allocation2 + $0x70] sm:$0xff] %vm569, %v3291
      %3296 = vst.msk [vmem:[#allocation2 + $0x78] sm:$0xff] %vm569, %v3292
      %s3297 = scalar_lea.vmem %s2, 32
      %v3298 = vld [vmem:[%s3297] sm:$0xf]
      %v3299 = vld [vmem:[%s2588] sm:$0xe]
      %v3300 = vld [vmem:[%s2588 + $0x4] sm:$0xf]
      %v3301 = vld [vmem:[%s2588 + $0x8] sm:$0x1]
      %v3302 = vld [vmem:[%s2588 + $0xc] sm:$0xe]
      %v3303 = vld [vmem:[%s2588 + $0x10] sm:$0xf]
      %v3304 = vld [vmem:[%s2588 + $0x14] sm:$0x1]
      %v3305 = vld [vmem:[%s2588 + $0x18] sm:$0xe]
      %v3306 = vld [vmem:[%s2588 + $0x1c] sm:$0xf]
      %v3307 = vld [vmem:[%s2588 + $0x20] sm:$0x1]
      %v3308 = vld [vmem:[%s2588 + $0x24] sm:$0xe]
      %v3309 = vld [vmem:[%s2588 + $0x28] sm:$0xf]
      %v3310 = vld [vmem:[%s2588 + $0x2c] sm:$0x1]
      %v3311 = vld [vmem:[%s2588 + $0x30] sm:$0xe]
      %v3312 = vld [vmem:[%s2588 + $0x34] sm:$0xf]
      %v3313 = vld [vmem:[%s2588 + $0x38] sm:$0x1]
      %v3314 = vld [vmem:[%s2588 + $0x3c] sm:$0xe]
      %v3315 = vld [vmem:[%s2588 + $0x40] sm:$0xf]
      %v3316 = vld [vmem:[%s2588 + $0x44] sm:$0x1]
      %v3335 = vrot.slane %v3299, 5
      %v3336 = vrot.slane %v3335, 4
      %v3337 = vrot.slane %v3300, 5
      %v3338 = vsel %vm1295, %v3336, %v3337
      %v3339 = vrot.slane %v3337, 4
      %v3340 = vrot.slane %v3301, 5
      %v3341 = vsel %vm1295, %v3339, %v3340
      %v3342 = vrot.slane %v3302, 5
      %v3343 = vrot.slane %v3342, 4
      %v3344 = vrot.slane %v3303, 5
      %v3345 = vsel %vm1295, %v3343, %v3344
      %v3346 = vrot.slane %v3344, 4
      %v3347 = vrot.slane %v3304, 5
      %v3348 = vsel %vm1295, %v3346, %v3347
      %v3349 = vrot.slane %v3305, 5
      %v3350 = vrot.slane %v3349, 4
      %v3351 = vrot.slane %v3306, 5
      %v3352 = vsel %vm1295, %v3350, %v3351
      %v3353 = vrot.slane %v3351, 4
      %v3354 = vrot.slane %v3307, 5
      %v3355 = vsel %vm1295, %v3353, %v3354
      %v3356 = vrot.slane %v3308, 5
      %v3357 = vrot.slane %v3356, 4
      %v3358 = vrot.slane %v3309, 5
      %v3359 = vsel %vm1295, %v3357, %v3358
      %v3360 = vrot.slane %v3358, 4
      %v3361 = vrot.slane %v3310, 5
      %v3362 = vsel %vm1295, %v3360, %v3361
      %v3363 = vrot.slane %v3311, 5
      %v3364 = vrot.slane %v3363, 4
      %v3365 = vrot.slane %v3312, 5
      %v3366 = vsel %vm1295, %v3364, %v3365
      %v3367 = vrot.slane %v3365, 4
      %v3368 = vrot.slane %v3313, 5
      %v3369 = vsel %vm1295, %v3367, %v3368
      %v3370 = vrot.slane %v3314, 5
      %v3371 = vrot.slane %v3370, 4
      %v3372 = vrot.slane %v3315, 5
      %v3373 = vsel %vm1295, %v3371, %v3372
      %v3374 = vrot.slane %v3372, 4
      %v3375 = vrot.slane %v3316, 5
      %v3376 = vsel %vm1295, %v3374, %v3375
      %v3377 = vld [vmem:[#allocation2] sm:$0xff]
      %v3378 = vld [vmem:[#allocation2 + $0x8] sm:$0xff]
      %v3379 = vld [vmem:[#allocation2 + $0x10] sm:$0xff]
      %v3380 = vld [vmem:[#allocation2 + $0x18] sm:$0xff]
      %v3381 = vld [vmem:[#allocation2 + $0x20] sm:$0xff]
      %v3382 = vld [vmem:[#allocation2 + $0x28] sm:$0xff]
      %v3383 = vld [vmem:[#allocation2 + $0x30] sm:$0xff]
      %v3384 = vld [vmem:[#allocation2 + $0x38] sm:$0xff]
      %v3385 = vld [vmem:[#allocation2 + $0x40] sm:$0xff]
      %v3386 = vld [vmem:[#allocation2 + $0x48] sm:$0xff]
      %v3387 = vld [vmem:[#allocation2 + $0x50] sm:$0xff]
      %v3388 = vld [vmem:[#allocation2 + $0x58] sm:$0xff]
      %v3389 = vunpack.c.l.b16 %v3338
      %v3390 = vunpack.c.l.b16 %v3341
      %v3391 = vunpack.c.l.b16 %v3345
      %v3392 = vunpack.c.l.b16 %v3348
      %v3393 = vunpack.c.l.b16 %v3352
      %v3394 = vunpack.c.l.b16 %v3355
      %v3395 = vunpack.c.l.b16 %v3359
      %v3396 = vunpack.c.l.b16 %v3362
      %v3397 = vunpack.c.l.b16 %v3366
      %v3398 = vunpack.c.l.b16 %v3369
      %v3399 = vunpack.c.l.b16 %v3373
      %v3400 = vunpack.c.l.b16 %v3376
      %v3401 = vpack.c.b16 %v3390, %v3389
      %v3402 = vpack.c.b16 %v3392, %v3391
      %v3403 = vpack.c.b16 %v3394, %v3393
      %v3404 = vpack.c.b16 %v3396, %v3395
      %v3405 = vpack.c.b16 %v3398, %v3397
      %v3406 = vpack.c.b16 %v3400, %v3399
      %v3408 = vsel %vm569, %v3401, 0
      %v3411 = vsel %vm569, %v3402, 0
      %v3414 = vsel %vm569, %v3403, 0
      %v3417 = vsel %vm569, %v3404, 0
      %v3420 = vsel %vm569, %v3405, 0
      %v3423 = vsel %vm569, %v3406, 0
      %v3426 = vsel %vm696, %v3298, 0
      %3428 = vmatprep.subr.bf16.mxu0 0
      %3429 = vmatpush1.bf16.msra.mxu0 0
      %3430 = vmatprep.subr.bf16.mxu0 0
      %3431 = vmatpush1.bf16.msra.mxu0 0
      %3432 = vmatprep.subr.bf16.mxu0 0
      %3433 = vmatpush1.bf16.msra.mxu0 0
      %3434 = vmatprep.subr.bf16.mxu0 0
      %3435 = vmatpush1.bf16.msra.mxu0 0
      %3436 = vmatprep.subr.bf16.mxu0 0
      %3437 = vmatpush1.bf16.msra.mxu0 0
      %3438 = vmatprep.subr.bf16.mxu0 0
      %3439 = vmatpush1.bf16.msra.mxu0 0
      %3440 = vmatprep.subr.bf16.mxu0 0
      %3441 = vmatpush1.bf16.msra.mxu0 0
      %3442 = vmatprep.subr.bf16.mxu0 0
      %3443 = vmatpush1.bf16.msra.mxu0 %v3426
      %3444 = vmatprep.subr.bf16.mxu0 0
      %3445 = vmatpush2.bf16.msra.mxu0 0
      %3446 = vmatprep.subr.bf16.mxu0 0
      %3447 = vmatpush2.bf16.msra.mxu0 0
      %3448 = vmatprep.subr.bf16.mxu0 0
      %3449 = vmatpush2.bf16.msra.mxu0 0
      %3450 = vmatprep.subr.bf16.mxu0 0
      %3451 = vmatpush2.bf16.msra.mxu0 0
      %3452 = vmatprep.subr.bf16.mxu0 0
      %3453 = vmatpush2.bf16.msra.mxu0 0
      %3454 = vmatprep.subr.bf16.mxu0 0
      %3455 = vmatpush2.bf16.msra.mxu0 0
      %3456 = vmatprep.subr.bf16.mxu0 0
      %3457 = vmatpush2.bf16.msra.mxu0 0
      %3458 = vmatprep.subr.bf16.mxu0 0
      %3459 = vmatpush2.bf16.msra.mxu0 0
      %3460 = vmatprep.mubr.bf16.mxu0 0
      %3461 = vmatmul.mubr.bf16.gmra.mxu0 %v3408
      %v3462 = vpop.f32.mrf.mxu0
      %v3463 = vadd.f32 0.0, %v3462
      %v3464 = vpop.f32.mrf.mxu0
      %v3465 = vpop.f32.mrf.mxu0
      %v3466 = vadd.f32 0.0, %v3465
      %v3467 = vpop.f32.mrf.mxu0
      %3468 = vmatprep.mubr.bf16.mxu0 0
      %3469 = vmatmul.mubr.bf16.gmra.mxu0 %v3411
      %v3470 = vpop.f32.mrf.mxu0
      %v3471 = vadd.f32 0.0, %v3470
      %v3472 = vpop.f32.mrf.mxu0
      %v3473 = vpop.f32.mrf.mxu0
      %v3474 = vadd.f32 0.0, %v3473
      %v3475 = vpop.f32.mrf.mxu0
      %3476 = vmatprep.mubr.bf16.mxu0 0
      %3477 = vmatmul.mubr.bf16.gmra.mxu0 %v3414
      %v3478 = vpop.f32.mrf.mxu0
      %v3479 = vadd.f32 0.0, %v3478
      %v3480 = vpop.f32.mrf.mxu0
      %v3481 = vpop.f32.mrf.mxu0
      %v3482 = vadd.f32 0.0, %v3481
      %v3483 = vpop.f32.mrf.mxu0
      %3484 = vmatprep.mubr.bf16.mxu0 0
      %3485 = vmatmul.mubr.bf16.gmra.mxu0 %v3417
      %v3486 = vpop.f32.mrf.mxu0
      %v3487 = vadd.f32 0.0, %v3486
      %v3488 = vpop.f32.mrf.mxu0
      %v3489 = vpop.f32.mrf.mxu0
      %v3490 = vadd.f32 0.0, %v3489
      %v3491 = vpop.f32.mrf.mxu0
      %3492 = vmatprep.mubr.bf16.mxu0 0
      %3493 = vmatmul.mubr.bf16.gmra.mxu0 %v3420
      %v3494 = vpop.f32.mrf.mxu0
      %v3495 = vadd.f32 0.0, %v3494
      %v3496 = vpop.f32.mrf.mxu0
      %v3497 = vpop.f32.mrf.mxu0
      %v3498 = vadd.f32 0.0, %v3497
      %v3499 = vpop.f32.mrf.mxu0
      %3500 = vmatprep.mubr.bf16.mxu0 0
      %3501 = vmatmul.mubr.bf16.gmra.mxu0 %v3423
      %v3502 = vpop.f32.mrf.mxu0
      %v3503 = vadd.f32 0.0, %v3502
      %v3504 = vpop.f32.mrf.mxu0
      %v3505 = vpop.f32.mrf.mxu0
      %v3506 = vadd.f32 0.0, %v3505
      %v3507 = vpop.f32.mrf.mxu0
      %3508 = vdwg.mxu0
      %v3509 = vadd.f32 %v3377, %v3463
      %v3510 = vadd.f32 %v3378, %v3466
      %v3511 = vadd.f32 %v3379, %v3471
      %v3512 = vadd.f32 %v3380, %v3474
      %v3513 = vadd.f32 %v3381, %v3479
      %v3514 = vadd.f32 %v3382, %v3482
      %v3515 = vadd.f32 %v3383, %v3487
      %v3516 = vadd.f32 %v3384, %v3490
      %v3517 = vadd.f32 %v3385, %v3495
      %v3518 = vadd.f32 %v3386, %v3498
      %v3519 = vadd.f32 %v3387, %v3503
      %v3520 = vadd.f32 %v3388, %v3506
      %3521 = vst.msk [vmem:[#allocation2] sm:$0xff] %vm569, %v3509
      %3522 = vst.msk [vmem:[#allocation2 + $0x8] sm:$0xff] %vm569, %v3510
      %3523 = vst.msk [vmem:[#allocation2 + $0x10] sm:$0xff] %vm569, %v3511
      %3524 = vst.msk [vmem:[#allocation2 + $0x18] sm:$0xff] %vm569, %v3512
      %3525 = vst.msk [vmem:[#allocation2 + $0x20] sm:$0xff] %vm569, %v3513
      %3526 = vst.msk [vmem:[#allocation2 + $0x28] sm:$0xff] %vm569, %v3514
      %3527 = vst.msk [vmem:[#allocation2 + $0x30] sm:$0xff] %vm569, %v3515
      %3528 = vst.msk [vmem:[#allocation2 + $0x38] sm:$0xff] %vm569, %v3516
      %3529 = vst.msk [vmem:[#allocation2 + $0x40] sm:$0xff] %vm569, %v3517
      %3530 = vst.msk [vmem:[#allocation2 + $0x48] sm:$0xff] %vm569, %v3518
      %3531 = vst.msk [vmem:[#allocation2 + $0x50] sm:$0xff] %vm569, %v3519
      %3532 = vst.msk [vmem:[#allocation2 + $0x58] sm:$0xff] %vm569, %v3520
      %v3533 = vld [vmem:[%s305] sm:$0xe]
      %v3534 = vld [vmem:[%s305 + $0x4] sm:$0xf]
      %v3535 = vld [vmem:[%s305 + $0x8] sm:$0x1]
      %v3536 = vld [vmem:[%s305 + $0xc] sm:$0xe]
      %v3537 = vld [vmem:[%s305 + $0x10] sm:$0xf]
      %v3538 = vld [vmem:[%s305 + $0x14] sm:$0x1]
      %v3545 = vrot.slane %v3533, 5
      %v3546 = vrot.slane %v3545, 4
      %v3547 = vrot.slane %v3534, 5
      %v3548 = vsel %vm1295, %v3546, %v3547
      %v3549 = vrot.slane %v3547, 4
      %v3550 = vrot.slane %v3535, 5
      %v3551 = vsel %vm1295, %v3549, %v3550
      %v3552 = vrot.slane %v3536, 5
      %v3553 = vrot.slane %v3552, 4
      %v3554 = vrot.slane %v3537, 5
      %v3555 = vsel %vm1295, %v3553, %v3554
      %v3556 = vrot.slane %v3554, 4
      %v3557 = vrot.slane %v3538, 5
      %v3558 = vsel %vm1295, %v3556, %v3557
      %v3559 = vld [vmem:[#allocation2 + $0x60] sm:$0xff]
      %v3560 = vld [vmem:[#allocation2 + $0x68] sm:$0xff]
      %v3561 = vld [vmem:[#allocation2 + $0x70] sm:$0xff]
      %v3562 = vld [vmem:[#allocation2 + $0x78] sm:$0xff]
      %v3563 = vunpack.c.l.b16 %v3548
      %v3564 = vunpack.c.l.b16 %v3551
      %v3565 = vunpack.c.l.b16 %v3555
      %v3566 = vunpack.c.l.b16 %v3558
      %v3567 = vpack.c.b16 %v3564, %v3563
      %v3568 = vpack.c.b16 %v3566, %v3565
      %v3570 = vsel %vm569, %v3567, 0
      %v3573 = vsel %vm569, %v3568, 0
      %3575 = vmatprep.subr.bf16.mxu0 0
      %3576 = vmatpush1.bf16.msra.mxu0 0
      %3577 = vmatprep.subr.bf16.mxu0 0
      %3578 = vmatpush1.bf16.msra.mxu0 0
      %3579 = vmatprep.subr.bf16.mxu0 0
      %3580 = vmatpush1.bf16.msra.mxu0 0
      %3581 = vmatprep.subr.bf16.mxu0 0
      %3582 = vmatpush1.bf16.msra.mxu0 0
      %3583 = vmatprep.subr.bf16.mxu0 0
      %3584 = vmatpush1.bf16.msra.mxu0 0
      %3585 = vmatprep.subr.bf16.mxu0 0
      %3586 = vmatpush1.bf16.msra.mxu0 0
      %3587 = vmatprep.subr.bf16.mxu0 0
      %3588 = vmatpush1.bf16.msra.mxu0 0
      %3589 = vmatprep.subr.bf16.mxu0 0
      %3590 = vmatpush1.bf16.msra.mxu0 %v3426
      %3591 = vmatprep.subr.bf16.mxu0 0
      %3592 = vmatpush2.bf16.msra.mxu0 0
      %3593 = vmatprep.subr.bf16.mxu0 0
      %3594 = vmatpush2.bf16.msra.mxu0 0
      %3595 = vmatprep.subr.bf16.mxu0 0
      %3596 = vmatpush2.bf16.msra.mxu0 0
      %3597 = vmatprep.subr.bf16.mxu0 0
      %3598 = vmatpush2.bf16.msra.mxu0 0
      %3599 = vmatprep.subr.bf16.mxu0 0
      %3600 = vmatpush2.bf16.msra.mxu0 0
      %3601 = vmatprep.subr.bf16.mxu0 0
      %3602 = vmatpush2.bf16.msra.mxu0 0
      %3603 = vmatprep.subr.bf16.mxu0 0
      %3604 = vmatpush2.bf16.msra.mxu0 0
      %3605 = vmatprep.subr.bf16.mxu0 0
      %3606 = vmatpush2.bf16.msra.mxu0 0
      %3607 = vmatprep.mubr.bf16.mxu0 0
      %3608 = vmatmul.mubr.bf16.gmra.mxu0 %v3570
      %v3609 = vpop.f32.mrf.mxu0
      %v3610 = vadd.f32 0.0, %v3609
      %v3611 = vpop.f32.mrf.mxu0
      %v3612 = vpop.f32.mrf.mxu0
      %v3613 = vadd.f32 0.0, %v3612
      %v3614 = vpop.f32.mrf.mxu0
      %3615 = vmatprep.mubr.bf16.mxu0 0
      %3616 = vmatmul.mubr.bf16.gmra.mxu0 %v3573
      %v3617 = vpop.f32.mrf.mxu0
      %v3618 = vadd.f32 0.0, %v3617
      %v3619 = vpop.f32.mrf.mxu0
      %v3620 = vpop.f32.mrf.mxu0
      %v3621 = vadd.f32 0.0, %v3620
      %v3622 = vpop.f32.mrf.mxu0
      %3623 = vdwg.mxu0
      %v3624 = vadd.f32 %v3559, %v3610
      %v3625 = vadd.f32 %v3560, %v3613
      %v3626 = vadd.f32 %v3561, %v3618
      %v3627 = vadd.f32 %v3562, %v3621
      %3628 = vst.msk [vmem:[#allocation2 + $0x60] sm:$0xff] %vm569, %v3624
      %3629 = vst.msk [vmem:[#allocation2 + $0x68] sm:$0xff] %vm569, %v3625
      %3630 = vst.msk [vmem:[#allocation2 + $0x70] sm:$0xff] %vm569, %v3626
      %3631 = vst.msk [vmem:[#allocation2 + $0x78] sm:$0xff] %vm569, %v3627
      %v3632 = vld [vmem:[#allocation2] sm:$0xff]
      %v3633 = vld [vmem:[#allocation2 + $0x8] sm:$0xff]
      %v3634 = vld [vmem:[#allocation2 + $0x10] sm:$0xff]
      %v3635 = vld [vmem:[#allocation2 + $0x18] sm:$0xff]
      %v3636 = vld [vmem:[#allocation2 + $0x20] sm:$0xff]
      %v3637 = vld [vmem:[#allocation2 + $0x28] sm:$0xff]
      %v3638 = vld [vmem:[#allocation2 + $0x30] sm:$0xff]
      %v3639 = vld [vmem:[#allocation2 + $0x38] sm:$0xff]
      %v3640 = vld [vmem:[#allocation2 + $0x40] sm:$0xff]
      %v3641 = vld [vmem:[#allocation2 + $0x48] sm:$0xff]
      %v3642 = vld [vmem:[#allocation2 + $0x50] sm:$0xff]
      %v3643 = vld [vmem:[#allocation2 + $0x58] sm:$0xff]
      %v3644 = vld [vmem:[#allocation2 + $0x60] sm:$0xff]
      %v3645 = vld [vmem:[#allocation2 + $0x68] sm:$0xff]
      %v3646 = vld [vmem:[#allocation2 + $0x70] sm:$0xff]
      %v3647 = vld [vmem:[#allocation2 + $0x78] sm:$0xff]
      %v3648 = vmul.f32 %v3632, 0.2
      %v3649 = vmul.f32 %v3633, 0.2
      %v3650 = vmul.f32 %v3634, 0.2
      %v3651 = vmul.f32 %v3635, 0.2
      %v3652 = vmul.f32 %v3636, 0.2
      %v3653 = vmul.f32 %v3637, 0.2
      %v3654 = vmul.f32 %v3638, 0.2
      %v3655 = vmul.f32 %v3639, 0.2
      %v3656 = vmul.f32 %v3640, 0.2
      %v3657 = vmul.f32 %v3641, 0.2
      %v3658 = vmul.f32 %v3642, 0.2
      %v3659 = vmul.f32 %v3643, 0.2
      %v3660 = vmul.f32 %v3644, 0.2
      %v3661 = vmul.f32 %v3645, 0.2
      %v3662 = vmul.f32 %v3646, 0.2
      %v3663 = vmul.f32 %v3647, 0.2
      %v3664 = vmax.f32 %v3632, %v3648
      %v3665 = vmax.f32 %v3633, %v3649
      %v3666 = vmax.f32 %v3634, %v3650
      %v3667 = vmax.f32 %v3635, %v3651
      %v3668 = vmax.f32 %v3636, %v3652
      %v3669 = vmax.f32 %v3637, %v3653
      %v3670 = vmax.f32 %v3638, %v3654
      %v3671 = vmax.f32 %v3639, %v3655
      %v3672 = vmax.f32 %v3640, %v3656
      %v3673 = vmax.f32 %v3641, %v3657
      %v3674 = vmax.f32 %v3642, %v3658
      %v3675 = vmax.f32 %v3643, %v3659
      %v3676 = vmax.f32 %v3644, %v3660
      %v3677 = vmax.f32 %v3645, %v3661
      %v3678 = vmax.f32 %v3646, %v3662
      %v3679 = vmax.f32 %v3647, %v3663
      %v3680 = vpack.c.bf16 %v3665, %v3664
      %v3681 = vpack.c.bf16 %v3667, %v3666
      %v3682 = vpack.c.bf16 %v3669, %v3668
      %v3683 = vpack.c.bf16 %v3671, %v3670
      %v3684 = vpack.c.bf16 %v3673, %v3672
      %v3685 = vpack.c.bf16 %v3675, %v3674
      %v3686 = vpack.c.bf16 %v3677, %v3676
      %v3687 = vpack.c.bf16 %v3679, %v3678
      %v3696 = vunpack.c.l.b16 %v3680
      %v3697 = vunpack.c.h.b16 %v3680
      %v3698 = vunpack.c.l.b16 %v3681
      %v3699 = vunpack.c.h.b16 %v3681
      %v3700 = vunpack.c.l.b16 %v3682
      %v3701 = vunpack.c.h.b16 %v3682
      %v3702 = vunpack.c.l.b16 %v3683
      %v3703 = vunpack.c.h.b16 %v3683
      %v3704 = vunpack.c.l.b16 %v3684
      %v3705 = vunpack.c.h.b16 %v3684
      %v3706 = vunpack.c.l.b16 %v3685
      %v3707 = vunpack.c.h.b16 %v3685
      %v3708 = vunpack.c.l.b16 %v3686
      %v3709 = vunpack.c.h.b16 %v3686
      %v3710 = vunpack.c.l.b16 %v3687
      %v3711 = vunpack.c.h.b16 %v3687
      %v3712 = vpack.c.b16 %v3696, %v3696
      %v3713 = vpack.c.b16 %v3697, %v3697
      %v3714 = vpack.c.b16 %v3698, %v3698
      %v3715 = vpack.c.b16 %v3699, %v3699
      %v3716 = vpack.c.b16 %v3700, %v3700
      %v3717 = vpack.c.b16 %v3701, %v3701
      %v3718 = vpack.c.b16 %v3702, %v3702
      %v3719 = vpack.c.b16 %v3703, %v3703
      %v3720 = vpack.c.b16 %v3704, %v3704
      %v3721 = vpack.c.b16 %v3705, %v3705
      %v3722 = vpack.c.b16 %v3706, %v3706
      %v3723 = vpack.c.b16 %v3707, %v3707
      %v3724 = vpack.c.b16 %v3708, %v3708
      %v3725 = vpack.c.b16 %v3709, %v3709
      %v3726 = vpack.c.b16 %v3710, %v3710
      %v3727 = vpack.c.b16 %v3711, %v3711
      %vm3744 = vcmask 60416
      %3745 = vst.msk [vmem:[%s318] sm:$0xf] %vm3744, %v3712
      %3746 = vst.msk [vmem:[%s318 + $0x4] sm:$0xf] %vm3744, %v3713
      %3747 = vst.msk [vmem:[%s318 + $0x8] sm:$0xf] %vm3744, %v3714
      %3748 = vst.msk [vmem:[%s318 + $0xc] sm:$0xf] %vm3744, %v3715
      %3749 = vst.msk [vmem:[%s318 + $0x10] sm:$0xf] %vm3744, %v3716
      %3750 = vst.msk [vmem:[%s318 + $0x14] sm:$0xf] %vm3744, %v3717
      %3751 = vst.msk [vmem:[%s318 + $0x18] sm:$0xf] %vm3744, %v3718
      %3752 = vst.msk [vmem:[%s318 + $0x1c] sm:$0xf] %vm3744, %v3719
      %3753 = vst.msk [vmem:[%s318 + $0x20] sm:$0xf] %vm3744, %v3720
      %3754 = vst.msk [vmem:[%s318 + $0x24] sm:$0xf] %vm3744, %v3721
      %3755 = vst.msk [vmem:[%s318 + $0x28] sm:$0xf] %vm3744, %v3722
      %3756 = vst.msk [vmem:[%s318 + $0x2c] sm:$0xf] %vm3744, %v3723
      %3757 = vst.msk [vmem:[%s318 + $0x30] sm:$0xf] %vm3744, %v3724
      %3758 = vst.msk [vmem:[%s318 + $0x34] sm:$0xf] %vm3744, %v3725
      %3759 = vst.msk [vmem:[%s318 + $0x38] sm:$0xf] %vm3744, %v3726
      %3760 = vst.msk [vmem:[%s318 + $0x3c] sm:$0xf] %vm3744, %v3727
      %s3761 = smul.u32 8, %s20
      %p3762 = scmp.lt.s32.totalorder %s19, 1
      %s3763 = scalar_select %p3762, %s19, 1
      %p3764 = scmp.lt.s32.totalorder %s3761, 15
      %s3765 = scalar_select %p3764, %s3761, 15
      %s3766 = smul.addr %s3765, 2
      %s3767 = smul.addr %s3763, 32
      %s3768 = sadd.s32 %s3766, %s3767
      %s3769 = smul.addr %s3768, 4
      %s3770 = scalar_lea.vmem %s4, %s3769
      // Predicated region
      $region37: #{tpu_custom_call.1} parent=35 // pred_check
        %p3771 = pneg %p149
      $region38: #{tpu_custom_call.1} parent=35 // pred_check_branch
        %3773 = sbr.rel (%p3771) target = $region40
      $region39: #{tpu_custom_call.1} parent=35 // pred_region
        %s3774 = smul.u32 8, %s20
      $region40: #{tpu_custom_call.1} parent=35 // pred_fallthru
        _
    $region36: #{tpu_custom_call.1} parent=5 // pred_fallthru
      _
    %p3775 = scmp.le.s32.totalorder 2, %s10
    // Predicated region
    $region41: #{tpu_custom_call.1} parent=5 // pred_check
      %p3776 = pneg %p3775
    $region42: #{tpu_custom_call.1} parent=5 // pred_check_branch
      %3778 = sbr.rel (%p3776) target = $region44
    $region43: #{tpu_custom_call.1} parent=5 // pred_region
      %s3779 = ssub.s32 %s10, 2
      // Predicated region
      $region45: #{tpu_custom_call.1} parent=43 // pred_check
        %p3780 = pneg %p155
      $region46: #{tpu_custom_call.1} parent=43 // pred_check_branch
        %3782 = sbr.rel (%p3780) target = $region48
      $region47: #{tpu_custom_call.1} parent=43 // pred_region
        %s3783 = smul.u32 8, %s22
        %p3784 = scmp.lt.s32.totalorder %s21, 1
        %s3785 = scalar_select %p3784, %s21, 1
        %p3786 = scmp.lt.s32.totalorder %s3783, 15
        %s3787 = scalar_select %p3786, %s3783, 15
        %s3788 = smul.addr %s3787, 2
        %s3789 = smul.addr %s3785, 32
        %s3790 = sadd.s32 %s3788, %s3789
        %s3791 = smul.addr %s3790, 4
        %s3792 = scalar_lea.vmem %s4, %s3791
      $region48: #{tpu_custom_call.1} parent=43 // pred_fallthru
        _
    $region44: #{tpu_custom_call.1} parent=5 // pred_fallthru
      _
  $region6: #{tpu_custom_call.1} parent=0 // loop_footer
    %s14 = sadd.s32 1, %s10
  $region7: #{tpu_custom_call.1} parent=0 // loop_footer_branch
    %9 = sbr.rel target = $region3
  $region8: #{tpu_custom_call.1} parent=0 // loop_exit
    _

</llo_original>
